<compile_context>
chip_gen: v5e
topology: v5e:2x2
jax: 0.10.0
libtpu: 0.0.40
codegen_flags: <defaults>
</compile_context>

<pallas_src>
import functools
import math

import jax
import jax.numpy as jnp
from jax import lax
from jax.experimental import pallas as pl
from jax.experimental.pallas import tpu as pltpu


TILE_M = 512                       # rows (output positions) per grid step
VMEM_LIMIT = 32 * 1024 * 1024      # conservative: fits v5e/v6e/v7x scoped VMEM


def _round_up(x, m):
    return (x + m - 1) // m * m


def _cparams(semantics):
    return pltpu.CompilerParams(dimension_semantics=semantics,
                                vmem_limit_bytes=VMEM_LIMIT)


def _pad_rows(a, tile_m=TILE_M):
    """Pad rows so the row grid divides exactly; returns (padded, tile_m)."""
    m = a.shape[0]
    tm = min(tile_m, _round_up(m, 8))
    mp = _round_up(m, tm)
    if mp != m:
        a = jnp.pad(a, ((0, mp - m), (0, 0)))
    return a, tm


# ----------------------------- Pallas kernels ------------------------------

def _matmul_bias_kernel(p_ref, w_ref, b_ref, o_ref, *, act):
    """One row tile of o = act(p @ w + b) (theta-net conv layers 1 & 2)."""
    y = jnp.dot(p_ref[...], w_ref[...], preferred_element_type=jnp.float32)
    y = y + b_ref[...]
    if act == "relu":
        y = jnp.maximum(y, 0.0)
    o_ref[...] = y


def _theta_reduce_kernel(p_ref, w_ref, b_ref, o_ref, *, m_valid, tile_m):
    """Final theta layer fused with its reduction:
       theta = mean(sigmoid(p @ w + b)), accumulated across the row grid."""
    i = pl.program_id(0)

    @pl.when(i == 0)
    def _():
        o_ref[...] = jnp.zeros_like(o_ref)

    z = jnp.dot(p_ref[...], w_ref[...], preferred_element_type=jnp.float32)
    z = z + b_ref[...]
    s = jax.nn.sigmoid(z)                                    # (tile_m, 1)
    row = i * tile_m + lax.broadcasted_iota(jnp.int32, s.shape, 0)
    s = jnp.where(row < m_valid, s, 0.0)                     # drop padded rows
    o_ref[...] += jnp.sum(s, axis=0, keepdims=True)

    @pl.when(i == pl.num_programs(0) - 1)
    def _():
        o_ref[...] = o_ref[...] * (1.0 / m_valid)


def _ggc_main_kernel(theta_ref, p_ref, xs_ref, wm_ref, wd_ref, bm_ref, bd_ref,
                     o_ref):
    """Fused per-row-tile: 3x3 conv + 1x1 diff conv + theta combine + gate.

    out = LeakyReLU_{0.2}(nx - t*dx) * sigmoid(ny - t*dy), t zeroed below 1e-8
    (matching `out_combined = out_normal` in the PyTorch |theta|<1e-8 branch).
    """
    t = theta_ref[0, 0]                                       # SMEM scalar
    t = jnp.where(jnp.abs(t) >= 1e-8, t, 0.0)
    yn = jnp.dot(p_ref[...], wm_ref[...], preferred_element_type=jnp.float32)
    yn = yn + bm_ref[...]
    yd = jnp.dot(xs_ref[...], wd_ref[...], preferred_element_type=jnp.float32)
    yd = yd + bd_ref[...]
    comb = yn - t * yd                                        # (tile_m, 2*cout)
    cout = o_ref.shape[-1]
    xh = comb[:, :cout]
    yh = comb[:, cout:]
    gate = jax.nn.sigmoid(yh)
    act = jnp.where(xh >= 0.0, xh, 0.2 * xh)                  # LeakyReLU(0.2)
    o_ref[...] = act * gate


# ------------------------- pallas_call wrappers -----------------------------

def matmul_bias(p, w, b, act=None, tile_m=TILE_M):
    m = p.shape[0]
    p, tm = _pad_rows(p, tile_m)
    mp, k = p.shape
    n = w.shape[1]
    out = pl.pallas_call(
        functools.partial(_matmul_bias_kernel, act=act),
        out_shape=jax.ShapeDtypeStruct((mp, n), jnp.float32),
        grid=(mp // tm,),
        in_specs=[
            pl.BlockSpec((tm, k), lambda i: (i, 0)),          # streamed rows
            pl.BlockSpec((k, n), lambda i: (0, 0)),           # resident weight
            pl.BlockSpec((1, n), lambda i: (0, 0)),           # resident bias
        ],
        out_specs=pl.BlockSpec((tm, n), lambda i: (i, 0)),
        compiler_params=_cparams(("parallel",)),
    )(p, w, b)
    return out[:m]


def theta_reduce(p, w, b, tile_m=TILE_M):
    m = p.shape[0]
    p, tm = _pad_rows(p, tile_m)
    mp, k = p.shape
    return pl.pallas_call(
        functools.partial(_theta_reduce_kernel, m_valid=m, tile_m=tm),
        out_shape=jax.ShapeDtypeStruct((1, 1), jnp.float32),
        grid=(mp // tm,),
        in_specs=[
            pl.BlockSpec((tm, k), lambda i: (i, 0)),
            pl.BlockSpec((k, 1), lambda i: (0, 0)),
            pl.BlockSpec((1, 1), lambda i: (0, 0)),
        ],
        out_specs=pl.BlockSpec((1, 1), lambda i: (0, 0)),     # accumulator block
        compiler_params=_cparams(("arbitrary",)),
    )(p, w, b)


def ggc_fused_conv_gate(theta, p_main, x_sub, w_main, w_diff, b_conv, b_diff,
                        cout, tile_m=TILE_M):
    m = p_main.shape[0]
    p_main, tm = _pad_rows(p_main, tile_m)
    x_sub, _ = _pad_rows(x_sub, tile_m)
    mp, kp = p_main.shape
    cin = x_sub.shape[1]
    two_cout = w_main.shape[1]
    out = pl.pallas_call(
        _ggc_main_kernel,
        out_shape=jax.ShapeDtypeStruct((mp, cout), jnp.float32),
        grid=(mp // tm,),
        in_specs=[
            pl.BlockSpec(memory_space=pltpu.MemorySpace.SMEM),    # theta (1,1)
            pl.BlockSpec((tm, kp), lambda i: (i, 0)),             # main patches
            pl.BlockSpec((tm, cin), lambda i: (i, 0)),            # 1x1 input
            pl.BlockSpec((kp, two_cout), lambda i: (0, 0)),       # resident W
            pl.BlockSpec((cin, two_cout), lambda i: (0, 0)),      # resident Wd
            pl.BlockSpec((1, two_cout), lambda i: (0, 0)),        # resident b
            pl.BlockSpec((1, two_cout), lambda i: (0, 0)),        # resident bd
        ],
        out_specs=pl.BlockSpec((tm, cout), lambda i: (i, 0)),
        compiler_params=_cparams(("parallel",)),
    )(theta, p_main, x_sub, w_main, w_diff, b_conv, b_diff)
    return out[:m]


# ------------------------------- JAX glue ----------------------------------

def extract_patches(x, ksize, stride, pad):
    """x: (N,H,W,C) NHWC -> (N*Ho*Wo, ksize*ksize*C) im2col matrix."""
    n, h, w, c = x.shape
    xp = jnp.pad(x, ((0, 0), (pad, pad), (pad, pad), (0, 0)))
    ho = (h + 2 * pad - ksize) // stride + 1
    wo = (w + 2 * pad - ksize) // stride + 1
    cols = []
    for kh in range(ksize):
        for kw in range(ksize):
            sl = xp[:, kh:kh + stride * ho:stride, kw:kw + stride * wo:stride, :]
            cols.append(sl)
    patches = jnp.concatenate(cols, axis=-1)                  # (N,Ho,Wo,k*k*C)
    return patches.reshape(n * ho * wo, ksize * ksize * c), (n, ho, wo)


def init_params(key, cin, cout, theta_hidden):
    ks = jax.random.split(key, 8)
    two_cout = 2 * cout

    # conv: kaiming_normal_ (fan_in = cin*3*3, gain = sqrt(2))
    std = math.sqrt(2.0 / (cin * 9))
    w_conv = jax.random.normal(ks[0], (3, 3, cin, two_cout), jnp.float32) * std
    # PyTorch default Conv2d bias init: U(-1/sqrt(fan_in), 1/sqrt(fan_in))
    bb = 1.0 / math.sqrt(cin * 9)
    b_conv = jax.random.uniform(ks[1], (1, two_cout), jnp.float32, -bb, bb)
    bd = 1.0 / math.sqrt(cin)                                 # diff_conv fan_in
    b_diff = jax.random.uniform(ks[2], (1, two_cout), jnp.float32, -bd, bd)
    # diff_conv.weight is overwritten in forward by the spatial sum of
    # conv.weight; only its bias survives.

    # theta_net: kaiming_uniform_ (fan_in, relu) with zero bias
    def kaiming_uniform(k, kh, kw, ci, co):
        bound = math.sqrt(6.0 / (ci * kh * kw))
        return jax.random.uniform(k, (kh, kw, ci, co), jnp.float32, -bound, bound)

    w_t1 = kaiming_uniform(ks[3], 3, 3, cin, theta_hidden)
    w_t2 = kaiming_uniform(ks[4], 3, 3, theta_hidden, theta_hidden)
    w_t3 = kaiming_uniform(ks[5], 3, 3, theta_hidden, 1)
    b_t1 = jnp.zeros((1, theta_hidden), jnp.float32)
    b_t2 = jnp.zeros((1, theta_hidden), jnp.float32)
    b_t3 = jnp.zeros((1, 1), jnp.float32)

    return dict(w_conv=w_conv, b_conv=b_conv, b_diff=b_diff,
                w_t1=w_t1, b_t1=b_t1, w_t2=w_t2, b_t2=b_t2,
                w_t3=w_t3, b_t3=b_t3)


@functools.partial(jax.jit, static_argnames=("stride",))
def ggc_forward(params, x_nchw, stride=2):
    x = jnp.transpose(x_nchw, (0, 2, 3, 1)).astype(jnp.float32)   # NHWC
    n, h, w, cin = x.shape
    two_cout = params["w_conv"].shape[-1]
    cout = two_cout // 2
    th = params["w_t1"].shape[-1]

    # --- theta net: 3x(3x3 s1 p1 conv); last layer fused with sigmoid+mean ---
    p1, _ = extract_patches(x, 3, 1, 1)
    h1 = matmul_bias(p1, params["w_t1"].reshape(9 * cin, th),
                     params["b_t1"], act="relu")
    p2, _ = extract_patches(h1.reshape(n, h, w, th), 3, 1, 1)
    h2 = matmul_bias(p2, params["w_t2"].reshape(9 * th, th),
                     params["b_t2"], act="relu")
    p3, _ = extract_patches(h2.reshape(n, h, w, th), 3, 1, 1)
    theta = theta_reduce(p3, params["w_t3"].reshape(9 * th, 1),
                         params["b_t3"])                          # (1,1) scalar

    # --- main path: fused 3x3 s2 conv + 1x1 s2 diff conv + combine + gate ---
    p_main, (_, ho, wo) = extract_patches(x, 3, stride, 1)
    w_main = params["w_conv"].reshape(9 * cin, two_cout)
    w_diff = params["w_conv"].sum(axis=(0, 1))                    # (cin, 2*cout)
    x_sub = x[:, ::stride, ::stride, :].reshape(n * ho * wo, cin)

    out = ggc_fused_conv_gate(theta, p_main, x_sub, w_main, w_diff,
                              params["b_conv"], params["b_diff"], cout)

    out = out.reshape(n, ho, wo, cout).transpose(0, 3, 1, 2)      # NCHW boundary
    return out


if __name__ == "__main__":
    key = jax.random.PRNGKey(0)
    k_par, k_x = jax.random.split(key)

    N, Cin, Cout, H, W = 2, 4, 8, 16, 16
    theta_hidden = 32

    params = init_params(k_par, Cin, Cout, theta_hidden)
    x = jax.random.normal(k_x, (N, Cin, H, W), jnp.float32)       # NCHW input

    out = ggc_forward(params, x)                                  # (N, Cout, H//2, W//2)
    jax.block_until_ready(out)
    assert out.shape == (N, Cout, H // 2, W // 2)
    print("KERNEL_OK")
</pallas_src>

<mosaic_0001>
module attributes {stable_mosaic.version = 11 : i64} {
  func.func @_matmul_bias_kernel(%arg0: i32, %arg1: memref<512x36xf32, #tpu.memory_space<vmem>>, %arg2: memref<36x32xf32, #tpu.memory_space<vmem>>, %arg3: memref<1x32xf32, #tpu.memory_space<vmem>>, %arg4: memref<512x32xf32, #tpu.memory_space<vmem>>) attributes {dimension_semantics = [#tpu.dimension_semantics<parallel>], iteration_bounds = array<i64: 1>, scalar_prefetch = 0 : i64, scratch_operands = 0 : i64, tpu.core_type = #tpu.core_type<tc>, window_params = [{transform_indices = @transform_0, window_bounds = array<i64: 512, 36>}, {pipeline_mode = #tpu.pipeline_mode<synchronous>, transform_indices = @transform_1, window_bounds = array<i64: 36, 32>}, {pipeline_mode = #tpu.pipeline_mode<synchronous>, transform_indices = @transform_2, window_bounds = array<i64: 1, 32>}, {transform_indices = @transform_3, window_bounds = array<i64: 512, 32>}]} {
    %c0 = arith.constant 0 : index
    %c0_0 = arith.constant 0 : index
    %0 = vector.load %arg1[%c0, %c0_0] : memref<512x36xf32, #tpu.memory_space<vmem>>, vector<512x36xf32>
    %c0_1 = arith.constant 0 : index
    %c0_2 = arith.constant 0 : index
    %1 = vector.load %arg2[%c0_1, %c0_2] : memref<36x32xf32, #tpu.memory_space<vmem>>, vector<36x32xf32>
    %cst = arith.constant dense<0.000000e+00> : vector<512x32xf32>
    %2 = tpu.matmul %0, %1, %cst {dimension_numbers = #tpu.dot_dimension_numbers<[1], [0], [0], [1], [0, 0, 1, 1], [], []>} : vector<512x36xf32>, vector<36x32xf32>, vector<512x32xf32> -> vector<512x32xf32>
    %c0_3 = arith.constant 0 : index
    %c0_4 = arith.constant 0 : index
    %3 = vector.load %arg3[%c0_3, %c0_4] : memref<1x32xf32, #tpu.memory_space<vmem>>, vector<1x32xf32>
    %4 = vector.broadcast %3 : vector<1x32xf32> to vector<512x32xf32>
    %5 = arith.addf %2, %4 : vector<512x32xf32>
    %cst_5 = arith.constant 0.000000e+00 : f32
    %6 = vector.broadcast %cst_5 : f32 to vector<512x32xf32>
    %7 = arith.maximumf %5, %6 : vector<512x32xf32>
    %c0_6 = arith.constant 0 : index
    %c0_7 = arith.constant 0 : index
    %8 = vector.load %arg4[%c0_6, %c0_7] : memref<512x32xf32, #tpu.memory_space<vmem>>, vector<512x32xf32>
    tpu.vector_store %arg4[%c0_6, %c0_7], %7 {strides = array<i32>} : memref<512x32xf32, #tpu.memory_space<vmem>>, vector<512x32xf32>,
    return
  }
  func.func @transform_0(%arg0: i32) -> (i32, i32) {
    %c0_i32 = arith.constant 0 : i32
    %c0_i32_0 = arith.constant 0 : i32
    return %arg0, %c0_i32 : i32, i32
  }
  func.func @transform_1(%arg0: i32) -> (i32, i32) {
    %c0_i32 = arith.constant 0 : i32
    %c0_i32_0 = arith.constant 0 : i32
    %c0_i32_1 = arith.constant 0 : i32
    return %c0_i32, %c0_i32_0 : i32, i32
  }
  func.func @transform_2(%arg0: i32) -> (i32, i32) {
    %c0_i32 = arith.constant 0 : i32
    %c0_i32_0 = arith.constant 0 : i32
    %c0_i32_1 = arith.constant 0 : i32
    return %c0_i32, %c0_i32_0 : i32, i32
  }
  func.func @transform_3(%arg0: i32) -> (i32, i32) {
    %c0_i32 = arith.constant 0 : i32
    %c0_i32_0 = arith.constant 0 : i32
    return %arg0, %c0_i32 : i32, i32
  }
}

module attributes {stable_mosaic.version = 11 : i64} {
  func.func @_matmul_bias_kernel(%arg0: i32, %arg1: memref<512x288xf32, #tpu.memory_space<vmem>>, %arg2: memref<288x32xf32, #tpu.memory_space<vmem>>, %arg3: memref<1x32xf32, #tpu.memory_space<vmem>>, %arg4: memref<512x32xf32, #tpu.memory_space<vmem>>) attributes {dimension_semantics = [#tpu.dimension_semantics<parallel>], iteration_bounds = array<i64: 1>, scalar_prefetch = 0 : i64, scratch_operands = 0 : i64, tpu.core_type = #tpu.core_type<tc>, window_params = [{transform_indices = @transform_0, window_bounds = array<i64: 512, 288>}, {pipeline_mode = #tpu.pipeline_mode<synchronous>, transform_indices = @transform_1, window_bounds = array<i64: 288, 32>}, {pipeline_mode = #tpu.pipeline_mode<synchronous>, transform_indices = @transform_2, window_bounds = array<i64: 1, 32>}, {transform_indices = @transform_3, window_bounds = array<i64: 512, 32>}]} {
    %c0 = arith.constant 0 : index
    %c0_0 = arith.constant 0 : index
    %0 = vector.load %arg1[%c0, %c0_0] : memref<512x288xf32, #tpu.memory_space<vmem>>, vector<512x288xf32>
    %c0_1 = arith.constant 0 : index
    %c0_2 = arith.constant 0 : index
    %1 = vector.load %arg2[%c0_1, %c0_2] : memref<288x32xf32, #tpu.memory_space<vmem>>, vector<288x32xf32>
    %cst = arith.constant dense<0.000000e+00> : vector<512x32xf32>
    %2 = tpu.matmul %0, %1, %cst {dimension_numbers = #tpu.dot_dimension_numbers<[1], [0], [0], [1], [0, 0, 1, 1], [], []>} : vector<512x288xf32>, vector<288x32xf32>, vector<512x32xf32> -> vector<512x32xf32>
    %c0_3 = arith.constant 0 : index
    %c0_4 = arith.constant 0 : index
    %3 = vector.load %arg3[%c0_3, %c0_4] : memref<1x32xf32, #tpu.memory_space<vmem>>, vector<1x32xf32>
    %4 = vector.broadcast %3 : vector<1x32xf32> to vector<512x32xf32>
    %5 = arith.addf %2, %4 : vector<512x32xf32>
    %cst_5 = arith.constant 0.000000e+00 : f32
    %6 = vector.broadcast %cst_5 : f32 to vector<512x32xf32>
    %7 = arith.maximumf %5, %6 : vector<512x32xf32>
    %c0_6 = arith.constant 0 : index
    %c0_7 = arith.constant 0 : index
    %8 = vector.load %arg4[%c0_6, %c0_7] : memref<512x32xf32, #tpu.memory_space<vmem>>, vector<512x32xf32>
    tpu.vector_store %arg4[%c0_6, %c0_7], %7 {strides = array<i32>} : memref<512x32xf32, #tpu.memory_space<vmem>>, vector<512x32xf32>,
    return
  }
  func.func @transform_0(%arg0: i32) -> (i32, i32) {
    %c0_i32 = arith.constant 0 : i32
    %c0_i32_0 = arith.constant 0 : i32
    return %arg0, %c0_i32 : i32, i32
  }
  func.func @transform_1(%arg0: i32) -> (i32, i32) {
    %c0_i32 = arith.constant 0 : i32
    %c0_i32_0 = arith.constant 0 : i32
    %c0_i32_1 = arith.constant 0 : i32
    return %c0_i32, %c0_i32_0 : i32, i32
  }
  func.func @transform_2(%arg0: i32) -> (i32, i32) {
    %c0_i32 = arith.constant 0 : i32
    %c0_i32_0 = arith.constant 0 : i32
    %c0_i32_1 = arith.constant 0 : i32
    return %c0_i32, %c0_i32_0 : i32, i32
  }
  func.func @transform_3(%arg0: i32) -> (i32, i32) {
    %c0_i32 = arith.constant 0 : i32
    %c0_i32_0 = arith.constant 0 : i32
    return %arg0, %c0_i32 : i32, i32
  }
}

module attributes {stable_mosaic.version = 11 : i64} {
  func.func @_theta_reduce_kernel(%arg0: i32, %arg1: memref<512x288xf32, #tpu.memory_space<vmem>>, %arg2: memref<288x1xf32, #tpu.memory_space<vmem>>, %arg3: memref<1x1xf32, #tpu.memory_space<vmem>>, %arg4: memref<1x1xf32, #tpu.memory_space<vmem>>) attributes {dimension_semantics = [#tpu.dimension_semantics<arbitrary>], iteration_bounds = array<i64: 1>, scalar_prefetch = 0 : i64, scratch_operands = 0 : i64, tpu.core_type = #tpu.core_type<tc>, window_params = [{transform_indices = @transform_0, window_bounds = array<i64: 512, 288>}, {pipeline_mode = #tpu.pipeline_mode<synchronous>, transform_indices = @transform_1, window_bounds = array<i64: 288, 1>}, {pipeline_mode = #tpu.pipeline_mode<synchronous>, transform_indices = @transform_2, window_bounds = array<i64: 1, 1>}, {pipeline_mode = #tpu.pipeline_mode<synchronous>, transform_indices = @transform_3, window_bounds = array<i64: 1, 1>}]} {
    %c0_i32 = arith.constant 0 : i32
    %0 = arith.cmpi eq, %arg0, %c0_i32 : i32
    %1 = arith.extui %0 : i1 to i32
    %c0_i32_0 = arith.constant 0 : i32
    %2 = arith.cmpi ne, %1, %c0_i32_0 : i32
    scf.if %2 {
      %cst_16 = arith.constant 0.000000e+00 : f32
      %30 = vector.broadcast %cst_16 : f32 to vector<1x1xf32>
      %c0_17 = arith.constant 0 : index
      %c0_18 = arith.constant 0 : index
      %31 = vector.load %arg4[%c0_17, %c0_18] : memref<1x1xf32, #tpu.memory_space<vmem>>, vector<1x1xf32>
      tpu.vector_store %arg4[%c0_17, %c0_18], %30 {strides = array<i32>} : memref<1x1xf32, #tpu.memory_space<vmem>>, vector<1x1xf32>,
    } else {
    }
    %c0 = arith.constant 0 : index
    %c0_1 = arith.constant 0 : index
    %3 = vector.load %arg1[%c0, %c0_1] : memref<512x288xf32, #tpu.memory_space<vmem>>, vector<512x288xf32>
    %c0_2 = arith.constant 0 : index
    %c0_3 = arith.constant 0 : index
    %4 = vector.load %arg2[%c0_2, %c0_3] : memref<288x1xf32, #tpu.memory_space<vmem>>, vector<288x1xf32>
    %cst = arith.constant dense<0.000000e+00> : vector<512x1xf32>
    %5 = tpu.matmul %3, %4, %cst {dimension_numbers = #tpu.dot_dimension_numbers<[1], [0], [0], [1], [0, 0, 1, 1], [], []>} : vector<512x288xf32>, vector<288x1xf32>, vector<512x1xf32> -> vector<512x1xf32>
    %c0_4 = arith.constant 0 : index
    %c0_5 = arith.constant 0 : index
    %6 = vector.load %arg3[%c0_4, %c0_5] : memref<1x1xf32, #tpu.memory_space<vmem>>, vector<1x1xf32>
    %7 = vector.broadcast %6 : vector<1x1xf32> to vector<512x1xf32>
    %8 = arith.addf %5, %7 : vector<512x1xf32>
    %9 = arith.negf %8 : vector<512x1xf32>
    %10 = math.exp %9 : vector<512x1xf32>
    %cst_6 = arith.constant 1.000000e+00 : f32
    %11 = vector.broadcast %cst_6 : f32 to vector<512x1xf32>
    %12 = arith.addf %11, %10 : vector<512x1xf32>
    %13 = arith.divf %11, %12 : vector<512x1xf32>
    %c512_i32 = arith.constant 512 : i32
    %14 = arith.muli %arg0, %c512_i32 : i32
    %15 = tpu.iota {dimensions = array<i32: 0>} : vector<512x1xi32>
    %16 = vector.broadcast %14 : i32 to vector<512x1xi32>
    %17 = arith.addi %16, %15 : vector<512x1xi32>
    %c512_i32_7 = arith.constant 512 : i32
    %18 = vector.broadcast %c512_i32_7 : i32 to vector<512x1xi32>
    %19 = arith.cmpi slt, %17, %18 : vector<512x1xi32>
    %cst_8 = arith.constant 0.000000e+00 : f32
    %20 = vector.broadcast %cst_8 : f32 to vector<512x1xf32>
    %21 = arith.select %19, %13, %20 : vector<512x1xi1>, vector<512x1xf32>
    %c0_9 = arith.constant 0 : index
    %c0_10 = arith.constant 0 : index
    %22 = vector.load %arg4[%c0_9, %c0_10] : memref<1x1xf32, #tpu.memory_space<vmem>>, vector<1x1xf32>
    %cst_11 = arith.constant dense<0.000000e+00> : vector<1xf32>
    %23 = vector.multi_reduction <add>, %21, %cst_11 [0] : vector<512x1xf32> to vector<1xf32>
    %24 = vector.shape_cast %23 : vector<1xf32> to vector<1x1xf32>
    %25 = arith.addf %22, %24 : vector<1x1xf32>
    %c0_12 = arith.constant 0 : index
    %c0_13 = arith.constant 0 : index
    %26 = vector.load %arg4[%c0_12, %c0_13] : memref<1x1xf32, #tpu.memory_space<vmem>>, vector<1x1xf32>
    tpu.vector_store %arg4[%c0_12, %c0_13], %25 {strides = array<i32>} : memref<1x1xf32, #tpu.memory_space<vmem>>, vector<1x1xf32>,
    %c0_i32_14 = arith.constant 0 : i32
    %27 = arith.cmpi eq, %arg0, %c0_i32_14 : i32
    %28 = arith.extui %27 : i1 to i32
    %c0_i32_15 = arith.constant 0 : i32
    %29 = arith.cmpi ne, %28, %c0_i32_15 : i32
    scf.if %29 {
      %c0_16 = arith.constant 0 : index
      %c0_17 = arith.constant 0 : index
      %30 = vector.load %arg4[%c0_16, %c0_17] : memref<1x1xf32, #tpu.memory_space<vmem>>, vector<1x1xf32>
      %cst_18 = arith.constant 0.001953125 : f32
      %31 = vector.broadcast %cst_18 : f32 to vector<1x1xf32>
      %32 = arith.mulf %30, %31 : vector<1x1xf32>
      %c0_19 = arith.constant 0 : index
      %c0_20 = arith.constant 0 : index
      %33 = vector.load %arg4[%c0_19, %c0_20] : memref<1x1xf32, #tpu.memory_space<vmem>>, vector<1x1xf32>
      tpu.vector_store %arg4[%c0_19, %c0_20], %32 {strides = array<i32>} : memref<1x1xf32, #tpu.memory_space<vmem>>, vector<1x1xf32>,
    } else {
    }
    return
  }
  func.func @transform_0(%arg0: i32) -> (i32, i32) {
    %c0_i32 = arith.constant 0 : i32
    %c0_i32_0 = arith.constant 0 : i32
    return %arg0, %c0_i32 : i32, i32
  }
  func.func @transform_1(%arg0: i32) -> (i32, i32) {
    %c0_i32 = arith.constant 0 : i32
    %c0_i32_0 = arith.constant 0 : i32
    %c0_i32_1 = arith.constant 0 : i32
    return %c0_i32, %c0_i32_0 : i32, i32
  }
  func.func @transform_2(%arg0: i32) -> (i32, i32) {
    %c0_i32 = arith.constant 0 : i32
    %c0_i32_0 = arith.constant 0 : i32
    %c0_i32_1 = arith.constant 0 : i32
    return %c0_i32, %c0_i32_0 : i32, i32
  }
  func.func @transform_3(%arg0: i32) -> (i32, i32) {
    %c0_i32 = arith.constant 0 : i32
    %c0_i32_0 = arith.constant 0 : i32
    %c0_i32_1 = arith.constant 0 : i32
    return %c0_i32, %c0_i32_0 : i32, i32
  }
}

module attributes {stable_mosaic.version = 11 : i64} {
  func.func @_ggc_main_kernel(%arg0: i32, %arg1: memref<1x1xf32, #tpu.memory_space<smem>>, %arg2: memref<128x36xf32, #tpu.memory_space<vmem>>, %arg3: memref<128x4xf32, #tpu.memory_space<vmem>>, %arg4: memref<36x16xf32, #tpu.memory_space<vmem>>, %arg5: memref<4x16xf32, #tpu.memory_space<vmem>>, %arg6: memref<1x16xf32, #tpu.memory_space<vmem>>, %arg7: memref<1x16xf32, #tpu.memory_space<vmem>>, %arg8: memref<128x8xf32, #tpu.memory_space<vmem>>) attributes {dimension_semantics = [#tpu.dimension_semantics<parallel>], iteration_bounds = array<i64: 1>, scalar_prefetch = 0 : i64, scratch_operands = 0 : i64, tpu.core_type = #tpu.core_type<tc>, window_params = [{transform_indices = @transform_0, window_bounds = array<i64: 1, 1>}, {transform_indices = @transform_1, window_bounds = array<i64: 128, 36>}, {transform_indices = @transform_2, window_bounds = array<i64: 128, 4>}, {pipeline_mode = #tpu.pipeline_mode<synchronous>, transform_indices = @transform_3, window_bounds = array<i64: 36, 16>}, {pipeline_mode = #tpu.pipeline_mode<synchronous>, transform_indices = @transform_4, window_bounds = array<i64: 4, 16>}, {pipeline_mode = #tpu.pipeline_mode<synchronous>, transform_indices = @transform_5, window_bounds = array<i64: 1, 16>}, {pipeline_mode = #tpu.pipeline_mode<synchronous>, transform_indices = @transform_6, window_bounds = array<i64: 1, 16>}, {transform_indices = @transform_7, window_bounds = array<i64: 128, 8>}]} {
    %c0 = arith.constant 0 : index
    %c0_0 = arith.constant 0 : index
    %0 = memref.load %arg1[%c0, %c0_0] : memref<1x1xf32, #tpu.memory_space<smem>>
    %1 = math.absf %0 : f32
    %cst = arith.constant 9.99999993E-9 : f32
    %2 = arith.cmpf oge, %1, %cst : f32
    %cst_1 = arith.constant 0.000000e+00 : f32
    %3 = arith.select %2, %0, %cst_1 : f32
    %c0_2 = arith.constant 0 : index
    %c0_3 = arith.constant 0 : index
    %4 = vector.load %arg2[%c0_2, %c0_3] : memref<128x36xf32, #tpu.memory_space<vmem>>, vector<128x36xf32>
    %c0_4 = arith.constant 0 : index
    %c0_5 = arith.constant 0 : index
    %5 = vector.load %arg4[%c0_4, %c0_5] : memref<36x16xf32, #tpu.memory_space<vmem>>, vector<36x16xf32>
    %cst_6 = arith.constant dense<0.000000e+00> : vector<128x16xf32>
    %6 = tpu.matmul %4, %5, %cst_6 {dimension_numbers = #tpu.dot_dimension_numbers<[1], [0], [0], [1], [0, 0, 1, 1], [], []>} : vector<128x36xf32>, vector<36x16xf32>, vector<128x16xf32> -> vector<128x16xf32>
    %c0_7 = arith.constant 0 : index
    %c0_8 = arith.constant 0 : index
    %7 = vector.load %arg6[%c0_7, %c0_8] : memref<1x16xf32, #tpu.memory_space<vmem>>, vector<1x16xf32>
    %8 = vector.broadcast %7 : vector<1x16xf32> to vector<128x16xf32>
    %9 = arith.addf %6, %8 : vector<128x16xf32>
    %c0_9 = arith.constant 0 : index
    %c0_10 = arith.constant 0 : index
    %10 = vector.load %arg3[%c0_9, %c0_10] : memref<128x4xf32, #tpu.memory_space<vmem>>, vector<128x4xf32>
    %c0_11 = arith.constant 0 : index
    %c0_12 = arith.constant 0 : index
    %11 = vector.load %arg5[%c0_11, %c0_12] : memref<4x16xf32, #tpu.memory_space<vmem>>, vector<4x16xf32>
    %cst_13 = arith.constant dense<0.000000e+00> : vector<128x16xf32>
    %12 = tpu.matmul %10, %11, %cst_13 {dimension_numbers = #tpu.dot_dimension_numbers<[1], [0], [0], [1], [0, 0, 1, 1], [], []>} : vector<128x4xf32>, vector<4x16xf32>, vector<128x16xf32> -> vector<128x16xf32>
    %c0_14 = arith.constant 0 : index
    %c0_15 = arith.constant 0 : index
    %13 = vector.load %arg7[%c0_14, %c0_15] : memref<1x16xf32, #tpu.memory_space<vmem>>, vector<1x16xf32>
    %14 = vector.broadcast %13 : vector<1x16xf32> to vector<128x16xf32>
    %15 = arith.addf %12, %14 : vector<128x16xf32>
    %16 = vector.broadcast %3 : f32 to vector<128x16xf32>
    %17 = arith.mulf %16, %15 : vector<128x16xf32>
    %18 = arith.subf %9, %17 : vector<128x16xf32>
    %19 = vector.extract_strided_slice %18 {offsets = [0, 0], sizes = [128, 8], strides = [1, 1]} : vector<128x16xf32> to vector<128x8xf32>
    %20 = vector.extract_strided_slice %18 {offsets = [0, 8], sizes = [128, 8], strides = [1, 1]} : vector<128x16xf32> to vector<128x8xf32>
    %21 = arith.negf %20 : vector<128x8xf32>
    %22 = math.exp %21 : vector<128x8xf32>
    %cst_16 = arith.constant 1.000000e+00 : f32
    %23 = vector.broadcast %cst_16 : f32 to vector<128x8xf32>
    %24 = arith.addf %23, %22 : vector<128x8xf32>
    %25 = arith.divf %23, %24 : vector<128x8xf32>
    %cst_17 = arith.constant 0.000000e+00 : f32
    %26 = vector.broadcast %cst_17 : f32 to vector<128x8xf32>
    %27 = arith.cmpf oge, %19, %26 : vector<128x8xf32>
    %cst_18 = arith.constant 2.000000e-01 : f32
    %28 = vector.broadcast %cst_18 : f32 to vector<128x8xf32>
    %29 = arith.mulf %28, %19 : vector<128x8xf32>
    %30 = arith.select %27, %19, %29 : vector<128x8xi1>, vector<128x8xf32>
    %31 = arith.mulf %30, %25 : vector<128x8xf32>
    %c0_19 = arith.constant 0 : index
    %c0_20 = arith.constant 0 : index
    %32 = vector.load %arg8[%c0_19, %c0_20] : memref<128x8xf32, #tpu.memory_space<vmem>>, vector<128x8xf32>
    tpu.vector_store %arg8[%c0_19, %c0_20], %31 {strides = array<i32>} : memref<128x8xf32, #tpu.memory_space<vmem>>, vector<128x8xf32>,
    return
  }
  func.func @transform_0(%arg0: i32) -> (i32, i32) {
    %c0_i32 = arith.constant 0 : i32
    %c0_i32_0 = arith.constant 0 : i32
    %c0_i32_1 = arith.constant 0 : i32
    return %c0_i32, %c0_i32_0 : i32, i32
  }
  func.func @transform_1(%arg0: i32) -> (i32, i32) {
    %c0_i32 = arith.constant 0 : i32
    %c0_i32_0 = arith.constant 0 : i32
    return %arg0, %c0_i32 : i32, i32
  }
  func.func @transform_2(%arg0: i32) -> (i32, i32) {
    %c0_i32 = arith.constant 0 : i32
    %c0_i32_0 = arith.constant 0 : i32
    return %arg0, %c0_i32 : i32, i32
  }
  func.func @transform_3(%arg0: i32) -> (i32, i32) {
    %c0_i32 = arith.constant 0 : i32
    %c0_i32_0 = arith.constant 0 : i32
    %c0_i32_1 = arith.constant 0 : i32
    return %c0_i32, %c0_i32_0 : i32, i32
  }
  func.func @transform_4(%arg0: i32) -> (i32, i32) {
    %c0_i32 = arith.constant 0 : i32
    %c0_i32_0 = arith.constant 0 : i32
    %c0_i32_1 = arith.constant 0 : i32
    return %c0_i32, %c0_i32_0 : i32, i32
  }
  func.func @transform_5(%arg0: i32) -> (i32, i32) {
    %c0_i32 = arith.constant 0 : i32
    %c0_i32_0 = arith.constant 0 : i32
    %c0_i32_1 = arith.constant 0 : i32
    return %c0_i32, %c0_i32_0 : i32, i32
  }
  func.func @transform_6(%arg0: i32) -> (i32, i32) {
    %c0_i32 = arith.constant 0 : i32
    %c0_i32_0 = arith.constant 0 : i32
    %c0_i32_1 = arith.constant 0 : i32
    return %c0_i32, %c0_i32_0 : i32, i32
  }
  func.func @transform_7(%arg0: i32) -> (i32, i32) {
    %c0_i32 = arith.constant 0 : i32
    %c0_i32_0 = arith.constant 0 : i32
    return %arg0, %c0_i32 : i32, i32
  }
}

</mosaic_0001>

<llo_original>
// kernel: ggc_forward.4
$region0: #{ggc_forward.4}
  #allocation0 [shape = 'u32[]', space=smem, size = 0x4, offset = 0x4, fixed_abs, tag = 'smem constant byte address 0x4 - core index']
  #allocation1 [shape = 'u32[72,128]{1,0:T(1,128)}', space=vmem, size = 0x9000, scoped, tag = 'internal scratch']
  %s0 = inlined_call_operand.vmem [shape: f32[512,36], index: 0, kind: input, shape index: {}]
  %s1 = inlined_call_operand.vmem [shape: f32[36,32], index: 1, kind: input, shape index: {}]
  %s2 = inlined_call_operand.vmem [shape: f32[1,32], index: 2, kind: input, shape index: {}]
  %s3 = inlined_call_operand.vmem [shape: f32[512,32], index: 3, kind: output, shape index: {}]
  %s4 = sld [smem:[#allocation0]]
  $region22: #{ggc_forward.4} parent=0
    _
  %s6 = ssub.s32 1, %s4
  %s7 = scalar_select 0, %s6, %s4
  // Predicated region
  $region2: #{ggc_forward.4} parent=0 // pred_check
    _
  $region3: #{ggc_forward.4} parent=0 // pred_check_branch
    %9 = sbr.rel (0) target = $region5
  $region4: #{ggc_forward.4} parent=0 // pred_region
    _
  $region5: #{ggc_forward.4} parent=0 // pred_fallthru
    _
  // Predicated region
  $region6: #{ggc_forward.4} parent=0 // pred_check
    _
  $region7: #{ggc_forward.4} parent=0 // pred_check_branch
    %11 = sbr.rel (0) target = $region9
  $region8: #{ggc_forward.4} parent=0 // pred_region
    _
  $region9: #{ggc_forward.4} parent=0 // pred_fallthru
    _
  // Predicated region
  $region10: #{ggc_forward.4} parent=0 // pred_check
    _
  $region11: #{ggc_forward.4} parent=0 // pred_check_branch
    %13 = sbr.rel (0) target = $region13
  $region12: #{ggc_forward.4} parent=0 // pred_region
    _
  $region13: #{ggc_forward.4} parent=0 // pred_fallthru
    _
  %v14 = vld [vmem:[%s0] sm:$0xff]
  %v15 = vld [vmem:[%s0 + $0x8] sm:$0xff]
  %v16 = vld [vmem:[%s0 + $0x10] sm:$0xff]
  %v17 = vld [vmem:[%s0 + $0x18] sm:$0xff]
  %v18 = vld [vmem:[%s0 + $0x20] sm:$0xff]
  %v19 = vld [vmem:[%s0 + $0x28] sm:$0xff]
  %v20 = vld [vmem:[%s0 + $0x30] sm:$0xff]
  %v21 = vld [vmem:[%s0 + $0x38] sm:$0xff]
  %v22 = vld [vmem:[%s0 + $0x40] sm:$0xff]
  %v23 = vld [vmem:[%s0 + $0x48] sm:$0xff]
  %v24 = vld [vmem:[%s0 + $0x50] sm:$0xff]
  %v25 = vld [vmem:[%s0 + $0x58] sm:$0xff]
  %v26 = vld [vmem:[%s0 + $0x60] sm:$0xff]
  %v27 = vld [vmem:[%s0 + $0x68] sm:$0xff]
  %v28 = vld [vmem:[%s0 + $0x70] sm:$0xff]
  %v29 = vld [vmem:[%s0 + $0x78] sm:$0xff]
  %v30 = vld [vmem:[%s0 + $0x80] sm:$0xff]
  %v31 = vld [vmem:[%s0 + $0x88] sm:$0xff]
  %v32 = vld [vmem:[%s0 + $0x90] sm:$0xff]
  %v33 = vld [vmem:[%s0 + $0x98] sm:$0xff]
  %v34 = vld [vmem:[%s0 + $0xa0] sm:$0xff]
  %v35 = vld [vmem:[%s0 + $0xa8] sm:$0xff]
  %v36 = vld [vmem:[%s0 + $0xb0] sm:$0xff]
  %v37 = vld [vmem:[%s0 + $0xb8] sm:$0xff]
  %v38 = vld [vmem:[%s0 + $0xc0] sm:$0xff]
  %v39 = vld [vmem:[%s0 + $0xc8] sm:$0xff]
  %v40 = vld [vmem:[%s0 + $0xd0] sm:$0xff]
  %v41 = vld [vmem:[%s0 + $0xd8] sm:$0xff]
  %v42 = vld [vmem:[%s0 + $0xe0] sm:$0xff]
  %v43 = vld [vmem:[%s0 + $0xe8] sm:$0xff]
  %v44 = vld [vmem:[%s0 + $0xf0] sm:$0xff]
  %v45 = vld [vmem:[%s0 + $0xf8] sm:$0xff]
  %v46 = vld [vmem:[%s0 + $0x100] sm:$0xff]
  %v47 = vld [vmem:[%s0 + $0x108] sm:$0xff]
  %v48 = vld [vmem:[%s0 + $0x110] sm:$0xff]
  %v49 = vld [vmem:[%s0 + $0x118] sm:$0xff]
  %v50 = vld [vmem:[%s0 + $0x120] sm:$0xff]
  %v51 = vld [vmem:[%s0 + $0x128] sm:$0xff]
  %v52 = vld [vmem:[%s0 + $0x130] sm:$0xff]
  %v53 = vld [vmem:[%s0 + $0x138] sm:$0xff]
  %v54 = vld [vmem:[%s0 + $0x140] sm:$0xff]
  %v55 = vld [vmem:[%s0 + $0x148] sm:$0xff]
  %v56 = vld [vmem:[%s0 + $0x150] sm:$0xff]
  %v57 = vld [vmem:[%s0 + $0x158] sm:$0xff]
  %v58 = vld [vmem:[%s0 + $0x160] sm:$0xff]
  %v59 = vld [vmem:[%s0 + $0x168] sm:$0xff]
  %v60 = vld [vmem:[%s0 + $0x170] sm:$0xff]
  %v61 = vld [vmem:[%s0 + $0x178] sm:$0xff]
  %v62 = vld [vmem:[%s0 + $0x180] sm:$0xff]
  %v63 = vld [vmem:[%s0 + $0x188] sm:$0xff]
  %v64 = vld [vmem:[%s0 + $0x190] sm:$0xff]
  %v65 = vld [vmem:[%s0 + $0x198] sm:$0xff]
  %v66 = vld [vmem:[%s0 + $0x1a0] sm:$0xff]
  %v67 = vld [vmem:[%s0 + $0x1a8] sm:$0xff]
  %v68 = vld [vmem:[%s0 + $0x1b0] sm:$0xff]
  %v69 = vld [vmem:[%s0 + $0x1b8] sm:$0xff]
  %v70 = vld [vmem:[%s0 + $0x1c0] sm:$0xff]
  %v71 = vld [vmem:[%s0 + $0x1c8] sm:$0xff]
  %v72 = vld [vmem:[%s0 + $0x1d0] sm:$0xff]
  %v73 = vld [vmem:[%s0 + $0x1d8] sm:$0xff]
  %v74 = vld [vmem:[%s0 + $0x1e0] sm:$0xff]
  %v75 = vld [vmem:[%s0 + $0x1e8] sm:$0xff]
  %v76 = vld [vmem:[%s0 + $0x1f0] sm:$0xff]
  %v77 = vld [vmem:[%s0 + $0x1f8] sm:$0xff]
  %v78 = vld [vmem:[%s1] sm:$0xff]
  %v79 = vld [vmem:[%s1 + $0x8] sm:$0xff]
  %v80 = vld [vmem:[%s1 + $0x10] sm:$0xff]
  %v81 = vld [vmem:[%s1 + $0x18] sm:$0xff]
  %v82 = vld [vmem:[%s1 + $0x20] sm:$0xf]
  %v83 = vld [vmem:[%s2] sm:$0x1]
  %v85 = vperm.slane %v83, 0
  %vm87 = vcmask 293888
  %v89 = vsel %vm87, %v14, 0
  %v92 = vsel %vm87, %v15, 0
  %v95 = vsel %vm87, %v16, 0
  %v98 = vsel %vm87, %v17, 0
  %v101 = vsel %vm87, %v18, 0
  %v104 = vsel %vm87, %v19, 0
  %v107 = vsel %vm87, %v20, 0
  %v110 = vsel %vm87, %v21, 0
  %v113 = vsel %vm87, %v22, 0
  %v116 = vsel %vm87, %v23, 0
  %v119 = vsel %vm87, %v24, 0
  %v122 = vsel %vm87, %v25, 0
  %v125 = vsel %vm87, %v26, 0
  %v128 = vsel %vm87, %v27, 0
  %v131 = vsel %vm87, %v28, 0
  %v134 = vsel %vm87, %v29, 0
  %v137 = vsel %vm87, %v30, 0
  %v140 = vsel %vm87, %v31, 0
  %v143 = vsel %vm87, %v32, 0
  %v146 = vsel %vm87, %v33, 0
  %v149 = vsel %vm87, %v34, 0
  %v152 = vsel %vm87, %v35, 0
  %v155 = vsel %vm87, %v36, 0
  %v158 = vsel %vm87, %v37, 0
  %v161 = vsel %vm87, %v38, 0
  %v164 = vsel %vm87, %v39, 0
  %v167 = vsel %vm87, %v40, 0
  %v170 = vsel %vm87, %v41, 0
  %v173 = vsel %vm87, %v42, 0
  %v176 = vsel %vm87, %v43, 0
  %v179 = vsel %vm87, %v44, 0
  %v182 = vsel %vm87, %v45, 0
  %v185 = vsel %vm87, %v46, 0
  %v188 = vsel %vm87, %v47, 0
  %v191 = vsel %vm87, %v48, 0
  %v194 = vsel %vm87, %v49, 0
  %v197 = vsel %vm87, %v50, 0
  %v200 = vsel %vm87, %v51, 0
  %v203 = vsel %vm87, %v52, 0
  %v206 = vsel %vm87, %v53, 0
  %v209 = vsel %vm87, %v54, 0
  %v212 = vsel %vm87, %v55, 0
  %v215 = vsel %vm87, %v56, 0
  %v218 = vsel %vm87, %v57, 0
  %v221 = vsel %vm87, %v58, 0
  %v224 = vsel %vm87, %v59, 0
  %v227 = vsel %vm87, %v60, 0
  %v230 = vsel %vm87, %v61, 0
  %v233 = vsel %vm87, %v62, 0
  %v236 = vsel %vm87, %v63, 0
  %v239 = vsel %vm87, %v64, 0
  %v242 = vsel %vm87, %v65, 0
  %v245 = vsel %vm87, %v66, 0
  %v248 = vsel %vm87, %v67, 0
  %v251 = vsel %vm87, %v68, 0
  %v254 = vsel %vm87, %v69, 0
  %v257 = vsel %vm87, %v70, 0
  %v260 = vsel %vm87, %v71, 0
  %v263 = vsel %vm87, %v72, 0
  %v266 = vsel %vm87, %v73, 0
  %v269 = vsel %vm87, %v74, 0
  %v272 = vsel %vm87, %v75, 0
  %v275 = vsel %vm87, %v76, 0
  %v278 = vsel %vm87, %v77, 0
  %vm280 = vcmask 1043456
  %v282 = vsel %vm280, %v82, 0
  %284 = vmatpush.msra.mxu0 0.0
  %285 = vmatpush.msra.mxu0 0.0
  %286 = vmatpush.msra.mxu0 0.0
  %287 = vmatpush.msra.mxu0 0.0
  %288 = vmatpush.msra.mxu0 0.0
  %289 = vmatpush.msra.mxu0 0.0
  %290 = vmatpush.msra.mxu0 0.0
  %291 = vmatpush.msra.mxu0 0.0
  %292 = vmatpush.msra.mxu0 0.0
  %293 = vmatpush.msra.mxu0 0.0
  %294 = vmatpush.msra.mxu0 0.0
  %295 = vmatpush.msra.mxu0 %v282
  %296 = vmatpush.msra.mxu0 %v81
  %297 = vmatpush.msra.mxu0 %v80
  %298 = vmatpush.msra.mxu0 %v79
  %299 = vmatpush.msra.mxu0 %v78
  %300 = vmatmul.f32.gmra.mxu0 %v89
  %v301 = vpop.f32.mrf.mxu0
  %v302 = vadd.f32 %v85, %v301
  %303 = vmatmul.f32.gmra.mxu0 %v92
  %v304 = vpop.f32.mrf.mxu0
  %v305 = vadd.f32 %v85, %v304
  %306 = vmatmul.f32.gmra.mxu0 %v95
  %v307 = vpop.f32.mrf.mxu0
  %v308 = vadd.f32 %v85, %v307
  %309 = vmatmul.f32.gmra.mxu0 %v98
  %v310 = vpop.f32.mrf.mxu0
  %v311 = vadd.f32 %v85, %v310
  %312 = vmatmul.f32.gmra.mxu0 %v101
  %v313 = vpop.f32.mrf.mxu0
  %v314 = vadd.f32 %v85, %v313
  %315 = vmatmul.f32.gmra.mxu0 %v104
  %v316 = vpop.f32.mrf.mxu0
  %v317 = vadd.f32 %v85, %v316
  %318 = vmatmul.f32.gmra.mxu0 %v107
  %v319 = vpop.f32.mrf.mxu0
  %v320 = vadd.f32 %v85, %v319
  %321 = vmatmul.f32.gmra.mxu0 %v110
  %v322 = vpop.f32.mrf.mxu0
  %v323 = vadd.f32 %v85, %v322
  %324 = vmatmul.f32.gmra.mxu0 %v113
  %v325 = vpop.f32.mrf.mxu0
  %v326 = vadd.f32 %v85, %v325
  %327 = vmatmul.f32.gmra.mxu0 %v116
  %v328 = vpop.f32.mrf.mxu0
  %v329 = vadd.f32 %v85, %v328
  %330 = vmatmul.f32.gmra.mxu0 %v119
  %v331 = vpop.f32.mrf.mxu0
  %v332 = vadd.f32 %v85, %v331
  %333 = vmatmul.f32.gmra.mxu0 %v122
  %v334 = vpop.f32.mrf.mxu0
  %v335 = vadd.f32 %v85, %v334
  %336 = vmatmul.f32.gmra.mxu0 %v125
  %v337 = vpop.f32.mrf.mxu0
  %v338 = vadd.f32 %v85, %v337
  %339 = vmatmul.f32.gmra.mxu0 %v128
  %v340 = vpop.f32.mrf.mxu0
  %v341 = vadd.f32 %v85, %v340
  %342 = vmatmul.f32.gmra.mxu0 %v131
  %v343 = vpop.f32.mrf.mxu0
  %v344 = vadd.f32 %v85, %v343
  %345 = vmatmul.f32.gmra.mxu0 %v134
  %v346 = vpop.f32.mrf.mxu0
  %v347 = vadd.f32 %v85, %v346
  %348 = vmatmul.f32.gmra.mxu0 %v137
  %v349 = vpop.f32.mrf.mxu0
  %v350 = vadd.f32 %v85, %v349
  %351 = vmatmul.f32.gmra.mxu0 %v140
  %v352 = vpop.f32.mrf.mxu0
  %v353 = vadd.f32 %v85, %v352
  %354 = vmatmul.f32.gmra.mxu0 %v143
  %v355 = vpop.f32.mrf.mxu0
  %v356 = vadd.f32 %v85, %v355
  %357 = vmatmul.f32.gmra.mxu0 %v146
  %v358 = vpop.f32.mrf.mxu0
  %v359 = vadd.f32 %v85, %v358
  %360 = vmatmul.f32.gmra.mxu0 %v149
  %v361 = vpop.f32.mrf.mxu0
  %v362 = vadd.f32 %v85, %v361
  %363 = vmatmul.f32.gmra.mxu0 %v152
  %v364 = vpop.f32.mrf.mxu0
  %v365 = vadd.f32 %v85, %v364
  %366 = vmatmul.f32.gmra.mxu0 %v155
  %v367 = vpop.f32.mrf.mxu0
  %v368 = vadd.f32 %v85, %v367
  %369 = vmatmul.f32.gmra.mxu0 %v158
  %v370 = vpop.f32.mrf.mxu0
  %v371 = vadd.f32 %v85, %v370
  %372 = vmatmul.f32.gmra.mxu0 %v161
  %v373 = vpop.f32.mrf.mxu0
  %v374 = vadd.f32 %v85, %v373
  %375 = vmatmul.f32.gmra.mxu0 %v164
  %v376 = vpop.f32.mrf.mxu0
  %v377 = vadd.f32 %v85, %v376
  %378 = vmatmul.f32.gmra.mxu0 %v167
  %v379 = vpop.f32.mrf.mxu0
  %v380 = vadd.f32 %v85, %v379
  %381 = vmatmul.f32.gmra.mxu0 %v170
  %v382 = vpop.f32.mrf.mxu0
  %v383 = vadd.f32 %v85, %v382
  %384 = vmatmul.f32.gmra.mxu0 %v173
  %v385 = vpop.f32.mrf.mxu0
  %v386 = vadd.f32 %v85, %v385
  %387 = vmatmul.f32.gmra.mxu0 %v176
  %v388 = vpop.f32.mrf.mxu0
  %v389 = vadd.f32 %v85, %v388
  %390 = vmatmul.f32.gmra.mxu0 %v179
  %v391 = vpop.f32.mrf.mxu0
  %v392 = vadd.f32 %v85, %v391
  %393 = vmatmul.f32.gmra.mxu0 %v182
  %v394 = vpop.f32.mrf.mxu0
  %v395 = vadd.f32 %v85, %v394
  %396 = vmatmul.f32.gmra.mxu0 %v185
  %v397 = vpop.f32.mrf.mxu0
  %v398 = vadd.f32 %v85, %v397
  %399 = vmatmul.f32.gmra.mxu0 %v188
  %v400 = vpop.f32.mrf.mxu0
  %v401 = vadd.f32 %v85, %v400
  %402 = vmatmul.f32.gmra.mxu0 %v191
  %v403 = vpop.f32.mrf.mxu0
  %v404 = vadd.f32 %v85, %v403
  %405 = vmatmul.f32.gmra.mxu0 %v194
  %v406 = vpop.f32.mrf.mxu0
  %v407 = vadd.f32 %v85, %v406
  %408 = vmatmul.f32.gmra.mxu0 %v197
  %v409 = vpop.f32.mrf.mxu0
  %v410 = vadd.f32 %v85, %v409
  %411 = vmatmul.f32.gmra.mxu0 %v200
  %v412 = vpop.f32.mrf.mxu0
  %v413 = vadd.f32 %v85, %v412
  %414 = vmatmul.f32.gmra.mxu0 %v203
  %v415 = vpop.f32.mrf.mxu0
  %v416 = vadd.f32 %v85, %v415
  %417 = vmatmul.f32.gmra.mxu0 %v206
  %v418 = vpop.f32.mrf.mxu0
  %v419 = vadd.f32 %v85, %v418
  %420 = vmatmul.f32.gmra.mxu0 %v209
  %v421 = vpop.f32.mrf.mxu0
  %v422 = vadd.f32 %v85, %v421
  %423 = vmatmul.f32.gmra.mxu0 %v212
  %v424 = vpop.f32.mrf.mxu0
  %v425 = vadd.f32 %v85, %v424
  %426 = vmatmul.f32.gmra.mxu0 %v215
  %v427 = vpop.f32.mrf.mxu0
  %v428 = vadd.f32 %v85, %v427
  %429 = vmatmul.f32.gmra.mxu0 %v218
  %v430 = vpop.f32.mrf.mxu0
  %v431 = vadd.f32 %v85, %v430
  %432 = vmatmul.f32.gmra.mxu0 %v221
  %v433 = vpop.f32.mrf.mxu0
  %v434 = vadd.f32 %v85, %v433
  %435 = vmatmul.f32.gmra.mxu0 %v224
  %v436 = vpop.f32.mrf.mxu0
  %v437 = vadd.f32 %v85, %v436
  %438 = vmatmul.f32.gmra.mxu0 %v227
  %v439 = vpop.f32.mrf.mxu0
  %v440 = vadd.f32 %v85, %v439
  %441 = vmatmul.f32.gmra.mxu0 %v230
  %v442 = vpop.f32.mrf.mxu0
  %v443 = vadd.f32 %v85, %v442
  %444 = vmatmul.f32.gmra.mxu0 %v233
  %v445 = vpop.f32.mrf.mxu0
  %v446 = vadd.f32 %v85, %v445
  %447 = vmatmul.f32.gmra.mxu0 %v236
  %v448 = vpop.f32.mrf.mxu0
  %v449 = vadd.f32 %v85, %v448
  %450 = vmatmul.f32.gmra.mxu0 %v239
  %v451 = vpop.f32.mrf.mxu0
  %v452 = vadd.f32 %v85, %v451
  %453 = vmatmul.f32.gmra.mxu0 %v242
  %v454 = vpop.f32.mrf.mxu0
  %v455 = vadd.f32 %v85, %v454
  %456 = vmatmul.f32.gmra.mxu0 %v245
  %v457 = vpop.f32.mrf.mxu0
  %v458 = vadd.f32 %v85, %v457
  %459 = vmatmul.f32.gmra.mxu0 %v248
  %v460 = vpop.f32.mrf.mxu0
  %v461 = vadd.f32 %v85, %v460
  %462 = vmatmul.f32.gmra.mxu0 %v251
  %v463 = vpop.f32.mrf.mxu0
  %v464 = vadd.f32 %v85, %v463
  %465 = vmatmul.f32.gmra.mxu0 %v254
  %v466 = vpop.f32.mrf.mxu0
  %v467 = vadd.f32 %v85, %v466
  %468 = vmatmul.f32.gmra.mxu0 %v257
  %v469 = vpop.f32.mrf.mxu0
  %v470 = vadd.f32 %v85, %v469
  %471 = vmatmul.f32.gmra.mxu0 %v260
  %v472 = vpop.f32.mrf.mxu0
  %v473 = vadd.f32 %v85, %v472
  %474 = vmatmul.f32.gmra.mxu0 %v263
  %v475 = vpop.f32.mrf.mxu0
  %v476 = vadd.f32 %v85, %v475
  %477 = vmatmul.f32.gmra.mxu0 %v266
  %v478 = vpop.f32.mrf.mxu0
  %v479 = vadd.f32 %v85, %v478
  %480 = vmatmul.f32.gmra.mxu0 %v269
  %v481 = vpop.f32.mrf.mxu0
  %v482 = vadd.f32 %v85, %v481
  %483 = vmatmul.f32.gmra.mxu0 %v272
  %v484 = vpop.f32.mrf.mxu0
  %v485 = vadd.f32 %v85, %v484
  %486 = vmatmul.f32.gmra.mxu0 %v275
  %v487 = vpop.f32.mrf.mxu0
  %v488 = vadd.f32 %v85, %v487
  %489 = vmatmul.f32.gmra.mxu0 %v278
  %v490 = vpop.f32.mrf.mxu0
  %v491 = vadd.f32 %v85, %v490
  %492 = vdwg.mxu0
  %v493 = vmax.f32 %v302, 0.0
  %v494 = vmax.f32 %v305, 0.0
  %v495 = vmax.f32 %v308, 0.0
  %v496 = vmax.f32 %v311, 0.0
  %v497 = vmax.f32 %v314, 0.0
  %v498 = vmax.f32 %v317, 0.0
  %v499 = vmax.f32 %v320, 0.0
  %v500 = vmax.f32 %v323, 0.0
  %v501 = vmax.f32 %v326, 0.0
  %v502 = vmax.f32 %v329, 0.0
  %v503 = vmax.f32 %v332, 0.0
  %v504 = vmax.f32 %v335, 0.0
  %v505 = vmax.f32 %v338, 0.0
  %v506 = vmax.f32 %v341, 0.0
  %v507 = vmax.f32 %v344, 0.0
  %v508 = vmax.f32 %v347, 0.0
  %v509 = vmax.f32 %v350, 0.0
  %v510 = vmax.f32 %v353, 0.0
  %v511 = vmax.f32 %v356, 0.0
  %v512 = vmax.f32 %v359, 0.0
  %v513 = vmax.f32 %v362, 0.0
  %v514 = vmax.f32 %v365, 0.0
  %v515 = vmax.f32 %v368, 0.0
  %v516 = vmax.f32 %v371, 0.0
  %v517 = vmax.f32 %v374, 0.0
  %v518 = vmax.f32 %v377, 0.0
  %v519 = vmax.f32 %v380, 0.0
  %v520 = vmax.f32 %v383, 0.0
  %v521 = vmax.f32 %v386, 0.0
  %v522 = vmax.f32 %v389, 0.0
  %v523 = vmax.f32 %v392, 0.0
  %v524 = vmax.f32 %v395, 0.0
  %v525 = vmax.f32 %v398, 0.0
  %v526 = vmax.f32 %v401, 0.0
  %v527 = vmax.f32 %v404, 0.0
  %v528 = vmax.f32 %v407, 0.0
  %v529 = vmax.f32 %v410, 0.0
  %v530 = vmax.f32 %v413, 0.0
  %v531 = vmax.f32 %v416, 0.0
  %v532 = vmax.f32 %v419, 0.0
  %v533 = vmax.f32 %v422, 0.0
  %v534 = vmax.f32 %v425, 0.0
  %v535 = vmax.f32 %v428, 0.0
  %v536 = vmax.f32 %v431, 0.0
  %v537 = vmax.f32 %v434, 0.0
  %v538 = vmax.f32 %v437, 0.0
  %v539 = vmax.f32 %v440, 0.0
  %v540 = vmax.f32 %v443, 0.0
  %v541 = vmax.f32 %v446, 0.0
  %v542 = vmax.f32 %v449, 0.0
  %v543 = vmax.f32 %v452, 0.0
  %v544 = vmax.f32 %v455, 0.0
  %v545 = vmax.f32 %v458, 0.0
  %v546 = vmax.f32 %v461, 0.0
  %v547 = vmax.f32 %v464, 0.0
  %v548 = vmax.f32 %v467, 0.0
  %v549 = vmax.f32 %v470, 0.0
  %v550 = vmax.f32 %v473, 0.0
  %v551 = vmax.f32 %v476, 0.0
  %v552 = vmax.f32 %v479, 0.0
  %v553 = vmax.f32 %v482, 0.0
  %v554 = vmax.f32 %v485, 0.0
  %v555 = vmax.f32 %v488, 0.0
  %v556 = vmax.f32 %v491, 0.0
  %vm557 = vcmask 261120
  %558 = vst.msk [vmem:[%s3] sm:$0xff] %vm557, %v493
  %559 = vst.msk [vmem:[%s3 + $0x8] sm:$0xff] %vm557, %v494
  %560 = vst.msk [vmem:[%s3 + $0x10] sm:$0xff] %vm557, %v495
  %561 = vst.msk [vmem:[%s3 + $0x18] sm:$0xff] %vm557, %v496
  %562 = vst.msk [vmem:[%s3 + $0x20] sm:$0xff] %vm557, %v497
  %563 = vst.msk [vmem:[%s3 + $0x28] sm:$0xff] %vm557, %v498
  %564 = vst.msk [vmem:[%s3 + $0x30] sm:$0xff] %vm557, %v499
  %565 = vst.msk [vmem:[%s3 + $0x38] sm:$0xff] %vm557, %v500
  %566 = vst.msk [vmem:[%s3 + $0x40] sm:$0xff] %vm557, %v501
  %567 = vst.msk [vmem:[%s3 + $0x48] sm:$0xff] %vm557, %v502
  %568 = vst.msk [vmem:[%s3 + $0x50] sm:$0xff] %vm557, %v503
  %569 = vst.msk [vmem:[%s3 + $0x58] sm:$0xff] %vm557, %v504
  %570 = vst.msk [vmem:[%s3 + $0x60] sm:$0xff] %vm557, %v505
  %571 = vst.msk [vmem:[%s3 + $0x68] sm:$0xff] %vm557, %v506
  %572 = vst.msk [vmem:[%s3 + $0x70] sm:$0xff] %vm557, %v507
  %573 = vst.msk [vmem:[%s3 + $0x78] sm:$0xff] %vm557, %v508
  %574 = vst.msk [vmem:[%s3 + $0x80] sm:$0xff] %vm557, %v509
  %575 = vst.msk [vmem:[%s3 + $0x88] sm:$0xff] %vm557, %v510
  %576 = vst.msk [vmem:[%s3 + $0x90] sm:$0xff] %vm557, %v511
  %577 = vst.msk [vmem:[%s3 + $0x98] sm:$0xff] %vm557, %v512
  %578 = vst.msk [vmem:[%s3 + $0xa0] sm:$0xff] %vm557, %v513
  %579 = vst.msk [vmem:[%s3 + $0xa8] sm:$0xff] %vm557, %v514
  %580 = vst.msk [vmem:[%s3 + $0xb0] sm:$0xff] %vm557, %v515
  %581 = vst.msk [vmem:[%s3 + $0xb8] sm:$0xff] %vm557, %v516
  %582 = vst.msk [vmem:[%s3 + $0xc0] sm:$0xff] %vm557, %v517
  %583 = vst.msk [vmem:[%s3 + $0xc8] sm:$0xff] %vm557, %v518
  %584 = vst.msk [vmem:[%s3 + $0xd0] sm:$0xff] %vm557, %v519
  %585 = vst.msk [vmem:[%s3 + $0xd8] sm:$0xff] %vm557, %v520
  %586 = vst.msk [vmem:[%s3 + $0xe0] sm:$0xff] %vm557, %v521
  %587 = vst.msk [vmem:[%s3 + $0xe8] sm:$0xff] %vm557, %v522
  %588 = vst.msk [vmem:[%s3 + $0xf0] sm:$0xff] %vm557, %v523
  %589 = vst.msk [vmem:[%s3 + $0xf8] sm:$0xff] %vm557, %v524
  %590 = vst.msk [vmem:[%s3 + $0x100] sm:$0xff] %vm557, %v525
  %591 = vst.msk [vmem:[%s3 + $0x108] sm:$0xff] %vm557, %v526
  %592 = vst.msk [vmem:[%s3 + $0x110] sm:$0xff] %vm557, %v527
  %593 = vst.msk [vmem:[%s3 + $0x118] sm:$0xff] %vm557, %v528
  %594 = vst.msk [vmem:[%s3 + $0x120] sm:$0xff] %vm557, %v529
  %595 = vst.msk [vmem:[%s3 + $0x128] sm:$0xff] %vm557, %v530
  %596 = vst.msk [vmem:[%s3 + $0x130] sm:$0xff] %vm557, %v531
  %597 = vst.msk [vmem:[%s3 + $0x138] sm:$0xff] %vm557, %v532
  %598 = vst.msk [vmem:[%s3 + $0x140] sm:$0xff] %vm557, %v533
  %599 = vst.msk [vmem:[%s3 + $0x148] sm:$0xff] %vm557, %v534
  %600 = vst.msk [vmem:[%s3 + $0x150] sm:$0xff] %vm557, %v535
  %601 = vst.msk [vmem:[%s3 + $0x158] sm:$0xff] %vm557, %v536
  %602 = vst.msk [vmem:[%s3 + $0x160] sm:$0xff] %vm557, %v537
  %603 = vst.msk [vmem:[%s3 + $0x168] sm:$0xff] %vm557, %v538
  %604 = vst.msk [vmem:[%s3 + $0x170] sm:$0xff] %vm557, %v539
  %605 = vst.msk [vmem:[%s3 + $0x178] sm:$0xff] %vm557, %v540
  %606 = vst.msk [vmem:[%s3 + $0x180] sm:$0xff] %vm557, %v541
  %607 = vst.msk [vmem:[%s3 + $0x188] sm:$0xff] %vm557, %v542
  %608 = vst.msk [vmem:[%s3 + $0x190] sm:$0xff] %vm557, %v543
  %609 = vst.msk [vmem:[%s3 + $0x198] sm:$0xff] %vm557, %v544
  %610 = vst.msk [vmem:[%s3 + $0x1a0] sm:$0xff] %vm557, %v545
  %611 = vst.msk [vmem:[%s3 + $0x1a8] sm:$0xff] %vm557, %v546
  %612 = vst.msk [vmem:[%s3 + $0x1b0] sm:$0xff] %vm557, %v547
  %613 = vst.msk [vmem:[%s3 + $0x1b8] sm:$0xff] %vm557, %v548
  %614 = vst.msk [vmem:[%s3 + $0x1c0] sm:$0xff] %vm557, %v549
  %615 = vst.msk [vmem:[%s3 + $0x1c8] sm:$0xff] %vm557, %v550
  %616 = vst.msk [vmem:[%s3 + $0x1d0] sm:$0xff] %vm557, %v551
  %617 = vst.msk [vmem:[%s3 + $0x1d8] sm:$0xff] %vm557, %v552
  %618 = vst.msk [vmem:[%s3 + $0x1e0] sm:$0xff] %vm557, %v553
  %619 = vst.msk [vmem:[%s3 + $0x1e8] sm:$0xff] %vm557, %v554
  %620 = vst.msk [vmem:[%s3 + $0x1f0] sm:$0xff] %vm557, %v555
  %621 = vst.msk [vmem:[%s3 + $0x1f8] sm:$0xff] %vm557, %v556
  // Predicated region
  $region14: #{ggc_forward.4} parent=0 // pred_check
    _
  $region15: #{ggc_forward.4} parent=0 // pred_check_branch
    %623 = sbr.rel (0) target = $region17
  $region16: #{ggc_forward.4} parent=0 // pred_region
    _
  $region17: #{ggc_forward.4} parent=0 // pred_fallthru
    _
  // Predicated region
  $region18: #{ggc_forward.4} parent=0 // pred_check
    _
  $region19: #{ggc_forward.4} parent=0 // pred_check_branch
    %625 = sbr.rel (0) target = $region21
  $region20: #{ggc_forward.4} parent=0 // pred_region
    _
  $region21: #{ggc_forward.4} parent=0 // pred_fallthru
    _

// kernel: ggc_forward.5
$region0: #{ggc_forward.5}
  #allocation0 [shape = 'u32[]', space=smem, size = 0x4, offset = 0x4, fixed_abs, tag = 'smem constant byte address 0x4 - core index']
  #allocation1 [shape = 'u32[72,128]{1,0:T(1,128)}', space=vmem, size = 0x9000, scoped, tag = 'internal scratch']
  %s0 = inlined_call_operand.vmem [shape: f32[512,288], index: 0, kind: input, shape index: {}]
  %s1 = inlined_call_operand.vmem [shape: f32[288,32], index: 1, kind: input, shape index: {}]
  %s2 = inlined_call_operand.vmem [shape: f32[1,32], index: 2, kind: input, shape index: {}]
  %s3 = inlined_call_operand.vmem [shape: f32[512,32], index: 3, kind: output, shape index: {}]
  %s4 = sld [smem:[#allocation0]]
  $region22: #{ggc_forward.5} parent=0
    _
  %s6 = ssub.s32 1, %s4
  %s7 = scalar_select 0, %s6, %s4
  // Predicated region
  $region2: #{ggc_forward.5} parent=0 // pred_check
    _
  $region3: #{ggc_forward.5} parent=0 // pred_check_branch
    %9 = sbr.rel (0) target = $region5
  $region4: #{ggc_forward.5} parent=0 // pred_region
    _
  $region5: #{ggc_forward.5} parent=0 // pred_fallthru
    _
  // Predicated region
  $region6: #{ggc_forward.5} parent=0 // pred_check
    _
  $region7: #{ggc_forward.5} parent=0 // pred_check_branch
    %11 = sbr.rel (0) target = $region9
  $region8: #{ggc_forward.5} parent=0 // pred_region
    _
  $region9: #{ggc_forward.5} parent=0 // pred_fallthru
    _
  // Predicated region
  $region10: #{ggc_forward.5} parent=0 // pred_check
    _
  $region11: #{ggc_forward.5} parent=0 // pred_check_branch
    %13 = sbr.rel (0) target = $region13
  $region12: #{ggc_forward.5} parent=0 // pred_region
    _
  $region13: #{ggc_forward.5} parent=0 // pred_fallthru
    _
  %v14 = vld [vmem:[%s0] sm:$0xff]
  %v15 = vld [vmem:[%s0 + $0x8] sm:$0xff]
  %v16 = vld [vmem:[%s0 + $0x10] sm:$0xff]
  %v17 = vld [vmem:[%s0 + $0x18] sm:$0xff]
  %v18 = vld [vmem:[%s0 + $0x20] sm:$0xff]
  %v19 = vld [vmem:[%s0 + $0x28] sm:$0xff]
  %v20 = vld [vmem:[%s0 + $0x30] sm:$0xff]
  %v21 = vld [vmem:[%s0 + $0x38] sm:$0xff]
  %v22 = vld [vmem:[%s0 + $0x40] sm:$0xff]
  %v23 = vld [vmem:[%s0 + $0x48] sm:$0xff]
  %v24 = vld [vmem:[%s0 + $0x50] sm:$0xff]
  %v25 = vld [vmem:[%s0 + $0x58] sm:$0xff]
  %v26 = vld [vmem:[%s0 + $0x60] sm:$0xff]
  %v27 = vld [vmem:[%s0 + $0x68] sm:$0xff]
  %v28 = vld [vmem:[%s0 + $0x70] sm:$0xff]
  %v29 = vld [vmem:[%s0 + $0x78] sm:$0xff]
  %v30 = vld [vmem:[%s0 + $0x80] sm:$0xff]
  %v31 = vld [vmem:[%s0 + $0x88] sm:$0xff]
  %v32 = vld [vmem:[%s0 + $0x90] sm:$0xff]
  %v33 = vld [vmem:[%s0 + $0x98] sm:$0xff]
  %v34 = vld [vmem:[%s0 + $0xa0] sm:$0xff]
  %v35 = vld [vmem:[%s0 + $0xa8] sm:$0xff]
  %v36 = vld [vmem:[%s0 + $0xb0] sm:$0xff]
  %v37 = vld [vmem:[%s0 + $0xb8] sm:$0xff]
  %v38 = vld [vmem:[%s0 + $0xc0] sm:$0xff]
  %v39 = vld [vmem:[%s0 + $0xc8] sm:$0xff]
  %v40 = vld [vmem:[%s0 + $0xd0] sm:$0xff]
  %v41 = vld [vmem:[%s0 + $0xd8] sm:$0xff]
  %v42 = vld [vmem:[%s0 + $0xe0] sm:$0xff]
  %v43 = vld [vmem:[%s0 + $0xe8] sm:$0xff]
  %v44 = vld [vmem:[%s0 + $0xf0] sm:$0xff]
  %v45 = vld [vmem:[%s0 + $0xf8] sm:$0xff]
  %v46 = vld [vmem:[%s0 + $0x100] sm:$0xff]
  %v47 = vld [vmem:[%s0 + $0x108] sm:$0xff]
  %v48 = vld [vmem:[%s0 + $0x110] sm:$0xff]
  %v49 = vld [vmem:[%s0 + $0x118] sm:$0xff]
  %v50 = vld [vmem:[%s0 + $0x120] sm:$0xff]
  %v51 = vld [vmem:[%s0 + $0x128] sm:$0xff]
  %v52 = vld [vmem:[%s0 + $0x130] sm:$0xff]
  %v53 = vld [vmem:[%s0 + $0x138] sm:$0xff]
  %v54 = vld [vmem:[%s0 + $0x140] sm:$0xff]
  %v55 = vld [vmem:[%s0 + $0x148] sm:$0xff]
  %v56 = vld [vmem:[%s0 + $0x150] sm:$0xff]
  %v57 = vld [vmem:[%s0 + $0x158] sm:$0xff]
  %v58 = vld [vmem:[%s0 + $0x160] sm:$0xff]
  %v59 = vld [vmem:[%s0 + $0x168] sm:$0xff]
  %v60 = vld [vmem:[%s0 + $0x170] sm:$0xff]
  %v61 = vld [vmem:[%s0 + $0x178] sm:$0xff]
  %v62 = vld [vmem:[%s0 + $0x180] sm:$0xff]
  %v63 = vld [vmem:[%s0 + $0x188] sm:$0xff]
  %v64 = vld [vmem:[%s0 + $0x190] sm:$0xff]
  %v65 = vld [vmem:[%s0 + $0x198] sm:$0xff]
  %v66 = vld [vmem:[%s0 + $0x1a0] sm:$0xff]
  %v67 = vld [vmem:[%s0 + $0x1a8] sm:$0xff]
  %v68 = vld [vmem:[%s0 + $0x1b0] sm:$0xff]
  %v69 = vld [vmem:[%s0 + $0x1b8] sm:$0xff]
  %v70 = vld [vmem:[%s0 + $0x1c0] sm:$0xff]
  %v71 = vld [vmem:[%s0 + $0x1c8] sm:$0xff]
  %v72 = vld [vmem:[%s0 + $0x1d0] sm:$0xff]
  %v73 = vld [vmem:[%s0 + $0x1d8] sm:$0xff]
  %v74 = vld [vmem:[%s0 + $0x1e0] sm:$0xff]
  %v75 = vld [vmem:[%s0 + $0x1e8] sm:$0xff]
  %v76 = vld [vmem:[%s0 + $0x1f0] sm:$0xff]
  %v77 = vld [vmem:[%s0 + $0x1f8] sm:$0xff]
  %v78 = vld [vmem:[%s0 + $0x200] sm:$0xff]
  %v79 = vld [vmem:[%s0 + $0x208] sm:$0xff]
  %v80 = vld [vmem:[%s0 + $0x210] sm:$0xff]
  %v81 = vld [vmem:[%s0 + $0x218] sm:$0xff]
  %v82 = vld [vmem:[%s0 + $0x220] sm:$0xff]
  %v83 = vld [vmem:[%s0 + $0x228] sm:$0xff]
  %v84 = vld [vmem:[%s0 + $0x230] sm:$0xff]
  %v85 = vld [vmem:[%s0 + $0x238] sm:$0xff]
  %v86 = vld [vmem:[%s0 + $0x240] sm:$0xff]
  %v87 = vld [vmem:[%s0 + $0x248] sm:$0xff]
  %v88 = vld [vmem:[%s0 + $0x250] sm:$0xff]
  %v89 = vld [vmem:[%s0 + $0x258] sm:$0xff]
  %v90 = vld [vmem:[%s0 + $0x260] sm:$0xff]
  %v91 = vld [vmem:[%s0 + $0x268] sm:$0xff]
  %v92 = vld [vmem:[%s0 + $0x270] sm:$0xff]
  %v93 = vld [vmem:[%s0 + $0x278] sm:$0xff]
  %v94 = vld [vmem:[%s0 + $0x280] sm:$0xff]
  %v95 = vld [vmem:[%s0 + $0x288] sm:$0xff]
  %v96 = vld [vmem:[%s0 + $0x290] sm:$0xff]
  %v97 = vld [vmem:[%s0 + $0x298] sm:$0xff]
  %v98 = vld [vmem:[%s0 + $0x2a0] sm:$0xff]
  %v99 = vld [vmem:[%s0 + $0x2a8] sm:$0xff]
  %v100 = vld [vmem:[%s0 + $0x2b0] sm:$0xff]
  %v101 = vld [vmem:[%s0 + $0x2b8] sm:$0xff]
  %v102 = vld [vmem:[%s0 + $0x2c0] sm:$0xff]
  %v103 = vld [vmem:[%s0 + $0x2c8] sm:$0xff]
  %v104 = vld [vmem:[%s0 + $0x2d0] sm:$0xff]
  %v105 = vld [vmem:[%s0 + $0x2d8] sm:$0xff]
  %v106 = vld [vmem:[%s0 + $0x2e0] sm:$0xff]
  %v107 = vld [vmem:[%s0 + $0x2e8] sm:$0xff]
  %v108 = vld [vmem:[%s0 + $0x2f0] sm:$0xff]
  %v109 = vld [vmem:[%s0 + $0x2f8] sm:$0xff]
  %v110 = vld [vmem:[%s0 + $0x300] sm:$0xff]
  %v111 = vld [vmem:[%s0 + $0x308] sm:$0xff]
  %v112 = vld [vmem:[%s0 + $0x310] sm:$0xff]
  %v113 = vld [vmem:[%s0 + $0x318] sm:$0xff]
  %v114 = vld [vmem:[%s0 + $0x320] sm:$0xff]
  %v115 = vld [vmem:[%s0 + $0x328] sm:$0xff]
  %v116 = vld [vmem:[%s0 + $0x330] sm:$0xff]
  %v117 = vld [vmem:[%s0 + $0x338] sm:$0xff]
  %v118 = vld [vmem:[%s0 + $0x340] sm:$0xff]
  %v119 = vld [vmem:[%s0 + $0x348] sm:$0xff]
  %v120 = vld [vmem:[%s0 + $0x350] sm:$0xff]
  %v121 = vld [vmem:[%s0 + $0x358] sm:$0xff]
  %v122 = vld [vmem:[%s0 + $0x360] sm:$0xff]
  %v123 = vld [vmem:[%s0 + $0x368] sm:$0xff]
  %v124 = vld [vmem:[%s0 + $0x370] sm:$0xff]
  %v125 = vld [vmem:[%s0 + $0x378] sm:$0xff]
  %v126 = vld [vmem:[%s0 + $0x380] sm:$0xff]
  %v127 = vld [vmem:[%s0 + $0x388] sm:$0xff]
  %v128 = vld [vmem:[%s0 + $0x390] sm:$0xff]
  %v129 = vld [vmem:[%s0 + $0x398] sm:$0xff]
  %v130 = vld [vmem:[%s0 + $0x3a0] sm:$0xff]
  %v131 = vld [vmem:[%s0 + $0x3a8] sm:$0xff]
  %v132 = vld [vmem:[%s0 + $0x3b0] sm:$0xff]
  %v133 = vld [vmem:[%s0 + $0x3b8] sm:$0xff]
  %v134 = vld [vmem:[%s0 + $0x3c0] sm:$0xff]
  %v135 = vld [vmem:[%s0 + $0x3c8] sm:$0xff]
  %v136 = vld [vmem:[%s0 + $0x3d0] sm:$0xff]
  %v137 = vld [vmem:[%s0 + $0x3d8] sm:$0xff]
  %v138 = vld [vmem:[%s0 + $0x3e0] sm:$0xff]
  %v139 = vld [vmem:[%s0 + $0x3e8] sm:$0xff]
  %v140 = vld [vmem:[%s0 + $0x3f0] sm:$0xff]
  %v141 = vld [vmem:[%s0 + $0x3f8] sm:$0xff]
  %v142 = vld [vmem:[%s0 + $0x400] sm:$0xff]
  %v143 = vld [vmem:[%s0 + $0x408] sm:$0xff]
  %v144 = vld [vmem:[%s0 + $0x410] sm:$0xff]
  %v145 = vld [vmem:[%s0 + $0x418] sm:$0xff]
  %v146 = vld [vmem:[%s0 + $0x420] sm:$0xff]
  %v147 = vld [vmem:[%s0 + $0x428] sm:$0xff]
  %v148 = vld [vmem:[%s0 + $0x430] sm:$0xff]
  %v149 = vld [vmem:[%s0 + $0x438] sm:$0xff]
  %v150 = vld [vmem:[%s0 + $0x440] sm:$0xff]
  %v151 = vld [vmem:[%s0 + $0x448] sm:$0xff]
  %v152 = vld [vmem:[%s0 + $0x450] sm:$0xff]
  %v153 = vld [vmem:[%s0 + $0x458] sm:$0xff]
  %v154 = vld [vmem:[%s0 + $0x460] sm:$0xff]
  %v155 = vld [vmem:[%s0 + $0x468] sm:$0xff]
  %v156 = vld [vmem:[%s0 + $0x470] sm:$0xff]
  %v157 = vld [vmem:[%s0 + $0x478] sm:$0xff]
  %v158 = vld [vmem:[%s0 + $0x480] sm:$0xff]
  %v159 = vld [vmem:[%s0 + $0x488] sm:$0xff]
  %v160 = vld [vmem:[%s0 + $0x490] sm:$0xff]
  %v161 = vld [vmem:[%s0 + $0x498] sm:$0xff]
  %v162 = vld [vmem:[%s0 + $0x4a0] sm:$0xff]
  %v163 = vld [vmem:[%s0 + $0x4a8] sm:$0xff]
  %v164 = vld [vmem:[%s0 + $0x4b0] sm:$0xff]
  %v165 = vld [vmem:[%s0 + $0x4b8] sm:$0xff]
  %v166 = vld [vmem:[%s0 + $0x4c0] sm:$0xff]
  %v167 = vld [vmem:[%s0 + $0x4c8] sm:$0xff]
  %v168 = vld [vmem:[%s0 + $0x4d0] sm:$0xff]
  %v169 = vld [vmem:[%s0 + $0x4d8] sm:$0xff]
  %v170 = vld [vmem:[%s0 + $0x4e0] sm:$0xff]
  %v171 = vld [vmem:[%s0 + $0x4e8] sm:$0xff]
  %v172 = vld [vmem:[%s0 + $0x4f0] sm:$0xff]
  %v173 = vld [vmem:[%s0 + $0x4f8] sm:$0xff]
  %v174 = vld [vmem:[%s0 + $0x500] sm:$0xff]
  %v175 = vld [vmem:[%s0 + $0x508] sm:$0xff]
  %v176 = vld [vmem:[%s0 + $0x510] sm:$0xff]
  %v177 = vld [vmem:[%s0 + $0x518] sm:$0xff]
  %v178 = vld [vmem:[%s0 + $0x520] sm:$0xff]
  %v179 = vld [vmem:[%s0 + $0x528] sm:$0xff]
  %v180 = vld [vmem:[%s0 + $0x530] sm:$0xff]
  %v181 = vld [vmem:[%s0 + $0x538] sm:$0xff]
  %v182 = vld [vmem:[%s0 + $0x540] sm:$0xff]
  %v183 = vld [vmem:[%s0 + $0x548] sm:$0xff]
  %v184 = vld [vmem:[%s0 + $0x550] sm:$0xff]
  %v185 = vld [vmem:[%s0 + $0x558] sm:$0xff]
  %v186 = vld [vmem:[%s0 + $0x560] sm:$0xff]
  %v187 = vld [vmem:[%s0 + $0x568] sm:$0xff]
  %v188 = vld [vmem:[%s0 + $0x570] sm:$0xff]
  %v189 = vld [vmem:[%s0 + $0x578] sm:$0xff]
  %v190 = vld [vmem:[%s0 + $0x580] sm:$0xff]
  %v191 = vld [vmem:[%s0 + $0x588] sm:$0xff]
  %v192 = vld [vmem:[%s0 + $0x590] sm:$0xff]
  %v193 = vld [vmem:[%s0 + $0x598] sm:$0xff]
  %v194 = vld [vmem:[%s0 + $0x5a0] sm:$0xff]
  %v195 = vld [vmem:[%s0 + $0x5a8] sm:$0xff]
  %v196 = vld [vmem:[%s0 + $0x5b0] sm:$0xff]
  %v197 = vld [vmem:[%s0 + $0x5b8] sm:$0xff]
  %v198 = vld [vmem:[%s0 + $0x5c0] sm:$0xff]
  %v199 = vld [vmem:[%s0 + $0x5c8] sm:$0xff]
  %v200 = vld [vmem:[%s0 + $0x5d0] sm:$0xff]
  %v201 = vld [vmem:[%s0 + $0x5d8] sm:$0xff]
  %v202 = vld [vmem:[%s0 + $0x5e0] sm:$0xff]
  %v203 = vld [vmem:[%s0 + $0x5e8] sm:$0xff]
  %v204 = vld [vmem:[%s0 + $0x5f0] sm:$0xff]
  %v205 = vld [vmem:[%s0 + $0x5f8] sm:$0xff]
  %v206 = vld [vmem:[%s1] sm:$0xff]
  %v207 = vld [vmem:[%s1 + $0x8] sm:$0xff]
  %v208 = vld [vmem:[%s1 + $0x10] sm:$0xff]
  %v209 = vld [vmem:[%s1 + $0x18] sm:$0xff]
  %v210 = vld [vmem:[%s1 + $0x20] sm:$0xff]
  %v211 = vld [vmem:[%s1 + $0x28] sm:$0xff]
  %v212 = vld [vmem:[%s1 + $0x30] sm:$0xff]
  %v213 = vld [vmem:[%s1 + $0x38] sm:$0xff]
  %v214 = vld [vmem:[%s1 + $0x40] sm:$0xff]
  %v215 = vld [vmem:[%s1 + $0x48] sm:$0xff]
  %v216 = vld [vmem:[%s1 + $0x50] sm:$0xff]
  %v217 = vld [vmem:[%s1 + $0x58] sm:$0xff]
  %v218 = vld [vmem:[%s1 + $0x60] sm:$0xff]
  %v219 = vld [vmem:[%s1 + $0x68] sm:$0xff]
  %v220 = vld [vmem:[%s1 + $0x70] sm:$0xff]
  %v221 = vld [vmem:[%s1 + $0x78] sm:$0xff]
  %v222 = vld [vmem:[%s1 + $0x80] sm:$0xff]
  %v223 = vld [vmem:[%s1 + $0x88] sm:$0xff]
  %v224 = vld [vmem:[%s1 + $0x90] sm:$0xff]
  %v225 = vld [vmem:[%s1 + $0x98] sm:$0xff]
  %v226 = vld [vmem:[%s1 + $0xa0] sm:$0xff]
  %v227 = vld [vmem:[%s1 + $0xa8] sm:$0xff]
  %v228 = vld [vmem:[%s1 + $0xb0] sm:$0xff]
  %v229 = vld [vmem:[%s1 + $0xb8] sm:$0xff]
  %v230 = vld [vmem:[%s1 + $0xc0] sm:$0xff]
  %v231 = vld [vmem:[%s1 + $0xc8] sm:$0xff]
  %v232 = vld [vmem:[%s1 + $0xd0] sm:$0xff]
  %v233 = vld [vmem:[%s1 + $0xd8] sm:$0xff]
  %v234 = vld [vmem:[%s1 + $0xe0] sm:$0xff]
  %v235 = vld [vmem:[%s1 + $0xe8] sm:$0xff]
  %v236 = vld [vmem:[%s1 + $0xf0] sm:$0xff]
  %v237 = vld [vmem:[%s1 + $0xf8] sm:$0xff]
  %v238 = vld [vmem:[%s1 + $0x100] sm:$0xff]
  %v239 = vld [vmem:[%s1 + $0x108] sm:$0xff]
  %v240 = vld [vmem:[%s1 + $0x110] sm:$0xff]
  %v241 = vld [vmem:[%s1 + $0x118] sm:$0xff]
  %v242 = vld [vmem:[%s2] sm:$0x1]
  %v244 = vperm.slane %v242, 0
  %vm246 = vcmask 261120
  %v248 = vsel %vm246, %v16, 0
  %v251 = vsel %vm246, %v19, 0
  %v254 = vsel %vm246, %v22, 0
  %v257 = vsel %vm246, %v25, 0
  %v260 = vsel %vm246, %v28, 0
  %v263 = vsel %vm246, %v31, 0
  %v266 = vsel %vm246, %v34, 0
  %v269 = vsel %vm246, %v37, 0
  %v272 = vsel %vm246, %v40, 0
  %v275 = vsel %vm246, %v43, 0
  %v278 = vsel %vm246, %v46, 0
  %v281 = vsel %vm246, %v49, 0
  %v284 = vsel %vm246, %v52, 0
  %v287 = vsel %vm246, %v55, 0
  %v290 = vsel %vm246, %v58, 0
  %v293 = vsel %vm246, %v61, 0
  %v296 = vsel %vm246, %v64, 0
  %v299 = vsel %vm246, %v67, 0
  %v302 = vsel %vm246, %v70, 0
  %v305 = vsel %vm246, %v73, 0
  %v308 = vsel %vm246, %v76, 0
  %v311 = vsel %vm246, %v79, 0
  %v314 = vsel %vm246, %v82, 0
  %v317 = vsel %vm246, %v85, 0
  %v320 = vsel %vm246, %v88, 0
  %v323 = vsel %vm246, %v91, 0
  %v326 = vsel %vm246, %v94, 0
  %v329 = vsel %vm246, %v97, 0
  %v332 = vsel %vm246, %v100, 0
  %v335 = vsel %vm246, %v103, 0
  %v338 = vsel %vm246, %v106, 0
  %v341 = vsel %vm246, %v109, 0
  %v344 = vsel %vm246, %v112, 0
  %v347 = vsel %vm246, %v115, 0
  %v350 = vsel %vm246, %v118, 0
  %v353 = vsel %vm246, %v121, 0
  %v356 = vsel %vm246, %v124, 0
  %v359 = vsel %vm246, %v127, 0
  %v362 = vsel %vm246, %v130, 0
  %v365 = vsel %vm246, %v133, 0
  %v368 = vsel %vm246, %v136, 0
  %v371 = vsel %vm246, %v139, 0
  %v374 = vsel %vm246, %v142, 0
  %v377 = vsel %vm246, %v145, 0
  %v380 = vsel %vm246, %v148, 0
  %v383 = vsel %vm246, %v151, 0
  %v386 = vsel %vm246, %v154, 0
  %v389 = vsel %vm246, %v157, 0
  %v392 = vsel %vm246, %v160, 0
  %v395 = vsel %vm246, %v163, 0
  %v398 = vsel %vm246, %v166, 0
  %v401 = vsel %vm246, %v169, 0
  %v404 = vsel %vm246, %v172, 0
  %v407 = vsel %vm246, %v175, 0
  %v410 = vsel %vm246, %v178, 0
  %v413 = vsel %vm246, %v181, 0
  %v416 = vsel %vm246, %v184, 0
  %v419 = vsel %vm246, %v187, 0
  %v422 = vsel %vm246, %v190, 0
  %v425 = vsel %vm246, %v193, 0
  %v428 = vsel %vm246, %v196, 0
  %v431 = vsel %vm246, %v199, 0
  %v434 = vsel %vm246, %v202, 0
  %v437 = vsel %vm246, %v205, 0
  %439 = vmatpush.msra.mxu0 %v221
  %440 = vmatpush.msra.mxu0 %v220
  %441 = vmatpush.msra.mxu0 %v219
  %442 = vmatpush.msra.mxu0 %v218
  %443 = vmatpush.msra.mxu0 %v217
  %444 = vmatpush.msra.mxu0 %v216
  %445 = vmatpush.msra.mxu0 %v215
  %446 = vmatpush.msra.mxu0 %v214
  %447 = vmatpush.msra.mxu0 %v213
  %448 = vmatpush.msra.mxu0 %v212
  %449 = vmatpush.msra.mxu0 %v211
  %450 = vmatpush.msra.mxu0 %v210
  %451 = vmatpush.msra.mxu0 %v209
  %452 = vmatpush.msra.mxu0 %v208
  %453 = vmatpush.msra.mxu0 %v207
  %454 = vmatpush.msra.mxu0 %v206
  %455 = vmatmul.f32.gmra.mxu0 %v14
  %v456 = vpop.f32.mrf.mxu0
  %v457 = vadd.f32 %v244, %v456
  %458 = vmatmul.f32.gmra.mxu0 %v17
  %v459 = vpop.f32.mrf.mxu0
  %v460 = vadd.f32 %v244, %v459
  %461 = vmatmul.f32.gmra.mxu0 %v20
  %v462 = vpop.f32.mrf.mxu0
  %v463 = vadd.f32 %v244, %v462
  %464 = vmatmul.f32.gmra.mxu0 %v23
  %v465 = vpop.f32.mrf.mxu0
  %v466 = vadd.f32 %v244, %v465
  %467 = vmatmul.f32.gmra.mxu0 %v26
  %v468 = vpop.f32.mrf.mxu0
  %v469 = vadd.f32 %v244, %v468
  %470 = vmatmul.f32.gmra.mxu0 %v29
  %v471 = vpop.f32.mrf.mxu0
  %v472 = vadd.f32 %v244, %v471
  %473 = vmatmul.f32.gmra.mxu0 %v32
  %v474 = vpop.f32.mrf.mxu0
  %v475 = vadd.f32 %v244, %v474
  %476 = vmatmul.f32.gmra.mxu0 %v35
  %v477 = vpop.f32.mrf.mxu0
  %v478 = vadd.f32 %v244, %v477
  %479 = vmatmul.f32.gmra.mxu0 %v38
  %v480 = vpop.f32.mrf.mxu0
  %v481 = vadd.f32 %v244, %v480
  %482 = vmatmul.f32.gmra.mxu0 %v41
  %v483 = vpop.f32.mrf.mxu0
  %v484 = vadd.f32 %v244, %v483
  %485 = vmatmul.f32.gmra.mxu0 %v44
  %v486 = vpop.f32.mrf.mxu0
  %v487 = vadd.f32 %v244, %v486
  %488 = vmatmul.f32.gmra.mxu0 %v47
  %v489 = vpop.f32.mrf.mxu0
  %v490 = vadd.f32 %v244, %v489
  %491 = vmatmul.f32.gmra.mxu0 %v50
  %v492 = vpop.f32.mrf.mxu0
  %v493 = vadd.f32 %v244, %v492
  %494 = vmatmul.f32.gmra.mxu0 %v53
  %v495 = vpop.f32.mrf.mxu0
  %v496 = vadd.f32 %v244, %v495
  %497 = vmatmul.f32.gmra.mxu0 %v56
  %v498 = vpop.f32.mrf.mxu0
  %v499 = vadd.f32 %v244, %v498
  %500 = vmatmul.f32.gmra.mxu0 %v59
  %v501 = vpop.f32.mrf.mxu0
  %v502 = vadd.f32 %v244, %v501
  %503 = vmatmul.f32.gmra.mxu0 %v62
  %v504 = vpop.f32.mrf.mxu0
  %v505 = vadd.f32 %v244, %v504
  %506 = vmatmul.f32.gmra.mxu0 %v65
  %v507 = vpop.f32.mrf.mxu0
  %v508 = vadd.f32 %v244, %v507
  %509 = vmatmul.f32.gmra.mxu0 %v68
  %v510 = vpop.f32.mrf.mxu0
  %v511 = vadd.f32 %v244, %v510
  %512 = vmatmul.f32.gmra.mxu0 %v71
  %v513 = vpop.f32.mrf.mxu0
  %v514 = vadd.f32 %v244, %v513
  %515 = vmatmul.f32.gmra.mxu0 %v74
  %v516 = vpop.f32.mrf.mxu0
  %v517 = vadd.f32 %v244, %v516
  %518 = vmatmul.f32.gmra.mxu0 %v77
  %v519 = vpop.f32.mrf.mxu0
  %v520 = vadd.f32 %v244, %v519
  %521 = vmatmul.f32.gmra.mxu0 %v80
  %v522 = vpop.f32.mrf.mxu0
  %v523 = vadd.f32 %v244, %v522
  %524 = vmatmul.f32.gmra.mxu0 %v83
  %v525 = vpop.f32.mrf.mxu0
  %v526 = vadd.f32 %v244, %v525
  %527 = vmatmul.f32.gmra.mxu0 %v86
  %v528 = vpop.f32.mrf.mxu0
  %v529 = vadd.f32 %v244, %v528
  %530 = vmatmul.f32.gmra.mxu0 %v89
  %v531 = vpop.f32.mrf.mxu0
  %v532 = vadd.f32 %v244, %v531
  %533 = vmatmul.f32.gmra.mxu0 %v92
  %v534 = vpop.f32.mrf.mxu0
  %v535 = vadd.f32 %v244, %v534
  %536 = vmatmul.f32.gmra.mxu0 %v95
  %v537 = vpop.f32.mrf.mxu0
  %v538 = vadd.f32 %v244, %v537
  %539 = vmatmul.f32.gmra.mxu0 %v98
  %v540 = vpop.f32.mrf.mxu0
  %v541 = vadd.f32 %v244, %v540
  %542 = vmatmul.f32.gmra.mxu0 %v101
  %v543 = vpop.f32.mrf.mxu0
  %v544 = vadd.f32 %v244, %v543
  %545 = vmatmul.f32.gmra.mxu0 %v104
  %v546 = vpop.f32.mrf.mxu0
  %v547 = vadd.f32 %v244, %v546
  %548 = vmatmul.f32.gmra.mxu0 %v107
  %v549 = vpop.f32.mrf.mxu0
  %v550 = vadd.f32 %v244, %v549
  %551 = vmatmul.f32.gmra.mxu0 %v110
  %v552 = vpop.f32.mrf.mxu0
  %v553 = vadd.f32 %v244, %v552
  %554 = vmatmul.f32.gmra.mxu0 %v113
  %v555 = vpop.f32.mrf.mxu0
  %v556 = vadd.f32 %v244, %v555
  %557 = vmatmul.f32.gmra.mxu0 %v116
  %v558 = vpop.f32.mrf.mxu0
  %v559 = vadd.f32 %v244, %v558
  %560 = vmatmul.f32.gmra.mxu0 %v119
  %v561 = vpop.f32.mrf.mxu0
  %v562 = vadd.f32 %v244, %v561
  %563 = vmatmul.f32.gmra.mxu0 %v122
  %v564 = vpop.f32.mrf.mxu0
  %v565 = vadd.f32 %v244, %v564
  %566 = vmatmul.f32.gmra.mxu0 %v125
  %v567 = vpop.f32.mrf.mxu0
  %v568 = vadd.f32 %v244, %v567
  %569 = vmatmul.f32.gmra.mxu0 %v128
  %v570 = vpop.f32.mrf.mxu0
  %v571 = vadd.f32 %v244, %v570
  %572 = vmatmul.f32.gmra.mxu0 %v131
  %v573 = vpop.f32.mrf.mxu0
  %v574 = vadd.f32 %v244, %v573
  %575 = vmatmul.f32.gmra.mxu0 %v134
  %v576 = vpop.f32.mrf.mxu0
  %v577 = vadd.f32 %v244, %v576
  %578 = vmatmul.f32.gmra.mxu0 %v137
  %v579 = vpop.f32.mrf.mxu0
  %v580 = vadd.f32 %v244, %v579
  %581 = vmatmul.f32.gmra.mxu0 %v140
  %v582 = vpop.f32.mrf.mxu0
  %v583 = vadd.f32 %v244, %v582
  %584 = vmatmul.f32.gmra.mxu0 %v143
  %v585 = vpop.f32.mrf.mxu0
  %v586 = vadd.f32 %v244, %v585
  %587 = vmatmul.f32.gmra.mxu0 %v146
  %v588 = vpop.f32.mrf.mxu0
  %v589 = vadd.f32 %v244, %v588
  %590 = vmatmul.f32.gmra.mxu0 %v149
  %v591 = vpop.f32.mrf.mxu0
  %v592 = vadd.f32 %v244, %v591
  %593 = vmatmul.f32.gmra.mxu0 %v152
  %v594 = vpop.f32.mrf.mxu0
  %v595 = vadd.f32 %v244, %v594
  %596 = vmatmul.f32.gmra.mxu0 %v155
  %v597 = vpop.f32.mrf.mxu0
  %v598 = vadd.f32 %v244, %v597
  %599 = vmatmul.f32.gmra.mxu0 %v158
  %v600 = vpop.f32.mrf.mxu0
  %v601 = vadd.f32 %v244, %v600
  %602 = vmatmul.f32.gmra.mxu0 %v161
  %v603 = vpop.f32.mrf.mxu0
  %v604 = vadd.f32 %v244, %v603
  %605 = vmatmul.f32.gmra.mxu0 %v164
  %v606 = vpop.f32.mrf.mxu0
  %v607 = vadd.f32 %v244, %v606
  %608 = vmatmul.f32.gmra.mxu0 %v167
  %v609 = vpop.f32.mrf.mxu0
  %v610 = vadd.f32 %v244, %v609
  %611 = vmatmul.f32.gmra.mxu0 %v170
  %v612 = vpop.f32.mrf.mxu0
  %v613 = vadd.f32 %v244, %v612
  %614 = vmatmul.f32.gmra.mxu0 %v173
  %v615 = vpop.f32.mrf.mxu0
  %v616 = vadd.f32 %v244, %v615
  %617 = vmatmul.f32.gmra.mxu0 %v176
  %v618 = vpop.f32.mrf.mxu0
  %v619 = vadd.f32 %v244, %v618
  %620 = vmatmul.f32.gmra.mxu0 %v179
  %v621 = vpop.f32.mrf.mxu0
  %v622 = vadd.f32 %v244, %v621
  %623 = vmatmul.f32.gmra.mxu0 %v182
  %v624 = vpop.f32.mrf.mxu0
  %v625 = vadd.f32 %v244, %v624
  %626 = vmatmul.f32.gmra.mxu0 %v185
  %v627 = vpop.f32.mrf.mxu0
  %v628 = vadd.f32 %v244, %v627
  %629 = vmatmul.f32.gmra.mxu0 %v188
  %v630 = vpop.f32.mrf.mxu0
  %v631 = vadd.f32 %v244, %v630
  %632 = vmatmul.f32.gmra.mxu0 %v191
  %v633 = vpop.f32.mrf.mxu0
  %v634 = vadd.f32 %v244, %v633
  %635 = vmatmul.f32.gmra.mxu0 %v194
  %v636 = vpop.f32.mrf.mxu0
  %v637 = vadd.f32 %v244, %v636
  %638 = vmatmul.f32.gmra.mxu0 %v197
  %v639 = vpop.f32.mrf.mxu0
  %v640 = vadd.f32 %v244, %v639
  %641 = vmatmul.f32.gmra.mxu0 %v200
  %v642 = vpop.f32.mrf.mxu0
  %v643 = vadd.f32 %v244, %v642
  %644 = vmatmul.f32.gmra.mxu0 %v203
  %v645 = vpop.f32.mrf.mxu0
  %v646 = vadd.f32 %v244, %v645
  %647 = vdwg.mxu0
  %648 = vmatpush.msra.mxu0 %v237
  %649 = vmatpush.msra.mxu0 %v236
  %650 = vmatpush.msra.mxu0 %v235
  %651 = vmatpush.msra.mxu0 %v234
  %652 = vmatpush.msra.mxu0 %v233
  %653 = vmatpush.msra.mxu0 %v232
  %654 = vmatpush.msra.mxu0 %v231
  %655 = vmatpush.msra.mxu0 %v230
  %656 = vmatpush.msra.mxu0 %v229
  %657 = vmatpush.msra.mxu0 %v228
  %658 = vmatpush.msra.mxu0 %v227
  %659 = vmatpush.msra.mxu0 %v226
  %660 = vmatpush.msra.mxu0 %v225
  %661 = vmatpush.msra.mxu0 %v224
  %662 = vmatpush.msra.mxu0 %v223
  %663 = vmatpush.msra.mxu0 %v222
  %664 = vmatmul.f32.gmra.mxu0 %v15
  %v665 = vpop.f32.mrf.mxu0
  %v666 = vadd.f32 %v457, %v665
  %667 = vmatmul.f32.gmra.mxu0 %v18
  %v668 = vpop.f32.mrf.mxu0
  %v669 = vadd.f32 %v460, %v668
  %670 = vmatmul.f32.gmra.mxu0 %v21
  %v671 = vpop.f32.mrf.mxu0
  %v672 = vadd.f32 %v463, %v671
  %673 = vmatmul.f32.gmra.mxu0 %v24
  %v674 = vpop.f32.mrf.mxu0
  %v675 = vadd.f32 %v466, %v674
  %676 = vmatmul.f32.gmra.mxu0 %v27
  %v677 = vpop.f32.mrf.mxu0
  %v678 = vadd.f32 %v469, %v677
  %679 = vmatmul.f32.gmra.mxu0 %v30
  %v680 = vpop.f32.mrf.mxu0
  %v681 = vadd.f32 %v472, %v680
  %682 = vmatmul.f32.gmra.mxu0 %v33
  %v683 = vpop.f32.mrf.mxu0
  %v684 = vadd.f32 %v475, %v683
  %685 = vmatmul.f32.gmra.mxu0 %v36
  %v686 = vpop.f32.mrf.mxu0
  %v687 = vadd.f32 %v478, %v686
  %688 = vmatmul.f32.gmra.mxu0 %v39
  %v689 = vpop.f32.mrf.mxu0
  %v690 = vadd.f32 %v481, %v689
  %691 = vmatmul.f32.gmra.mxu0 %v42
  %v692 = vpop.f32.mrf.mxu0
  %v693 = vadd.f32 %v484, %v692
  %694 = vmatmul.f32.gmra.mxu0 %v45
  %v695 = vpop.f32.mrf.mxu0
  %v696 = vadd.f32 %v487, %v695
  %697 = vmatmul.f32.gmra.mxu0 %v48
  %v698 = vpop.f32.mrf.mxu0
  %v699 = vadd.f32 %v490, %v698
  %700 = vmatmul.f32.gmra.mxu0 %v51
  %v701 = vpop.f32.mrf.mxu0
  %v702 = vadd.f32 %v493, %v701
  %703 = vmatmul.f32.gmra.mxu0 %v54
  %v704 = vpop.f32.mrf.mxu0
  %v705 = vadd.f32 %v496, %v704
  %706 = vmatmul.f32.gmra.mxu0 %v57
  %v707 = vpop.f32.mrf.mxu0
  %v708 = vadd.f32 %v499, %v707
  %709 = vmatmul.f32.gmra.mxu0 %v60
  %v710 = vpop.f32.mrf.mxu0
  %v711 = vadd.f32 %v502, %v710
  %712 = vmatmul.f32.gmra.mxu0 %v63
  %v713 = vpop.f32.mrf.mxu0
  %v714 = vadd.f32 %v505, %v713
  %715 = vmatmul.f32.gmra.mxu0 %v66
  %v716 = vpop.f32.mrf.mxu0
  %v717 = vadd.f32 %v508, %v716
  %718 = vmatmul.f32.gmra.mxu0 %v69
  %v719 = vpop.f32.mrf.mxu0
  %v720 = vadd.f32 %v511, %v719
  %721 = vmatmul.f32.gmra.mxu0 %v72
  %v722 = vpop.f32.mrf.mxu0
  %v723 = vadd.f32 %v514, %v722
  %724 = vmatmul.f32.gmra.mxu0 %v75
  %v725 = vpop.f32.mrf.mxu0
  %v726 = vadd.f32 %v517, %v725
  %727 = vmatmul.f32.gmra.mxu0 %v78
  %v728 = vpop.f32.mrf.mxu0
  %v729 = vadd.f32 %v520, %v728
  %730 = vmatmul.f32.gmra.mxu0 %v81
  %v731 = vpop.f32.mrf.mxu0
  %v732 = vadd.f32 %v523, %v731
  %733 = vmatmul.f32.gmra.mxu0 %v84
  %v734 = vpop.f32.mrf.mxu0
  %v735 = vadd.f32 %v526, %v734
  %736 = vmatmul.f32.gmra.mxu0 %v87
  %v737 = vpop.f32.mrf.mxu0
  %v738 = vadd.f32 %v529, %v737
  %739 = vmatmul.f32.gmra.mxu0 %v90
  %v740 = vpop.f32.mrf.mxu0
  %v741 = vadd.f32 %v532, %v740
  %742 = vmatmul.f32.gmra.mxu0 %v93
  %v743 = vpop.f32.mrf.mxu0
  %v744 = vadd.f32 %v535, %v743
  %745 = vmatmul.f32.gmra.mxu0 %v96
  %v746 = vpop.f32.mrf.mxu0
  %v747 = vadd.f32 %v538, %v746
  %748 = vmatmul.f32.gmra.mxu0 %v99
  %v749 = vpop.f32.mrf.mxu0
  %v750 = vadd.f32 %v541, %v749
  %751 = vmatmul.f32.gmra.mxu0 %v102
  %v752 = vpop.f32.mrf.mxu0
  %v753 = vadd.f32 %v544, %v752
  %754 = vmatmul.f32.gmra.mxu0 %v105
  %v755 = vpop.f32.mrf.mxu0
  %v756 = vadd.f32 %v547, %v755
  %757 = vmatmul.f32.gmra.mxu0 %v108
  %v758 = vpop.f32.mrf.mxu0
  %v759 = vadd.f32 %v550, %v758
  %760 = vmatmul.f32.gmra.mxu0 %v111
  %v761 = vpop.f32.mrf.mxu0
  %v762 = vadd.f32 %v553, %v761
  %763 = vmatmul.f32.gmra.mxu0 %v114
  %v764 = vpop.f32.mrf.mxu0
  %v765 = vadd.f32 %v556, %v764
  %766 = vmatmul.f32.gmra.mxu0 %v117
  %v767 = vpop.f32.mrf.mxu0
  %v768 = vadd.f32 %v559, %v767
  %769 = vmatmul.f32.gmra.mxu0 %v120
  %v770 = vpop.f32.mrf.mxu0
  %v771 = vadd.f32 %v562, %v770
  %772 = vmatmul.f32.gmra.mxu0 %v123
  %v773 = vpop.f32.mrf.mxu0
  %v774 = vadd.f32 %v565, %v773
  %775 = vmatmul.f32.gmra.mxu0 %v126
  %v776 = vpop.f32.mrf.mxu0
  %v777 = vadd.f32 %v568, %v776
  %778 = vmatmul.f32.gmra.mxu0 %v129
  %v779 = vpop.f32.mrf.mxu0
  %v780 = vadd.f32 %v571, %v779
  %781 = vmatmul.f32.gmra.mxu0 %v132
  %v782 = vpop.f32.mrf.mxu0
  %v783 = vadd.f32 %v574, %v782
  %784 = vmatmul.f32.gmra.mxu0 %v135
  %v785 = vpop.f32.mrf.mxu0
  %v786 = vadd.f32 %v577, %v785
  %787 = vmatmul.f32.gmra.mxu0 %v138
  %v788 = vpop.f32.mrf.mxu0
  %v789 = vadd.f32 %v580, %v788
  %790 = vmatmul.f32.gmra.mxu0 %v141
  %v791 = vpop.f32.mrf.mxu0
  %v792 = vadd.f32 %v583, %v791
  %793 = vmatmul.f32.gmra.mxu0 %v144
  %v794 = vpop.f32.mrf.mxu0
  %v795 = vadd.f32 %v586, %v794
  %796 = vmatmul.f32.gmra.mxu0 %v147
  %v797 = vpop.f32.mrf.mxu0
  %v798 = vadd.f32 %v589, %v797
  %799 = vmatmul.f32.gmra.mxu0 %v150
  %v800 = vpop.f32.mrf.mxu0
  %v801 = vadd.f32 %v592, %v800
  %802 = vmatmul.f32.gmra.mxu0 %v153
  %v803 = vpop.f32.mrf.mxu0
  %v804 = vadd.f32 %v595, %v803
  %805 = vmatmul.f32.gmra.mxu0 %v156
  %v806 = vpop.f32.mrf.mxu0
  %v807 = vadd.f32 %v598, %v806
  %808 = vmatmul.f32.gmra.mxu0 %v159
  %v809 = vpop.f32.mrf.mxu0
  %v810 = vadd.f32 %v601, %v809
  %811 = vmatmul.f32.gmra.mxu0 %v162
  %v812 = vpop.f32.mrf.mxu0
  %v813 = vadd.f32 %v604, %v812
  %814 = vmatmul.f32.gmra.mxu0 %v165
  %v815 = vpop.f32.mrf.mxu0
  %v816 = vadd.f32 %v607, %v815
  %817 = vmatmul.f32.gmra.mxu0 %v168
  %v818 = vpop.f32.mrf.mxu0
  %v819 = vadd.f32 %v610, %v818
  %820 = vmatmul.f32.gmra.mxu0 %v171
  %v821 = vpop.f32.mrf.mxu0
  %v822 = vadd.f32 %v613, %v821
  %823 = vmatmul.f32.gmra.mxu0 %v174
  %v824 = vpop.f32.mrf.mxu0
  %v825 = vadd.f32 %v616, %v824
  %826 = vmatmul.f32.gmra.mxu0 %v177
  %v827 = vpop.f32.mrf.mxu0
  %v828 = vadd.f32 %v619, %v827
  %829 = vmatmul.f32.gmra.mxu0 %v180
  %v830 = vpop.f32.mrf.mxu0
  %v831 = vadd.f32 %v622, %v830
  %832 = vmatmul.f32.gmra.mxu0 %v183
  %v833 = vpop.f32.mrf.mxu0
  %v834 = vadd.f32 %v625, %v833
  %835 = vmatmul.f32.gmra.mxu0 %v186
  %v836 = vpop.f32.mrf.mxu0
  %v837 = vadd.f32 %v628, %v836
  %838 = vmatmul.f32.gmra.mxu0 %v189
  %v839 = vpop.f32.mrf.mxu0
  %v840 = vadd.f32 %v631, %v839
  %841 = vmatmul.f32.gmra.mxu0 %v192
  %v842 = vpop.f32.mrf.mxu0
  %v843 = vadd.f32 %v634, %v842
  %844 = vmatmul.f32.gmra.mxu0 %v195
  %v845 = vpop.f32.mrf.mxu0
  %v846 = vadd.f32 %v637, %v845
  %847 = vmatmul.f32.gmra.mxu0 %v198
  %v848 = vpop.f32.mrf.mxu0
  %v849 = vadd.f32 %v640, %v848
  %850 = vmatmul.f32.gmra.mxu0 %v201
  %v851 = vpop.f32.mrf.mxu0
  %v852 = vadd.f32 %v643, %v851
  %853 = vmatmul.f32.gmra.mxu0 %v204
  %v854 = vpop.f32.mrf.mxu0
  %v855 = vadd.f32 %v646, %v854
  %856 = vdwg.mxu0
  %857 = vmatpush.msra.mxu0 0.0
  %858 = vmatpush.msra.mxu0 0.0
  %859 = vmatpush.msra.mxu0 0.0
  %860 = vmatpush.msra.mxu0 0.0
  %861 = vmatpush.msra.mxu0 0.0
  %862 = vmatpush.msra.mxu0 0.0
  %863 = vmatpush.msra.mxu0 0.0
  %864 = vmatpush.msra.mxu0 0.0
  %865 = vmatpush.msra.mxu0 0.0
  %866 = vmatpush.msra.mxu0 0.0
  %867 = vmatpush.msra.mxu0 0.0
  %868 = vmatpush.msra.mxu0 0.0
  %869 = vmatpush.msra.mxu0 %v241
  %870 = vmatpush.msra.mxu0 %v240
  %871 = vmatpush.msra.mxu0 %v239
  %872 = vmatpush.msra.mxu0 %v238
  %873 = vmatmul.f32.gmra.mxu0 %v248
  %v874 = vpop.f32.mrf.mxu0
  %v875 = vadd.f32 %v666, %v874
  %876 = vmatmul.f32.gmra.mxu0 %v251
  %v877 = vpop.f32.mrf.mxu0
  %v878 = vadd.f32 %v669, %v877
  %879 = vmatmul.f32.gmra.mxu0 %v254
  %v880 = vpop.f32.mrf.mxu0
  %v881 = vadd.f32 %v672, %v880
  %882 = vmatmul.f32.gmra.mxu0 %v257
  %v883 = vpop.f32.mrf.mxu0
  %v884 = vadd.f32 %v675, %v883
  %885 = vmatmul.f32.gmra.mxu0 %v260
  %v886 = vpop.f32.mrf.mxu0
  %v887 = vadd.f32 %v678, %v886
  %888 = vmatmul.f32.gmra.mxu0 %v263
  %v889 = vpop.f32.mrf.mxu0
  %v890 = vadd.f32 %v681, %v889
  %891 = vmatmul.f32.gmra.mxu0 %v266
  %v892 = vpop.f32.mrf.mxu0
  %v893 = vadd.f32 %v684, %v892
  %894 = vmatmul.f32.gmra.mxu0 %v269
  %v895 = vpop.f32.mrf.mxu0
  %v896 = vadd.f32 %v687, %v895
  %897 = vmatmul.f32.gmra.mxu0 %v272
  %v898 = vpop.f32.mrf.mxu0
  %v899 = vadd.f32 %v690, %v898
  %900 = vmatmul.f32.gmra.mxu0 %v275
  %v901 = vpop.f32.mrf.mxu0
  %v902 = vadd.f32 %v693, %v901
  %903 = vmatmul.f32.gmra.mxu0 %v278
  %v904 = vpop.f32.mrf.mxu0
  %v905 = vadd.f32 %v696, %v904
  %906 = vmatmul.f32.gmra.mxu0 %v281
  %v907 = vpop.f32.mrf.mxu0
  %v908 = vadd.f32 %v699, %v907
  %909 = vmatmul.f32.gmra.mxu0 %v284
  %v910 = vpop.f32.mrf.mxu0
  %v911 = vadd.f32 %v702, %v910
  %912 = vmatmul.f32.gmra.mxu0 %v287
  %v913 = vpop.f32.mrf.mxu0
  %v914 = vadd.f32 %v705, %v913
  %915 = vmatmul.f32.gmra.mxu0 %v290
  %v916 = vpop.f32.mrf.mxu0
  %v917 = vadd.f32 %v708, %v916
  %918 = vmatmul.f32.gmra.mxu0 %v293
  %v919 = vpop.f32.mrf.mxu0
  %v920 = vadd.f32 %v711, %v919
  %921 = vmatmul.f32.gmra.mxu0 %v296
  %v922 = vpop.f32.mrf.mxu0
  %v923 = vadd.f32 %v714, %v922
  %924 = vmatmul.f32.gmra.mxu0 %v299
  %v925 = vpop.f32.mrf.mxu0
  %v926 = vadd.f32 %v717, %v925
  %927 = vmatmul.f32.gmra.mxu0 %v302
  %v928 = vpop.f32.mrf.mxu0
  %v929 = vadd.f32 %v720, %v928
  %930 = vmatmul.f32.gmra.mxu0 %v305
  %v931 = vpop.f32.mrf.mxu0
  %v932 = vadd.f32 %v723, %v931
  %933 = vmatmul.f32.gmra.mxu0 %v308
  %v934 = vpop.f32.mrf.mxu0
  %v935 = vadd.f32 %v726, %v934
  %936 = vmatmul.f32.gmra.mxu0 %v311
  %v937 = vpop.f32.mrf.mxu0
  %v938 = vadd.f32 %v729, %v937
  %939 = vmatmul.f32.gmra.mxu0 %v314
  %v940 = vpop.f32.mrf.mxu0
  %v941 = vadd.f32 %v732, %v940
  %942 = vmatmul.f32.gmra.mxu0 %v317
  %v943 = vpop.f32.mrf.mxu0
  %v944 = vadd.f32 %v735, %v943
  %945 = vmatmul.f32.gmra.mxu0 %v320
  %v946 = vpop.f32.mrf.mxu0
  %v947 = vadd.f32 %v738, %v946
  %948 = vmatmul.f32.gmra.mxu0 %v323
  %v949 = vpop.f32.mrf.mxu0
  %v950 = vadd.f32 %v741, %v949
  %951 = vmatmul.f32.gmra.mxu0 %v326
  %v952 = vpop.f32.mrf.mxu0
  %v953 = vadd.f32 %v744, %v952
  %954 = vmatmul.f32.gmra.mxu0 %v329
  %v955 = vpop.f32.mrf.mxu0
  %v956 = vadd.f32 %v747, %v955
  %957 = vmatmul.f32.gmra.mxu0 %v332
  %v958 = vpop.f32.mrf.mxu0
  %v959 = vadd.f32 %v750, %v958
  %960 = vmatmul.f32.gmra.mxu0 %v335
  %v961 = vpop.f32.mrf.mxu0
  %v962 = vadd.f32 %v753, %v961
  %963 = vmatmul.f32.gmra.mxu0 %v338
  %v964 = vpop.f32.mrf.mxu0
  %v965 = vadd.f32 %v756, %v964
  %966 = vmatmul.f32.gmra.mxu0 %v341
  %v967 = vpop.f32.mrf.mxu0
  %v968 = vadd.f32 %v759, %v967
  %969 = vmatmul.f32.gmra.mxu0 %v344
  %v970 = vpop.f32.mrf.mxu0
  %v971 = vadd.f32 %v762, %v970
  %972 = vmatmul.f32.gmra.mxu0 %v347
  %v973 = vpop.f32.mrf.mxu0
  %v974 = vadd.f32 %v765, %v973
  %975 = vmatmul.f32.gmra.mxu0 %v350
  %v976 = vpop.f32.mrf.mxu0
  %v977 = vadd.f32 %v768, %v976
  %978 = vmatmul.f32.gmra.mxu0 %v353
  %v979 = vpop.f32.mrf.mxu0
  %v980 = vadd.f32 %v771, %v979
  %981 = vmatmul.f32.gmra.mxu0 %v356
  %v982 = vpop.f32.mrf.mxu0
  %v983 = vadd.f32 %v774, %v982
  %984 = vmatmul.f32.gmra.mxu0 %v359
  %v985 = vpop.f32.mrf.mxu0
  %v986 = vadd.f32 %v777, %v985
  %987 = vmatmul.f32.gmra.mxu0 %v362
  %v988 = vpop.f32.mrf.mxu0
  %v989 = vadd.f32 %v780, %v988
  %990 = vmatmul.f32.gmra.mxu0 %v365
  %v991 = vpop.f32.mrf.mxu0
  %v992 = vadd.f32 %v783, %v991
  %993 = vmatmul.f32.gmra.mxu0 %v368
  %v994 = vpop.f32.mrf.mxu0
  %v995 = vadd.f32 %v786, %v994
  %996 = vmatmul.f32.gmra.mxu0 %v371
  %v997 = vpop.f32.mrf.mxu0
  %v998 = vadd.f32 %v789, %v997
  %999 = vmatmul.f32.gmra.mxu0 %v374
  %v1000 = vpop.f32.mrf.mxu0
  %v1001 = vadd.f32 %v792, %v1000
  %1002 = vmatmul.f32.gmra.mxu0 %v377
  %v1003 = vpop.f32.mrf.mxu0
  %v1004 = vadd.f32 %v795, %v1003
  %1005 = vmatmul.f32.gmra.mxu0 %v380
  %v1006 = vpop.f32.mrf.mxu0
  %v1007 = vadd.f32 %v798, %v1006
  %1008 = vmatmul.f32.gmra.mxu0 %v383
  %v1009 = vpop.f32.mrf.mxu0
  %v1010 = vadd.f32 %v801, %v1009
  %1011 = vmatmul.f32.gmra.mxu0 %v386
  %v1012 = vpop.f32.mrf.mxu0
  %v1013 = vadd.f32 %v804, %v1012
  %1014 = vmatmul.f32.gmra.mxu0 %v389
  %v1015 = vpop.f32.mrf.mxu0
  %v1016 = vadd.f32 %v807, %v1015
  %1017 = vmatmul.f32.gmra.mxu0 %v392
  %v1018 = vpop.f32.mrf.mxu0
  %v1019 = vadd.f32 %v810, %v1018
  %1020 = vmatmul.f32.gmra.mxu0 %v395
  %v1021 = vpop.f32.mrf.mxu0
  %v1022 = vadd.f32 %v813, %v1021
  %1023 = vmatmul.f32.gmra.mxu0 %v398
  %v1024 = vpop.f32.mrf.mxu0
  %v1025 = vadd.f32 %v816, %v1024
  %1026 = vmatmul.f32.gmra.mxu0 %v401
  %v1027 = vpop.f32.mrf.mxu0
  %v1028 = vadd.f32 %v819, %v1027
  %1029 = vmatmul.f32.gmra.mxu0 %v404
  %v1030 = vpop.f32.mrf.mxu0
  %v1031 = vadd.f32 %v822, %v1030
  %1032 = vmatmul.f32.gmra.mxu0 %v407
  %v1033 = vpop.f32.mrf.mxu0
  %v1034 = vadd.f32 %v825, %v1033
  %1035 = vmatmul.f32.gmra.mxu0 %v410
  %v1036 = vpop.f32.mrf.mxu0
  %v1037 = vadd.f32 %v828, %v1036
  %1038 = vmatmul.f32.gmra.mxu0 %v413
  %v1039 = vpop.f32.mrf.mxu0
  %v1040 = vadd.f32 %v831, %v1039
  %1041 = vmatmul.f32.gmra.mxu0 %v416
  %v1042 = vpop.f32.mrf.mxu0
  %v1043 = vadd.f32 %v834, %v1042
  %1044 = vmatmul.f32.gmra.mxu0 %v419
  %v1045 = vpop.f32.mrf.mxu0
  %v1046 = vadd.f32 %v837, %v1045
  %1047 = vmatmul.f32.gmra.mxu0 %v422
  %v1048 = vpop.f32.mrf.mxu0
  %v1049 = vadd.f32 %v840, %v1048
  %1050 = vmatmul.f32.gmra.mxu0 %v425
  %v1051 = vpop.f32.mrf.mxu0
  %v1052 = vadd.f32 %v843, %v1051
  %1053 = vmatmul.f32.gmra.mxu0 %v428
  %v1054 = vpop.f32.mrf.mxu0
  %v1055 = vadd.f32 %v846, %v1054
  %1056 = vmatmul.f32.gmra.mxu0 %v431
  %v1057 = vpop.f32.mrf.mxu0
  %v1058 = vadd.f32 %v849, %v1057
  %1059 = vmatmul.f32.gmra.mxu0 %v434
  %v1060 = vpop.f32.mrf.mxu0
  %v1061 = vadd.f32 %v852, %v1060
  %1062 = vmatmul.f32.gmra.mxu0 %v437
  %v1063 = vpop.f32.mrf.mxu0
  %v1064 = vadd.f32 %v855, %v1063
  %1065 = vdwg.mxu0
  %v1066 = vmax.f32 %v875, 0.0
  %v1067 = vmax.f32 %v878, 0.0
  %v1068 = vmax.f32 %v881, 0.0
  %v1069 = vmax.f32 %v884, 0.0
  %v1070 = vmax.f32 %v887, 0.0
  %v1071 = vmax.f32 %v890, 0.0
  %v1072 = vmax.f32 %v893, 0.0
  %v1073 = vmax.f32 %v896, 0.0
  %v1074 = vmax.f32 %v899, 0.0
  %v1075 = vmax.f32 %v902, 0.0
  %v1076 = vmax.f32 %v905, 0.0
  %v1077 = vmax.f32 %v908, 0.0
  %v1078 = vmax.f32 %v911, 0.0
  %v1079 = vmax.f32 %v914, 0.0
  %v1080 = vmax.f32 %v917, 0.0
  %v1081 = vmax.f32 %v920, 0.0
  %v1082 = vmax.f32 %v923, 0.0
  %v1083 = vmax.f32 %v926, 0.0
  %v1084 = vmax.f32 %v929, 0.0
  %v1085 = vmax.f32 %v932, 0.0
  %v1086 = vmax.f32 %v935, 0.0
  %v1087 = vmax.f32 %v938, 0.0
  %v1088 = vmax.f32 %v941, 0.0
  %v1089 = vmax.f32 %v944, 0.0
  %v1090 = vmax.f32 %v947, 0.0
  %v1091 = vmax.f32 %v950, 0.0
  %v1092 = vmax.f32 %v953, 0.0
  %v1093 = vmax.f32 %v956, 0.0
  %v1094 = vmax.f32 %v959, 0.0
  %v1095 = vmax.f32 %v962, 0.0
  %v1096 = vmax.f32 %v965, 0.0
  %v1097 = vmax.f32 %v968, 0.0
  %v1098 = vmax.f32 %v971, 0.0
  %v1099 = vmax.f32 %v974, 0.0
  %v1100 = vmax.f32 %v977, 0.0
  %v1101 = vmax.f32 %v980, 0.0
  %v1102 = vmax.f32 %v983, 0.0
  %v1103 = vmax.f32 %v986, 0.0
  %v1104 = vmax.f32 %v989, 0.0
  %v1105 = vmax.f32 %v992, 0.0
  %v1106 = vmax.f32 %v995, 0.0
  %v1107 = vmax.f32 %v998, 0.0
  %v1108 = vmax.f32 %v1001, 0.0
  %v1109 = vmax.f32 %v1004, 0.0
  %v1110 = vmax.f32 %v1007, 0.0
  %v1111 = vmax.f32 %v1010, 0.0
  %v1112 = vmax.f32 %v1013, 0.0
  %v1113 = vmax.f32 %v1016, 0.0
  %v1114 = vmax.f32 %v1019, 0.0
  %v1115 = vmax.f32 %v1022, 0.0
  %v1116 = vmax.f32 %v1025, 0.0
  %v1117 = vmax.f32 %v1028, 0.0
  %v1118 = vmax.f32 %v1031, 0.0
  %v1119 = vmax.f32 %v1034, 0.0
  %v1120 = vmax.f32 %v1037, 0.0
  %v1121 = vmax.f32 %v1040, 0.0
  %v1122 = vmax.f32 %v1043, 0.0
  %v1123 = vmax.f32 %v1046, 0.0
  %v1124 = vmax.f32 %v1049, 0.0
  %v1125 = vmax.f32 %v1052, 0.0
  %v1126 = vmax.f32 %v1055, 0.0
  %v1127 = vmax.f32 %v1058, 0.0
  %v1128 = vmax.f32 %v1061, 0.0
  %v1129 = vmax.f32 %v1064, 0.0
  %1130 = vst.msk [vmem:[%s3] sm:$0xff] %vm246, %v1066
  %1131 = vst.msk [vmem:[%s3 + $0x8] sm:$0xff] %vm246, %v1067
  %1132 = vst.msk [vmem:[%s3 + $0x10] sm:$0xff] %vm246, %v1068
  %1133 = vst.msk [vmem:[%s3 + $0x18] sm:$0xff] %vm246, %v1069
  %1134 = vst.msk [vmem:[%s3 + $0x20] sm:$0xff] %vm246, %v1070
  %1135 = vst.msk [vmem:[%s3 + $0x28] sm:$0xff] %vm246, %v1071
  %1136 = vst.msk [vmem:[%s3 + $0x30] sm:$0xff] %vm246, %v1072
  %1137 = vst.msk [vmem:[%s3 + $0x38] sm:$0xff] %vm246, %v1073
  %1138 = vst.msk [vmem:[%s3 + $0x40] sm:$0xff] %vm246, %v1074
  %1139 = vst.msk [vmem:[%s3 + $0x48] sm:$0xff] %vm246, %v1075
  %1140 = vst.msk [vmem:[%s3 + $0x50] sm:$0xff] %vm246, %v1076
  %1141 = vst.msk [vmem:[%s3 + $0x58] sm:$0xff] %vm246, %v1077
  %1142 = vst.msk [vmem:[%s3 + $0x60] sm:$0xff] %vm246, %v1078
  %1143 = vst.msk [vmem:[%s3 + $0x68] sm:$0xff] %vm246, %v1079
  %1144 = vst.msk [vmem:[%s3 + $0x70] sm:$0xff] %vm246, %v1080
  %1145 = vst.msk [vmem:[%s3 + $0x78] sm:$0xff] %vm246, %v1081
  %1146 = vst.msk [vmem:[%s3 + $0x80] sm:$0xff] %vm246, %v1082
  %1147 = vst.msk [vmem:[%s3 + $0x88] sm:$0xff] %vm246, %v1083
  %1148 = vst.msk [vmem:[%s3 + $0x90] sm:$0xff] %vm246, %v1084
  %1149 = vst.msk [vmem:[%s3 + $0x98] sm:$0xff] %vm246, %v1085
  %1150 = vst.msk [vmem:[%s3 + $0xa0] sm:$0xff] %vm246, %v1086
  %1151 = vst.msk [vmem:[%s3 + $0xa8] sm:$0xff] %vm246, %v1087
  %1152 = vst.msk [vmem:[%s3 + $0xb0] sm:$0xff] %vm246, %v1088
  %1153 = vst.msk [vmem:[%s3 + $0xb8] sm:$0xff] %vm246, %v1089
  %1154 = vst.msk [vmem:[%s3 + $0xc0] sm:$0xff] %vm246, %v1090
  %1155 = vst.msk [vmem:[%s3 + $0xc8] sm:$0xff] %vm246, %v1091
  %1156 = vst.msk [vmem:[%s3 + $0xd0] sm:$0xff] %vm246, %v1092
  %1157 = vst.msk [vmem:[%s3 + $0xd8] sm:$0xff] %vm246, %v1093
  %1158 = vst.msk [vmem:[%s3 + $0xe0] sm:$0xff] %vm246, %v1094
  %1159 = vst.msk [vmem:[%s3 + $0xe8] sm:$0xff] %vm246, %v1095
  %1160 = vst.msk [vmem:[%s3 + $0xf0] sm:$0xff] %vm246, %v1096
  %1161 = vst.msk [vmem:[%s3 + $0xf8] sm:$0xff] %vm246, %v1097
  %1162 = vst.msk [vmem:[%s3 + $0x100] sm:$0xff] %vm246, %v1098
  %1163 = vst.msk [vmem:[%s3 + $0x108] sm:$0xff] %vm246, %v1099
  %1164 = vst.msk [vmem:[%s3 + $0x110] sm:$0xff] %vm246, %v1100
  %1165 = vst.msk [vmem:[%s3 + $0x118] sm:$0xff] %vm246, %v1101
  %1166 = vst.msk [vmem:[%s3 + $0x120] sm:$0xff] %vm246, %v1102
  %1167 = vst.msk [vmem:[%s3 + $0x128] sm:$0xff] %vm246, %v1103
  %1168 = vst.msk [vmem:[%s3 + $0x130] sm:$0xff] %vm246, %v1104
  %1169 = vst.msk [vmem:[%s3 + $0x138] sm:$0xff] %vm246, %v1105
  %1170 = vst.msk [vmem:[%s3 + $0x140] sm:$0xff] %vm246, %v1106
  %1171 = vst.msk [vmem:[%s3 + $0x148] sm:$0xff] %vm246, %v1107
  %1172 = vst.msk [vmem:[%s3 + $0x150] sm:$0xff] %vm246, %v1108
  %1173 = vst.msk [vmem:[%s3 + $0x158] sm:$0xff] %vm246, %v1109
  %1174 = vst.msk [vmem:[%s3 + $0x160] sm:$0xff] %vm246, %v1110
  %1175 = vst.msk [vmem:[%s3 + $0x168] sm:$0xff] %vm246, %v1111
  %1176 = vst.msk [vmem:[%s3 + $0x170] sm:$0xff] %vm246, %v1112
  %1177 = vst.msk [vmem:[%s3 + $0x178] sm:$0xff] %vm246, %v1113
  %1178 = vst.msk [vmem:[%s3 + $0x180] sm:$0xff] %vm246, %v1114
  %1179 = vst.msk [vmem:[%s3 + $0x188] sm:$0xff] %vm246, %v1115
  %1180 = vst.msk [vmem:[%s3 + $0x190] sm:$0xff] %vm246, %v1116
  %1181 = vst.msk [vmem:[%s3 + $0x198] sm:$0xff] %vm246, %v1117
  %1182 = vst.msk [vmem:[%s3 + $0x1a0] sm:$0xff] %vm246, %v1118
  %1183 = vst.msk [vmem:[%s3 + $0x1a8] sm:$0xff] %vm246, %v1119
  %1184 = vst.msk [vmem:[%s3 + $0x1b0] sm:$0xff] %vm246, %v1120
  %1185 = vst.msk [vmem:[%s3 + $0x1b8] sm:$0xff] %vm246, %v1121
  %1186 = vst.msk [vmem:[%s3 + $0x1c0] sm:$0xff] %vm246, %v1122
  %1187 = vst.msk [vmem:[%s3 + $0x1c8] sm:$0xff] %vm246, %v1123
  %1188 = vst.msk [vmem:[%s3 + $0x1d0] sm:$0xff] %vm246, %v1124
  %1189 = vst.msk [vmem:[%s3 + $0x1d8] sm:$0xff] %vm246, %v1125
  %1190 = vst.msk [vmem:[%s3 + $0x1e0] sm:$0xff] %vm246, %v1126
  %1191 = vst.msk [vmem:[%s3 + $0x1e8] sm:$0xff] %vm246, %v1127
  %1192 = vst.msk [vmem:[%s3 + $0x1f0] sm:$0xff] %vm246, %v1128
  %1193 = vst.msk [vmem:[%s3 + $0x1f8] sm:$0xff] %vm246, %v1129
  // Predicated region
  $region14: #{ggc_forward.5} parent=0 // pred_check
    _
  $region15: #{ggc_forward.5} parent=0 // pred_check_branch
    %1195 = sbr.rel (0) target = $region17
  $region16: #{ggc_forward.5} parent=0 // pred_region
    _
  $region17: #{ggc_forward.5} parent=0 // pred_fallthru
    _
  // Predicated region
  $region18: #{ggc_forward.5} parent=0 // pred_check
    _
  $region19: #{ggc_forward.5} parent=0 // pred_check_branch
    %1197 = sbr.rel (0) target = $region21
  $region20: #{ggc_forward.5} parent=0 // pred_region
    _
  $region21: #{ggc_forward.5} parent=0 // pred_fallthru
    _

// kernel: ggc_forward.6
$region0: #{ggc_forward.6}
  #allocation0 [shape = 'u32[]', space=smem, size = 0x4, offset = 0x4, fixed_abs, tag = 'smem constant byte address 0x4 - core index']
  #allocation1 [shape = 'u32[72,128]{1,0:T(1,128)}', space=vmem, size = 0x9000, scoped, tag = 'internal scratch']
  #allocation2 [shape = 'f32[1,1]{1,0:T(1,128)S(1)}', space=vmem, size = 0x200, scoped, tag = 'scoped memory for ggc_forward.6']
  %s0 = inlined_call_operand.vmem [shape: f32[512,288], index: 0, kind: input, shape index: {}]
  %s1 = inlined_call_operand.vmem [shape: f32[288,1], index: 1, kind: input, shape index: {}]
  %s2 = inlined_call_operand.<no memory space> [shape: f32[1,1], index: 2, kind: input, shape index: {}]
  %s3 = inlined_call_operand.hbm [shape: f32[1,1], index: 3, kind: output, shape index: {}]
  %s4 = sld [smem:[#allocation0]]
  $region30: #{ggc_forward.6} parent=0
    _
  %s6 = ssub.s32 1, %s4
  %s7 = scalar_select 0, %s6, %s4
  %v8 = vstv %s2
  %9 = vst [vmem:[#allocation2] sm:$0x1] %v8
  $region1: #{ggc_forward.6} parent=0
    #allocation3 [shape = 'u8[512]{0}', space=vmem, size = 0x400, scoped, tag = 'output window, operand 0, single buffered']
    #allocation4 [shape = 's32[1]{0}', space=sflag, size = 0x4, scoped, tag = 'scoped memory for ggc_forward.6']
    %10 = vsyncpa [#allocation4], 0
    // Predicated region
    $region2: #{ggc_forward.6} parent=1 // pred_check
      _
    $region3: #{ggc_forward.6} parent=1 // pred_check_branch
      %12 = sbr.rel (0) target = $region5
    $region4: #{ggc_forward.6} parent=1 // pred_region
      _
    $region5: #{ggc_forward.6} parent=1 // pred_fallthru
      _
    // Predicated region
    $region6: #{ggc_forward.6} parent=1 // pred_check
      _
    $region7: #{ggc_forward.6} parent=1 // pred_check_branch
      %14 = sbr.rel (0) target = $region9
    $region8: #{ggc_forward.6} parent=1 // pred_region
      _
    $region9: #{ggc_forward.6} parent=1 // pred_fallthru
      _
    // Predicated region
    $region10: #{ggc_forward.6} parent=1 // pred_check
      _
    $region11: #{ggc_forward.6} parent=1 // pred_check_branch
      %16 = sbr.rel (0) target = $region13
    $region12: #{ggc_forward.6} parent=1 // pred_region
      _
    $region13: #{ggc_forward.6} parent=1 // pred_fallthru
      _
    %p17 = scmp.eq.s32.totalorder 0, 0
    // Predicated region
    $region14: #{ggc_forward.6} parent=1 // pred_check
      %p18 = pneg %p17
    $region15: #{ggc_forward.6} parent=1 // pred_check_branch
      %20 = sbr.rel (%p18) target = $region17
    $region16: #{ggc_forward.6} parent=1 // pred_region
      %vm21 = vcmask 0
      %22 = vst.msk [vmem:[#allocation3] sm:$0x1] %vm21, 0.0
    $region17: #{ggc_forward.6} parent=1 // pred_fallthru
      _
    %v23 = vld [vmem:[%s0] sm:$0xff]
    %v24 = vld [vmem:[%s0 + $0x8] sm:$0xff]
    %v25 = vld [vmem:[%s0 + $0x10] sm:$0xff]
    %v26 = vld [vmem:[%s0 + $0x18] sm:$0xff]
    %v27 = vld [vmem:[%s0 + $0x20] sm:$0xff]
    %v28 = vld [vmem:[%s0 + $0x28] sm:$0xff]
    %v29 = vld [vmem:[%s0 + $0x30] sm:$0xff]
    %v30 = vld [vmem:[%s0 + $0x38] sm:$0xff]
    %v31 = vld [vmem:[%s0 + $0x40] sm:$0xff]
    %v32 = vld [vmem:[%s0 + $0x48] sm:$0xff]
    %v33 = vld [vmem:[%s0 + $0x50] sm:$0xff]
    %v34 = vld [vmem:[%s0 + $0x58] sm:$0xff]
    %v35 = vld [vmem:[%s0 + $0x60] sm:$0xff]
    %v36 = vld [vmem:[%s0 + $0x68] sm:$0xff]
    %v37 = vld [vmem:[%s0 + $0x70] sm:$0xff]
    %v38 = vld [vmem:[%s0 + $0x78] sm:$0xff]
    %v39 = vld [vmem:[%s0 + $0x80] sm:$0xff]
    %v40 = vld [vmem:[%s0 + $0x88] sm:$0xff]
    %v41 = vld [vmem:[%s0 + $0x90] sm:$0xff]
    %v42 = vld [vmem:[%s0 + $0x98] sm:$0xff]
    %v43 = vld [vmem:[%s0 + $0xa0] sm:$0xff]
    %v44 = vld [vmem:[%s0 + $0xa8] sm:$0xff]
    %v45 = vld [vmem:[%s0 + $0xb0] sm:$0xff]
    %v46 = vld [vmem:[%s0 + $0xb8] sm:$0xff]
    %v47 = vld [vmem:[%s0 + $0xc0] sm:$0xff]
    %v48 = vld [vmem:[%s0 + $0xc8] sm:$0xff]
    %v49 = vld [vmem:[%s0 + $0xd0] sm:$0xff]
    %v50 = vld [vmem:[%s0 + $0xd8] sm:$0xff]
    %v51 = vld [vmem:[%s0 + $0xe0] sm:$0xff]
    %v52 = vld [vmem:[%s0 + $0xe8] sm:$0xff]
    %v53 = vld [vmem:[%s0 + $0xf0] sm:$0xff]
    %v54 = vld [vmem:[%s0 + $0xf8] sm:$0xff]
    %v55 = vld [vmem:[%s0 + $0x100] sm:$0xff]
    %v56 = vld [vmem:[%s0 + $0x108] sm:$0xff]
    %v57 = vld [vmem:[%s0 + $0x110] sm:$0xff]
    %v58 = vld [vmem:[%s0 + $0x118] sm:$0xff]
    %v59 = vld [vmem:[%s0 + $0x120] sm:$0xff]
    %v60 = vld [vmem:[%s0 + $0x128] sm:$0xff]
    %v61 = vld [vmem:[%s0 + $0x130] sm:$0xff]
    %v62 = vld [vmem:[%s0 + $0x138] sm:$0xff]
    %v63 = vld [vmem:[%s0 + $0x140] sm:$0xff]
    %v64 = vld [vmem:[%s0 + $0x148] sm:$0xff]
    %v65 = vld [vmem:[%s0 + $0x150] sm:$0xff]
    %v66 = vld [vmem:[%s0 + $0x158] sm:$0xff]
    %v67 = vld [vmem:[%s0 + $0x160] sm:$0xff]
    %v68 = vld [vmem:[%s0 + $0x168] sm:$0xff]
    %v69 = vld [vmem:[%s0 + $0x170] sm:$0xff]
    %v70 = vld [vmem:[%s0 + $0x178] sm:$0xff]
    %v71 = vld [vmem:[%s0 + $0x180] sm:$0xff]
    %v72 = vld [vmem:[%s0 + $0x188] sm:$0xff]
    %v73 = vld [vmem:[%s0 + $0x190] sm:$0xff]
    %v74 = vld [vmem:[%s0 + $0x198] sm:$0xff]
    %v75 = vld [vmem:[%s0 + $0x1a0] sm:$0xff]
    %v76 = vld [vmem:[%s0 + $0x1a8] sm:$0xff]
    %v77 = vld [vmem:[%s0 + $0x1b0] sm:$0xff]
    %v78 = vld [vmem:[%s0 + $0x1b8] sm:$0xff]
    %v79 = vld [vmem:[%s0 + $0x1c0] sm:$0xff]
    %v80 = vld [vmem:[%s0 + $0x1c8] sm:$0xff]
    %v81 = vld [vmem:[%s0 + $0x1d0] sm:$0xff]
    %v82 = vld [vmem:[%s0 + $0x1d8] sm:$0xff]
    %v83 = vld [vmem:[%s0 + $0x1e0] sm:$0xff]
    %v84 = vld [vmem:[%s0 + $0x1e8] sm:$0xff]
    %v85 = vld [vmem:[%s0 + $0x1f0] sm:$0xff]
    %v86 = vld [vmem:[%s0 + $0x1f8] sm:$0xff]
    %v87 = vld [vmem:[%s0 + $0x200] sm:$0xff]
    %v88 = vld [vmem:[%s0 + $0x208] sm:$0xff]
    %v89 = vld [vmem:[%s0 + $0x210] sm:$0xff]
    %v90 = vld [vmem:[%s0 + $0x218] sm:$0xff]
    %v91 = vld [vmem:[%s0 + $0x220] sm:$0xff]
    %v92 = vld [vmem:[%s0 + $0x228] sm:$0xff]
    %v93 = vld [vmem:[%s0 + $0x230] sm:$0xff]
    %v94 = vld [vmem:[%s0 + $0x238] sm:$0xff]
    %v95 = vld [vmem:[%s0 + $0x240] sm:$0xff]
    %v96 = vld [vmem:[%s0 + $0x248] sm:$0xff]
    %v97 = vld [vmem:[%s0 + $0x250] sm:$0xff]
    %v98 = vld [vmem:[%s0 + $0x258] sm:$0xff]
    %v99 = vld [vmem:[%s0 + $0x260] sm:$0xff]
    %v100 = vld [vmem:[%s0 + $0x268] sm:$0xff]
    %v101 = vld [vmem:[%s0 + $0x270] sm:$0xff]
    %v102 = vld [vmem:[%s0 + $0x278] sm:$0xff]
    %v103 = vld [vmem:[%s0 + $0x280] sm:$0xff]
    %v104 = vld [vmem:[%s0 + $0x288] sm:$0xff]
    %v105 = vld [vmem:[%s0 + $0x290] sm:$0xff]
    %v106 = vld [vmem:[%s0 + $0x298] sm:$0xff]
    %v107 = vld [vmem:[%s0 + $0x2a0] sm:$0xff]
    %v108 = vld [vmem:[%s0 + $0x2a8] sm:$0xff]
    %v109 = vld [vmem:[%s0 + $0x2b0] sm:$0xff]
    %v110 = vld [vmem:[%s0 + $0x2b8] sm:$0xff]
    %v111 = vld [vmem:[%s0 + $0x2c0] sm:$0xff]
    %v112 = vld [vmem:[%s0 + $0x2c8] sm:$0xff]
    %v113 = vld [vmem:[%s0 + $0x2d0] sm:$0xff]
    %v114 = vld [vmem:[%s0 + $0x2d8] sm:$0xff]
    %v115 = vld [vmem:[%s0 + $0x2e0] sm:$0xff]
    %v116 = vld [vmem:[%s0 + $0x2e8] sm:$0xff]
    %v117 = vld [vmem:[%s0 + $0x2f0] sm:$0xff]
    %v118 = vld [vmem:[%s0 + $0x2f8] sm:$0xff]
    %v119 = vld [vmem:[%s0 + $0x300] sm:$0xff]
    %v120 = vld [vmem:[%s0 + $0x308] sm:$0xff]
    %v121 = vld [vmem:[%s0 + $0x310] sm:$0xff]
    %v122 = vld [vmem:[%s0 + $0x318] sm:$0xff]
    %v123 = vld [vmem:[%s0 + $0x320] sm:$0xff]
    %v124 = vld [vmem:[%s0 + $0x328] sm:$0xff]
    %v125 = vld [vmem:[%s0 + $0x330] sm:$0xff]
    %v126 = vld [vmem:[%s0 + $0x338] sm:$0xff]
    %v127 = vld [vmem:[%s0 + $0x340] sm:$0xff]
    %v128 = vld [vmem:[%s0 + $0x348] sm:$0xff]
    %v129 = vld [vmem:[%s0 + $0x350] sm:$0xff]
    %v130 = vld [vmem:[%s0 + $0x358] sm:$0xff]
    %v131 = vld [vmem:[%s0 + $0x360] sm:$0xff]
    %v132 = vld [vmem:[%s0 + $0x368] sm:$0xff]
    %v133 = vld [vmem:[%s0 + $0x370] sm:$0xff]
    %v134 = vld [vmem:[%s0 + $0x378] sm:$0xff]
    %v135 = vld [vmem:[%s0 + $0x380] sm:$0xff]
    %v136 = vld [vmem:[%s0 + $0x388] sm:$0xff]
    %v137 = vld [vmem:[%s0 + $0x390] sm:$0xff]
    %v138 = vld [vmem:[%s0 + $0x398] sm:$0xff]
    %v139 = vld [vmem:[%s0 + $0x3a0] sm:$0xff]
    %v140 = vld [vmem:[%s0 + $0x3a8] sm:$0xff]
    %v141 = vld [vmem:[%s0 + $0x3b0] sm:$0xff]
    %v142 = vld [vmem:[%s0 + $0x3b8] sm:$0xff]
    %v143 = vld [vmem:[%s0 + $0x3c0] sm:$0xff]
    %v144 = vld [vmem:[%s0 + $0x3c8] sm:$0xff]
    %v145 = vld [vmem:[%s0 + $0x3d0] sm:$0xff]
    %v146 = vld [vmem:[%s0 + $0x3d8] sm:$0xff]
    %v147 = vld [vmem:[%s0 + $0x3e0] sm:$0xff]
    %v148 = vld [vmem:[%s0 + $0x3e8] sm:$0xff]
    %v149 = vld [vmem:[%s0 + $0x3f0] sm:$0xff]
    %v150 = vld [vmem:[%s0 + $0x3f8] sm:$0xff]
    %v151 = vld [vmem:[%s0 + $0x400] sm:$0xff]
    %v152 = vld [vmem:[%s0 + $0x408] sm:$0xff]
    %v153 = vld [vmem:[%s0 + $0x410] sm:$0xff]
    %v154 = vld [vmem:[%s0 + $0x418] sm:$0xff]
    %v155 = vld [vmem:[%s0 + $0x420] sm:$0xff]
    %v156 = vld [vmem:[%s0 + $0x428] sm:$0xff]
    %v157 = vld [vmem:[%s0 + $0x430] sm:$0xff]
    %v158 = vld [vmem:[%s0 + $0x438] sm:$0xff]
    %v159 = vld [vmem:[%s0 + $0x440] sm:$0xff]
    %v160 = vld [vmem:[%s0 + $0x448] sm:$0xff]
    %v161 = vld [vmem:[%s0 + $0x450] sm:$0xff]
    %v162 = vld [vmem:[%s0 + $0x458] sm:$0xff]
    %v163 = vld [vmem:[%s0 + $0x460] sm:$0xff]
    %v164 = vld [vmem:[%s0 + $0x468] sm:$0xff]
    %v165 = vld [vmem:[%s0 + $0x470] sm:$0xff]
    %v166 = vld [vmem:[%s0 + $0x478] sm:$0xff]
    %v167 = vld [vmem:[%s0 + $0x480] sm:$0xff]
    %v168 = vld [vmem:[%s0 + $0x488] sm:$0xff]
    %v169 = vld [vmem:[%s0 + $0x490] sm:$0xff]
    %v170 = vld [vmem:[%s0 + $0x498] sm:$0xff]
    %v171 = vld [vmem:[%s0 + $0x4a0] sm:$0xff]
    %v172 = vld [vmem:[%s0 + $0x4a8] sm:$0xff]
    %v173 = vld [vmem:[%s0 + $0x4b0] sm:$0xff]
    %v174 = vld [vmem:[%s0 + $0x4b8] sm:$0xff]
    %v175 = vld [vmem:[%s0 + $0x4c0] sm:$0xff]
    %v176 = vld [vmem:[%s0 + $0x4c8] sm:$0xff]
    %v177 = vld [vmem:[%s0 + $0x4d0] sm:$0xff]
    %v178 = vld [vmem:[%s0 + $0x4d8] sm:$0xff]
    %v179 = vld [vmem:[%s0 + $0x4e0] sm:$0xff]
    %v180 = vld [vmem:[%s0 + $0x4e8] sm:$0xff]
    %v181 = vld [vmem:[%s0 + $0x4f0] sm:$0xff]
    %v182 = vld [vmem:[%s0 + $0x4f8] sm:$0xff]
    %v183 = vld [vmem:[%s0 + $0x500] sm:$0xff]
    %v184 = vld [vmem:[%s0 + $0x508] sm:$0xff]
    %v185 = vld [vmem:[%s0 + $0x510] sm:$0xff]
    %v186 = vld [vmem:[%s0 + $0x518] sm:$0xff]
    %v187 = vld [vmem:[%s0 + $0x520] sm:$0xff]
    %v188 = vld [vmem:[%s0 + $0x528] sm:$0xff]
    %v189 = vld [vmem:[%s0 + $0x530] sm:$0xff]
    %v190 = vld [vmem:[%s0 + $0x538] sm:$0xff]
    %v191 = vld [vmem:[%s0 + $0x540] sm:$0xff]
    %v192 = vld [vmem:[%s0 + $0x548] sm:$0xff]
    %v193 = vld [vmem:[%s0 + $0x550] sm:$0xff]
    %v194 = vld [vmem:[%s0 + $0x558] sm:$0xff]
    %v195 = vld [vmem:[%s0 + $0x560] sm:$0xff]
    %v196 = vld [vmem:[%s0 + $0x568] sm:$0xff]
    %v197 = vld [vmem:[%s0 + $0x570] sm:$0xff]
    %v198 = vld [vmem:[%s0 + $0x578] sm:$0xff]
    %v199 = vld [vmem:[%s0 + $0x580] sm:$0xff]
    %v200 = vld [vmem:[%s0 + $0x588] sm:$0xff]
    %v201 = vld [vmem:[%s0 + $0x590] sm:$0xff]
    %v202 = vld [vmem:[%s0 + $0x598] sm:$0xff]
    %v203 = vld [vmem:[%s0 + $0x5a0] sm:$0xff]
    %v204 = vld [vmem:[%s0 + $0x5a8] sm:$0xff]
    %v205 = vld [vmem:[%s0 + $0x5b0] sm:$0xff]
    %v206 = vld [vmem:[%s0 + $0x5b8] sm:$0xff]
    %v207 = vld [vmem:[%s0 + $0x5c0] sm:$0xff]
    %v208 = vld [vmem:[%s0 + $0x5c8] sm:$0xff]
    %v209 = vld [vmem:[%s0 + $0x5d0] sm:$0xff]
    %v210 = vld [vmem:[%s0 + $0x5d8] sm:$0xff]
    %v211 = vld [vmem:[%s0 + $0x5e0] sm:$0xff]
    %v212 = vld [vmem:[%s0 + $0x5e8] sm:$0xff]
    %v213 = vld [vmem:[%s0 + $0x5f0] sm:$0xff]
    %v214 = vld [vmem:[%s0 + $0x5f8] sm:$0xff]
    %v215 = vld [vmem:[%s1] sm:$0xff]
    %v216 = vld [vmem:[%s1 + $0x8] sm:$0xff]
    %v217 = vld [vmem:[%s1 + $0x10] sm:$0xff]
    %v218 = vld [vmem:[%s1 + $0x18] sm:$0xff]
    %v219 = vld [vmem:[%s1 + $0x20] sm:$0xff]
    %v220 = vld [vmem:[%s1 + $0x28] sm:$0xff]
    %v221 = vld [vmem:[%s1 + $0x30] sm:$0xff]
    %v222 = vld [vmem:[%s1 + $0x38] sm:$0xff]
    %v223 = vld [vmem:[%s1 + $0x40] sm:$0xff]
    %v224 = vld [vmem:[%s1 + $0x48] sm:$0xff]
    %v225 = vld [vmem:[%s1 + $0x50] sm:$0xff]
    %v226 = vld [vmem:[%s1 + $0x58] sm:$0xff]
    %v227 = vld [vmem:[%s1 + $0x60] sm:$0xff]
    %v228 = vld [vmem:[%s1 + $0x68] sm:$0xff]
    %v229 = vld [vmem:[%s1 + $0x70] sm:$0xff]
    %v230 = vld [vmem:[%s1 + $0x78] sm:$0xff]
    %v231 = vld [vmem:[%s1 + $0x80] sm:$0xff]
    %v232 = vld [vmem:[%s1 + $0x88] sm:$0xff]
    %v233 = vld [vmem:[%s1 + $0x90] sm:$0xff]
    %v234 = vld [vmem:[%s1 + $0x98] sm:$0xff]
    %v235 = vld [vmem:[%s1 + $0xa0] sm:$0xff]
    %v236 = vld [vmem:[%s1 + $0xa8] sm:$0xff]
    %v237 = vld [vmem:[%s1 + $0xb0] sm:$0xff]
    %v238 = vld [vmem:[%s1 + $0xb8] sm:$0xff]
    %v239 = vld [vmem:[%s1 + $0xc0] sm:$0xff]
    %v240 = vld [vmem:[%s1 + $0xc8] sm:$0xff]
    %v241 = vld [vmem:[%s1 + $0xd0] sm:$0xff]
    %v242 = vld [vmem:[%s1 + $0xd8] sm:$0xff]
    %v243 = vld [vmem:[%s1 + $0xe0] sm:$0xff]
    %v244 = vld [vmem:[%s1 + $0xe8] sm:$0xff]
    %v245 = vld [vmem:[%s1 + $0xf0] sm:$0xff]
    %v246 = vld [vmem:[%s1 + $0xf8] sm:$0xff]
    %v247 = vld [vmem:[%s1 + $0x100] sm:$0xff]
    %v248 = vld [vmem:[%s1 + $0x108] sm:$0xff]
    %v249 = vld [vmem:[%s1 + $0x110] sm:$0xff]
    %v250 = vld [vmem:[%s1 + $0x118] sm:$0xff]
    %v251 = vld [vmem:[#allocation2] sm:$0x1]
    %v253 = vperm.slane %v251, 0
    %vm255 = vcmask 261120
    %v257 = vsel %vm255, %v25, 0
    %v260 = vsel %vm255, %v28, 0
    %v263 = vsel %vm255, %v31, 0
    %v266 = vsel %vm255, %v34, 0
    %v269 = vsel %vm255, %v37, 0
    %v272 = vsel %vm255, %v40, 0
    %v275 = vsel %vm255, %v43, 0
    %v278 = vsel %vm255, %v46, 0
    %v281 = vsel %vm255, %v49, 0
    %v284 = vsel %vm255, %v52, 0
    %v287 = vsel %vm255, %v55, 0
    %v290 = vsel %vm255, %v58, 0
    %v293 = vsel %vm255, %v61, 0
    %v296 = vsel %vm255, %v64, 0
    %v299 = vsel %vm255, %v67, 0
    %v302 = vsel %vm255, %v70, 0
    %v305 = vsel %vm255, %v73, 0
    %v308 = vsel %vm255, %v76, 0
    %v311 = vsel %vm255, %v79, 0
    %v314 = vsel %vm255, %v82, 0
    %v317 = vsel %vm255, %v85, 0
    %v320 = vsel %vm255, %v88, 0
    %v323 = vsel %vm255, %v91, 0
    %v326 = vsel %vm255, %v94, 0
    %v329 = vsel %vm255, %v97, 0
    %v332 = vsel %vm255, %v100, 0
    %v335 = vsel %vm255, %v103, 0
    %v338 = vsel %vm255, %v106, 0
    %v341 = vsel %vm255, %v109, 0
    %v344 = vsel %vm255, %v112, 0
    %v347 = vsel %vm255, %v115, 0
    %v350 = vsel %vm255, %v118, 0
    %v353 = vsel %vm255, %v121, 0
    %v356 = vsel %vm255, %v124, 0
    %v359 = vsel %vm255, %v127, 0
    %v362 = vsel %vm255, %v130, 0
    %v365 = vsel %vm255, %v133, 0
    %v368 = vsel %vm255, %v136, 0
    %v371 = vsel %vm255, %v139, 0
    %v374 = vsel %vm255, %v142, 0
    %v377 = vsel %vm255, %v145, 0
    %v380 = vsel %vm255, %v148, 0
    %v383 = vsel %vm255, %v151, 0
    %v386 = vsel %vm255, %v154, 0
    %v389 = vsel %vm255, %v157, 0
    %v392 = vsel %vm255, %v160, 0
    %v395 = vsel %vm255, %v163, 0
    %v398 = vsel %vm255, %v166, 0
    %v401 = vsel %vm255, %v169, 0
    %v404 = vsel %vm255, %v172, 0
    %v407 = vsel %vm255, %v175, 0
    %v410 = vsel %vm255, %v178, 0
    %v413 = vsel %vm255, %v181, 0
    %v416 = vsel %vm255, %v184, 0
    %v419 = vsel %vm255, %v187, 0
    %v422 = vsel %vm255, %v190, 0
    %v425 = vsel %vm255, %v193, 0
    %v428 = vsel %vm255, %v196, 0
    %v431 = vsel %vm255, %v199, 0
    %v434 = vsel %vm255, %v202, 0
    %v437 = vsel %vm255, %v205, 0
    %v440 = vsel %vm255, %v208, 0
    %v443 = vsel %vm255, %v211, 0
    %v446 = vsel %vm255, %v214, 0
    %448 = vmatpush.msra.mxu0 %v230
    %449 = vmatpush.msra.mxu0 %v229
    %450 = vmatpush.msra.mxu0 %v228
    %451 = vmatpush.msra.mxu0 %v227
    %452 = vmatpush.msra.mxu0 %v226
    %453 = vmatpush.msra.mxu0 %v225
    %454 = vmatpush.msra.mxu0 %v224
    %455 = vmatpush.msra.mxu0 %v223
    %456 = vmatpush.msra.mxu0 %v222
    %457 = vmatpush.msra.mxu0 %v221
    %458 = vmatpush.msra.mxu0 %v220
    %459 = vmatpush.msra.mxu0 %v219
    %460 = vmatpush.msra.mxu0 %v218
    %461 = vmatpush.msra.mxu0 %v217
    %462 = vmatpush.msra.mxu0 %v216
    %463 = vmatpush.msra.mxu0 %v215
    %464 = vmatmul.f32.gmra.mxu0 %v23
    %v465 = vpop.f32.mrf.mxu0
    %v466 = vadd.f32 %v253, %v465
    %467 = vmatmul.f32.gmra.mxu0 %v26
    %v468 = vpop.f32.mrf.mxu0
    %v469 = vadd.f32 %v253, %v468
    %470 = vmatmul.f32.gmra.mxu0 %v29
    %v471 = vpop.f32.mrf.mxu0
    %v472 = vadd.f32 %v253, %v471
    %473 = vmatmul.f32.gmra.mxu0 %v32
    %v474 = vpop.f32.mrf.mxu0
    %v475 = vadd.f32 %v253, %v474
    %476 = vmatmul.f32.gmra.mxu0 %v35
    %v477 = vpop.f32.mrf.mxu0
    %v478 = vadd.f32 %v253, %v477
    %479 = vmatmul.f32.gmra.mxu0 %v38
    %v480 = vpop.f32.mrf.mxu0
    %v481 = vadd.f32 %v253, %v480
    %482 = vmatmul.f32.gmra.mxu0 %v41
    %v483 = vpop.f32.mrf.mxu0
    %v484 = vadd.f32 %v253, %v483
    %485 = vmatmul.f32.gmra.mxu0 %v44
    %v486 = vpop.f32.mrf.mxu0
    %v487 = vadd.f32 %v253, %v486
    %488 = vmatmul.f32.gmra.mxu0 %v47
    %v489 = vpop.f32.mrf.mxu0
    %v490 = vadd.f32 %v253, %v489
    %491 = vmatmul.f32.gmra.mxu0 %v50
    %v492 = vpop.f32.mrf.mxu0
    %v493 = vadd.f32 %v253, %v492
    %494 = vmatmul.f32.gmra.mxu0 %v53
    %v495 = vpop.f32.mrf.mxu0
    %v496 = vadd.f32 %v253, %v495
    %497 = vmatmul.f32.gmra.mxu0 %v56
    %v498 = vpop.f32.mrf.mxu0
    %v499 = vadd.f32 %v253, %v498
    %500 = vmatmul.f32.gmra.mxu0 %v59
    %v501 = vpop.f32.mrf.mxu0
    %v502 = vadd.f32 %v253, %v501
    %503 = vmatmul.f32.gmra.mxu0 %v62
    %v504 = vpop.f32.mrf.mxu0
    %v505 = vadd.f32 %v253, %v504
    %506 = vmatmul.f32.gmra.mxu0 %v65
    %v507 = vpop.f32.mrf.mxu0
    %v508 = vadd.f32 %v253, %v507
    %509 = vmatmul.f32.gmra.mxu0 %v68
    %v510 = vpop.f32.mrf.mxu0
    %v511 = vadd.f32 %v253, %v510
    %512 = vmatmul.f32.gmra.mxu0 %v71
    %v513 = vpop.f32.mrf.mxu0
    %v514 = vadd.f32 %v253, %v513
    %515 = vmatmul.f32.gmra.mxu0 %v74
    %v516 = vpop.f32.mrf.mxu0
    %v517 = vadd.f32 %v253, %v516
    %518 = vmatmul.f32.gmra.mxu0 %v77
    %v519 = vpop.f32.mrf.mxu0
    %v520 = vadd.f32 %v253, %v519
    %521 = vmatmul.f32.gmra.mxu0 %v80
    %v522 = vpop.f32.mrf.mxu0
    %v523 = vadd.f32 %v253, %v522
    %524 = vmatmul.f32.gmra.mxu0 %v83
    %v525 = vpop.f32.mrf.mxu0
    %v526 = vadd.f32 %v253, %v525
    %527 = vmatmul.f32.gmra.mxu0 %v86
    %v528 = vpop.f32.mrf.mxu0
    %v529 = vadd.f32 %v253, %v528
    %530 = vmatmul.f32.gmra.mxu0 %v89
    %v531 = vpop.f32.mrf.mxu0
    %v532 = vadd.f32 %v253, %v531
    %533 = vmatmul.f32.gmra.mxu0 %v92
    %v534 = vpop.f32.mrf.mxu0
    %v535 = vadd.f32 %v253, %v534
    %536 = vmatmul.f32.gmra.mxu0 %v95
    %v537 = vpop.f32.mrf.mxu0
    %v538 = vadd.f32 %v253, %v537
    %539 = vmatmul.f32.gmra.mxu0 %v98
    %v540 = vpop.f32.mrf.mxu0
    %v541 = vadd.f32 %v253, %v540
    %542 = vmatmul.f32.gmra.mxu0 %v101
    %v543 = vpop.f32.mrf.mxu0
    %v544 = vadd.f32 %v253, %v543
    %545 = vmatmul.f32.gmra.mxu0 %v104
    %v546 = vpop.f32.mrf.mxu0
    %v547 = vadd.f32 %v253, %v546
    %548 = vmatmul.f32.gmra.mxu0 %v107
    %v549 = vpop.f32.mrf.mxu0
    %v550 = vadd.f32 %v253, %v549
    %551 = vmatmul.f32.gmra.mxu0 %v110
    %v552 = vpop.f32.mrf.mxu0
    %v553 = vadd.f32 %v253, %v552
    %554 = vmatmul.f32.gmra.mxu0 %v113
    %v555 = vpop.f32.mrf.mxu0
    %v556 = vadd.f32 %v253, %v555
    %557 = vmatmul.f32.gmra.mxu0 %v116
    %v558 = vpop.f32.mrf.mxu0
    %v559 = vadd.f32 %v253, %v558
    %560 = vmatmul.f32.gmra.mxu0 %v119
    %v561 = vpop.f32.mrf.mxu0
    %v562 = vadd.f32 %v253, %v561
    %563 = vmatmul.f32.gmra.mxu0 %v122
    %v564 = vpop.f32.mrf.mxu0
    %v565 = vadd.f32 %v253, %v564
    %566 = vmatmul.f32.gmra.mxu0 %v125
    %v567 = vpop.f32.mrf.mxu0
    %v568 = vadd.f32 %v253, %v567
    %569 = vmatmul.f32.gmra.mxu0 %v128
    %v570 = vpop.f32.mrf.mxu0
    %v571 = vadd.f32 %v253, %v570
    %572 = vmatmul.f32.gmra.mxu0 %v131
    %v573 = vpop.f32.mrf.mxu0
    %v574 = vadd.f32 %v253, %v573
    %575 = vmatmul.f32.gmra.mxu0 %v134
    %v576 = vpop.f32.mrf.mxu0
    %v577 = vadd.f32 %v253, %v576
    %578 = vmatmul.f32.gmra.mxu0 %v137
    %v579 = vpop.f32.mrf.mxu0
    %v580 = vadd.f32 %v253, %v579
    %581 = vmatmul.f32.gmra.mxu0 %v140
    %v582 = vpop.f32.mrf.mxu0
    %v583 = vadd.f32 %v253, %v582
    %584 = vmatmul.f32.gmra.mxu0 %v143
    %v585 = vpop.f32.mrf.mxu0
    %v586 = vadd.f32 %v253, %v585
    %587 = vmatmul.f32.gmra.mxu0 %v146
    %v588 = vpop.f32.mrf.mxu0
    %v589 = vadd.f32 %v253, %v588
    %590 = vmatmul.f32.gmra.mxu0 %v149
    %v591 = vpop.f32.mrf.mxu0
    %v592 = vadd.f32 %v253, %v591
    %593 = vmatmul.f32.gmra.mxu0 %v152
    %v594 = vpop.f32.mrf.mxu0
    %v595 = vadd.f32 %v253, %v594
    %596 = vmatmul.f32.gmra.mxu0 %v155
    %v597 = vpop.f32.mrf.mxu0
    %v598 = vadd.f32 %v253, %v597
    %599 = vmatmul.f32.gmra.mxu0 %v158
    %v600 = vpop.f32.mrf.mxu0
    %v601 = vadd.f32 %v253, %v600
    %602 = vmatmul.f32.gmra.mxu0 %v161
    %v603 = vpop.f32.mrf.mxu0
    %v604 = vadd.f32 %v253, %v603
    %605 = vmatmul.f32.gmra.mxu0 %v164
    %v606 = vpop.f32.mrf.mxu0
    %v607 = vadd.f32 %v253, %v606
    %608 = vmatmul.f32.gmra.mxu0 %v167
    %v609 = vpop.f32.mrf.mxu0
    %v610 = vadd.f32 %v253, %v609
    %611 = vmatmul.f32.gmra.mxu0 %v170
    %v612 = vpop.f32.mrf.mxu0
    %v613 = vadd.f32 %v253, %v612
    %614 = vmatmul.f32.gmra.mxu0 %v173
    %v615 = vpop.f32.mrf.mxu0
    %v616 = vadd.f32 %v253, %v615
    %617 = vmatmul.f32.gmra.mxu0 %v176
    %v618 = vpop.f32.mrf.mxu0
    %v619 = vadd.f32 %v253, %v618
    %620 = vmatmul.f32.gmra.mxu0 %v179
    %v621 = vpop.f32.mrf.mxu0
    %v622 = vadd.f32 %v253, %v621
    %623 = vmatmul.f32.gmra.mxu0 %v182
    %v624 = vpop.f32.mrf.mxu0
    %v625 = vadd.f32 %v253, %v624
    %626 = vmatmul.f32.gmra.mxu0 %v185
    %v627 = vpop.f32.mrf.mxu0
    %v628 = vadd.f32 %v253, %v627
    %629 = vmatmul.f32.gmra.mxu0 %v188
    %v630 = vpop.f32.mrf.mxu0
    %v631 = vadd.f32 %v253, %v630
    %632 = vmatmul.f32.gmra.mxu0 %v191
    %v633 = vpop.f32.mrf.mxu0
    %v634 = vadd.f32 %v253, %v633
    %635 = vmatmul.f32.gmra.mxu0 %v194
    %v636 = vpop.f32.mrf.mxu0
    %v637 = vadd.f32 %v253, %v636
    %638 = vmatmul.f32.gmra.mxu0 %v197
    %v639 = vpop.f32.mrf.mxu0
    %v640 = vadd.f32 %v253, %v639
    %641 = vmatmul.f32.gmra.mxu0 %v200
    %v642 = vpop.f32.mrf.mxu0
    %v643 = vadd.f32 %v253, %v642
    %644 = vmatmul.f32.gmra.mxu0 %v203
    %v645 = vpop.f32.mrf.mxu0
    %v646 = vadd.f32 %v253, %v645
    %647 = vmatmul.f32.gmra.mxu0 %v206
    %v648 = vpop.f32.mrf.mxu0
    %v649 = vadd.f32 %v253, %v648
    %650 = vmatmul.f32.gmra.mxu0 %v209
    %v651 = vpop.f32.mrf.mxu0
    %v652 = vadd.f32 %v253, %v651
    %653 = vmatmul.f32.gmra.mxu0 %v212
    %v654 = vpop.f32.mrf.mxu0
    %v655 = vadd.f32 %v253, %v654
    %656 = vdwg.mxu0
    %657 = vmatpush.msra.mxu0 %v246
    %658 = vmatpush.msra.mxu0 %v245
    %659 = vmatpush.msra.mxu0 %v244
    %660 = vmatpush.msra.mxu0 %v243
    %661 = vmatpush.msra.mxu0 %v242
    %662 = vmatpush.msra.mxu0 %v241
    %663 = vmatpush.msra.mxu0 %v240
    %664 = vmatpush.msra.mxu0 %v239
    %665 = vmatpush.msra.mxu0 %v238
    %666 = vmatpush.msra.mxu0 %v237
    %667 = vmatpush.msra.mxu0 %v236
    %668 = vmatpush.msra.mxu0 %v235
    %669 = vmatpush.msra.mxu0 %v234
    %670 = vmatpush.msra.mxu0 %v233
    %671 = vmatpush.msra.mxu0 %v232
    %672 = vmatpush.msra.mxu0 %v231
    %673 = vmatmul.f32.gmra.mxu0 %v24
    %v674 = vpop.f32.mrf.mxu0
    %v675 = vadd.f32 %v466, %v674
    %676 = vmatmul.f32.gmra.mxu0 %v27
    %v677 = vpop.f32.mrf.mxu0
    %v678 = vadd.f32 %v469, %v677
    %679 = vmatmul.f32.gmra.mxu0 %v30
    %v680 = vpop.f32.mrf.mxu0
    %v681 = vadd.f32 %v472, %v680
    %682 = vmatmul.f32.gmra.mxu0 %v33
    %v683 = vpop.f32.mrf.mxu0
    %v684 = vadd.f32 %v475, %v683
    %685 = vmatmul.f32.gmra.mxu0 %v36
    %v686 = vpop.f32.mrf.mxu0
    %v687 = vadd.f32 %v478, %v686
    %688 = vmatmul.f32.gmra.mxu0 %v39
    %v689 = vpop.f32.mrf.mxu0
    %v690 = vadd.f32 %v481, %v689
    %691 = vmatmul.f32.gmra.mxu0 %v42
    %v692 = vpop.f32.mrf.mxu0
    %v693 = vadd.f32 %v484, %v692
    %694 = vmatmul.f32.gmra.mxu0 %v45
    %v695 = vpop.f32.mrf.mxu0
    %v696 = vadd.f32 %v487, %v695
    %697 = vmatmul.f32.gmra.mxu0 %v48
    %v698 = vpop.f32.mrf.mxu0
    %v699 = vadd.f32 %v490, %v698
    %700 = vmatmul.f32.gmra.mxu0 %v51
    %v701 = vpop.f32.mrf.mxu0
    %v702 = vadd.f32 %v493, %v701
    %703 = vmatmul.f32.gmra.mxu0 %v54
    %v704 = vpop.f32.mrf.mxu0
    %v705 = vadd.f32 %v496, %v704
    %706 = vmatmul.f32.gmra.mxu0 %v57
    %v707 = vpop.f32.mrf.mxu0
    %v708 = vadd.f32 %v499, %v707
    %709 = vmatmul.f32.gmra.mxu0 %v60
    %v710 = vpop.f32.mrf.mxu0
    %v711 = vadd.f32 %v502, %v710
    %712 = vmatmul.f32.gmra.mxu0 %v63
    %v713 = vpop.f32.mrf.mxu0
    %v714 = vadd.f32 %v505, %v713
    %715 = vmatmul.f32.gmra.mxu0 %v66
    %v716 = vpop.f32.mrf.mxu0
    %v717 = vadd.f32 %v508, %v716
    %718 = vmatmul.f32.gmra.mxu0 %v69
    %v719 = vpop.f32.mrf.mxu0
    %v720 = vadd.f32 %v511, %v719
    %721 = vmatmul.f32.gmra.mxu0 %v72
    %v722 = vpop.f32.mrf.mxu0
    %v723 = vadd.f32 %v514, %v722
    %724 = vmatmul.f32.gmra.mxu0 %v75
    %v725 = vpop.f32.mrf.mxu0
    %v726 = vadd.f32 %v517, %v725
    %727 = vmatmul.f32.gmra.mxu0 %v78
    %v728 = vpop.f32.mrf.mxu0
    %v729 = vadd.f32 %v520, %v728
    %730 = vmatmul.f32.gmra.mxu0 %v81
    %v731 = vpop.f32.mrf.mxu0
    %v732 = vadd.f32 %v523, %v731
    %733 = vmatmul.f32.gmra.mxu0 %v84
    %v734 = vpop.f32.mrf.mxu0
    %v735 = vadd.f32 %v526, %v734
    %736 = vmatmul.f32.gmra.mxu0 %v87
    %v737 = vpop.f32.mrf.mxu0
    %v738 = vadd.f32 %v529, %v737
    %739 = vmatmul.f32.gmra.mxu0 %v90
    %v740 = vpop.f32.mrf.mxu0
    %v741 = vadd.f32 %v532, %v740
    %742 = vmatmul.f32.gmra.mxu0 %v93
    %v743 = vpop.f32.mrf.mxu0
    %v744 = vadd.f32 %v535, %v743
    %745 = vmatmul.f32.gmra.mxu0 %v96
    %v746 = vpop.f32.mrf.mxu0
    %v747 = vadd.f32 %v538, %v746
    %748 = vmatmul.f32.gmra.mxu0 %v99
    %v749 = vpop.f32.mrf.mxu0
    %v750 = vadd.f32 %v541, %v749
    %751 = vmatmul.f32.gmra.mxu0 %v102
    %v752 = vpop.f32.mrf.mxu0
    %v753 = vadd.f32 %v544, %v752
    %754 = vmatmul.f32.gmra.mxu0 %v105
    %v755 = vpop.f32.mrf.mxu0
    %v756 = vadd.f32 %v547, %v755
    %757 = vmatmul.f32.gmra.mxu0 %v108
    %v758 = vpop.f32.mrf.mxu0
    %v759 = vadd.f32 %v550, %v758
    %760 = vmatmul.f32.gmra.mxu0 %v111
    %v761 = vpop.f32.mrf.mxu0
    %v762 = vadd.f32 %v553, %v761
    %763 = vmatmul.f32.gmra.mxu0 %v114
    %v764 = vpop.f32.mrf.mxu0
    %v765 = vadd.f32 %v556, %v764
    %766 = vmatmul.f32.gmra.mxu0 %v117
    %v767 = vpop.f32.mrf.mxu0
    %v768 = vadd.f32 %v559, %v767
    %769 = vmatmul.f32.gmra.mxu0 %v120
    %v770 = vpop.f32.mrf.mxu0
    %v771 = vadd.f32 %v562, %v770
    %772 = vmatmul.f32.gmra.mxu0 %v123
    %v773 = vpop.f32.mrf.mxu0
    %v774 = vadd.f32 %v565, %v773
    %775 = vmatmul.f32.gmra.mxu0 %v126
    %v776 = vpop.f32.mrf.mxu0
    %v777 = vadd.f32 %v568, %v776
    %778 = vmatmul.f32.gmra.mxu0 %v129
    %v779 = vpop.f32.mrf.mxu0
    %v780 = vadd.f32 %v571, %v779
    %781 = vmatmul.f32.gmra.mxu0 %v132
    %v782 = vpop.f32.mrf.mxu0
    %v783 = vadd.f32 %v574, %v782
    %784 = vmatmul.f32.gmra.mxu0 %v135
    %v785 = vpop.f32.mrf.mxu0
    %v786 = vadd.f32 %v577, %v785
    %787 = vmatmul.f32.gmra.mxu0 %v138
    %v788 = vpop.f32.mrf.mxu0
    %v789 = vadd.f32 %v580, %v788
    %790 = vmatmul.f32.gmra.mxu0 %v141
    %v791 = vpop.f32.mrf.mxu0
    %v792 = vadd.f32 %v583, %v791
    %793 = vmatmul.f32.gmra.mxu0 %v144
    %v794 = vpop.f32.mrf.mxu0
    %v795 = vadd.f32 %v586, %v794
    %796 = vmatmul.f32.gmra.mxu0 %v147
    %v797 = vpop.f32.mrf.mxu0
    %v798 = vadd.f32 %v589, %v797
    %799 = vmatmul.f32.gmra.mxu0 %v150
    %v800 = vpop.f32.mrf.mxu0
    %v801 = vadd.f32 %v592, %v800
    %802 = vmatmul.f32.gmra.mxu0 %v153
    %v803 = vpop.f32.mrf.mxu0
    %v804 = vadd.f32 %v595, %v803
    %805 = vmatmul.f32.gmra.mxu0 %v156
    %v806 = vpop.f32.mrf.mxu0
    %v807 = vadd.f32 %v598, %v806
    %808 = vmatmul.f32.gmra.mxu0 %v159
    %v809 = vpop.f32.mrf.mxu0
    %v810 = vadd.f32 %v601, %v809
    %811 = vmatmul.f32.gmra.mxu0 %v162
    %v812 = vpop.f32.mrf.mxu0
    %v813 = vadd.f32 %v604, %v812
    %814 = vmatmul.f32.gmra.mxu0 %v165
    %v815 = vpop.f32.mrf.mxu0
    %v816 = vadd.f32 %v607, %v815
    %817 = vmatmul.f32.gmra.mxu0 %v168
    %v818 = vpop.f32.mrf.mxu0
    %v819 = vadd.f32 %v610, %v818
    %820 = vmatmul.f32.gmra.mxu0 %v171
    %v821 = vpop.f32.mrf.mxu0
    %v822 = vadd.f32 %v613, %v821
    %823 = vmatmul.f32.gmra.mxu0 %v174
    %v824 = vpop.f32.mrf.mxu0
    %v825 = vadd.f32 %v616, %v824
    %826 = vmatmul.f32.gmra.mxu0 %v177
    %v827 = vpop.f32.mrf.mxu0
    %v828 = vadd.f32 %v619, %v827
    %829 = vmatmul.f32.gmra.mxu0 %v180
    %v830 = vpop.f32.mrf.mxu0
    %v831 = vadd.f32 %v622, %v830
    %832 = vmatmul.f32.gmra.mxu0 %v183
    %v833 = vpop.f32.mrf.mxu0
    %v834 = vadd.f32 %v625, %v833
    %835 = vmatmul.f32.gmra.mxu0 %v186
    %v836 = vpop.f32.mrf.mxu0
    %v837 = vadd.f32 %v628, %v836
    %838 = vmatmul.f32.gmra.mxu0 %v189
    %v839 = vpop.f32.mrf.mxu0
    %v840 = vadd.f32 %v631, %v839
    %841 = vmatmul.f32.gmra.mxu0 %v192
    %v842 = vpop.f32.mrf.mxu0
    %v843 = vadd.f32 %v634, %v842
    %844 = vmatmul.f32.gmra.mxu0 %v195
    %v845 = vpop.f32.mrf.mxu0
    %v846 = vadd.f32 %v637, %v845
    %847 = vmatmul.f32.gmra.mxu0 %v198
    %v848 = vpop.f32.mrf.mxu0
    %v849 = vadd.f32 %v640, %v848
    %850 = vmatmul.f32.gmra.mxu0 %v201
    %v851 = vpop.f32.mrf.mxu0
    %v852 = vadd.f32 %v643, %v851
    %853 = vmatmul.f32.gmra.mxu0 %v204
    %v854 = vpop.f32.mrf.mxu0
    %v855 = vadd.f32 %v646, %v854
    %856 = vmatmul.f32.gmra.mxu0 %v207
    %v857 = vpop.f32.mrf.mxu0
    %v858 = vadd.f32 %v649, %v857
    %859 = vmatmul.f32.gmra.mxu0 %v210
    %v860 = vpop.f32.mrf.mxu0
    %v861 = vadd.f32 %v652, %v860
    %862 = vmatmul.f32.gmra.mxu0 %v213
    %v863 = vpop.f32.mrf.mxu0
    %v864 = vadd.f32 %v655, %v863
    %865 = vdwg.mxu0
    %866 = vmatpush.msra.mxu0 0.0
    %867 = vmatpush.msra.mxu0 0.0
    %868 = vmatpush.msra.mxu0 0.0
    %869 = vmatpush.msra.mxu0 0.0
    %870 = vmatpush.msra.mxu0 0.0
    %871 = vmatpush.msra.mxu0 0.0
    %872 = vmatpush.msra.mxu0 0.0
    %873 = vmatpush.msra.mxu0 0.0
    %874 = vmatpush.msra.mxu0 0.0
    %875 = vmatpush.msra.mxu0 0.0
    %876 = vmatpush.msra.mxu0 0.0
    %877 = vmatpush.msra.mxu0 0.0
    %878 = vmatpush.msra.mxu0 %v250
    %879 = vmatpush.msra.mxu0 %v249
    %880 = vmatpush.msra.mxu0 %v248
    %881 = vmatpush.msra.mxu0 %v247
    %882 = vmatmul.f32.gmra.mxu0 %v257
    %v883 = vpop.f32.mrf.mxu0
    %v884 = vadd.f32 %v675, %v883
    %885 = vmatmul.f32.gmra.mxu0 %v260
    %v886 = vpop.f32.mrf.mxu0
    %v887 = vadd.f32 %v678, %v886
    %888 = vmatmul.f32.gmra.mxu0 %v263
    %v889 = vpop.f32.mrf.mxu0
    %v890 = vadd.f32 %v681, %v889
    %891 = vmatmul.f32.gmra.mxu0 %v266
    %v892 = vpop.f32.mrf.mxu0
    %v893 = vadd.f32 %v684, %v892
    %894 = vmatmul.f32.gmra.mxu0 %v269
    %v895 = vpop.f32.mrf.mxu0
    %v896 = vadd.f32 %v687, %v895
    %897 = vmatmul.f32.gmra.mxu0 %v272
    %v898 = vpop.f32.mrf.mxu0
    %v899 = vadd.f32 %v690, %v898
    %900 = vmatmul.f32.gmra.mxu0 %v275
    %v901 = vpop.f32.mrf.mxu0
    %v902 = vadd.f32 %v693, %v901
    %903 = vmatmul.f32.gmra.mxu0 %v278
    %v904 = vpop.f32.mrf.mxu0
    %v905 = vadd.f32 %v696, %v904
    %906 = vmatmul.f32.gmra.mxu0 %v281
    %v907 = vpop.f32.mrf.mxu0
    %v908 = vadd.f32 %v699, %v907
    %909 = vmatmul.f32.gmra.mxu0 %v284
    %v910 = vpop.f32.mrf.mxu0
    %v911 = vadd.f32 %v702, %v910
    %912 = vmatmul.f32.gmra.mxu0 %v287
    %v913 = vpop.f32.mrf.mxu0
    %v914 = vadd.f32 %v705, %v913
    %915 = vmatmul.f32.gmra.mxu0 %v290
    %v916 = vpop.f32.mrf.mxu0
    %v917 = vadd.f32 %v708, %v916
    %918 = vmatmul.f32.gmra.mxu0 %v293
    %v919 = vpop.f32.mrf.mxu0
    %v920 = vadd.f32 %v711, %v919
    %921 = vmatmul.f32.gmra.mxu0 %v296
    %v922 = vpop.f32.mrf.mxu0
    %v923 = vadd.f32 %v714, %v922
    %924 = vmatmul.f32.gmra.mxu0 %v299
    %v925 = vpop.f32.mrf.mxu0
    %v926 = vadd.f32 %v717, %v925
    %927 = vmatmul.f32.gmra.mxu0 %v302
    %v928 = vpop.f32.mrf.mxu0
    %v929 = vadd.f32 %v720, %v928
    %930 = vmatmul.f32.gmra.mxu0 %v305
    %v931 = vpop.f32.mrf.mxu0
    %v932 = vadd.f32 %v723, %v931
    %933 = vmatmul.f32.gmra.mxu0 %v308
    %v934 = vpop.f32.mrf.mxu0
    %v935 = vadd.f32 %v726, %v934
    %936 = vmatmul.f32.gmra.mxu0 %v311
    %v937 = vpop.f32.mrf.mxu0
    %v938 = vadd.f32 %v729, %v937
    %939 = vmatmul.f32.gmra.mxu0 %v314
    %v940 = vpop.f32.mrf.mxu0
    %v941 = vadd.f32 %v732, %v940
    %942 = vmatmul.f32.gmra.mxu0 %v317
    %v943 = vpop.f32.mrf.mxu0
    %v944 = vadd.f32 %v735, %v943
    %945 = vmatmul.f32.gmra.mxu0 %v320
    %v946 = vpop.f32.mrf.mxu0
    %v947 = vadd.f32 %v738, %v946
    %948 = vmatmul.f32.gmra.mxu0 %v323
    %v949 = vpop.f32.mrf.mxu0
    %v950 = vadd.f32 %v741, %v949
    %951 = vmatmul.f32.gmra.mxu0 %v326
    %v952 = vpop.f32.mrf.mxu0
    %v953 = vadd.f32 %v744, %v952
    %954 = vmatmul.f32.gmra.mxu0 %v329
    %v955 = vpop.f32.mrf.mxu0
    %v956 = vadd.f32 %v747, %v955
    %957 = vmatmul.f32.gmra.mxu0 %v332
    %v958 = vpop.f32.mrf.mxu0
    %v959 = vadd.f32 %v750, %v958
    %960 = vmatmul.f32.gmra.mxu0 %v335
    %v961 = vpop.f32.mrf.mxu0
    %v962 = vadd.f32 %v753, %v961
    %963 = vmatmul.f32.gmra.mxu0 %v338
    %v964 = vpop.f32.mrf.mxu0
    %v965 = vadd.f32 %v756, %v964
    %966 = vmatmul.f32.gmra.mxu0 %v341
    %v967 = vpop.f32.mrf.mxu0
    %v968 = vadd.f32 %v759, %v967
    %969 = vmatmul.f32.gmra.mxu0 %v344
    %v970 = vpop.f32.mrf.mxu0
    %v971 = vadd.f32 %v762, %v970
    %972 = vmatmul.f32.gmra.mxu0 %v347
    %v973 = vpop.f32.mrf.mxu0
    %v974 = vadd.f32 %v765, %v973
    %975 = vmatmul.f32.gmra.mxu0 %v350
    %v976 = vpop.f32.mrf.mxu0
    %v977 = vadd.f32 %v768, %v976
    %978 = vmatmul.f32.gmra.mxu0 %v353
    %v979 = vpop.f32.mrf.mxu0
    %v980 = vadd.f32 %v771, %v979
    %981 = vmatmul.f32.gmra.mxu0 %v356
    %v982 = vpop.f32.mrf.mxu0
    %v983 = vadd.f32 %v774, %v982
    %984 = vmatmul.f32.gmra.mxu0 %v359
    %v985 = vpop.f32.mrf.mxu0
    %v986 = vadd.f32 %v777, %v985
    %987 = vmatmul.f32.gmra.mxu0 %v362
    %v988 = vpop.f32.mrf.mxu0
    %v989 = vadd.f32 %v780, %v988
    %990 = vmatmul.f32.gmra.mxu0 %v365
    %v991 = vpop.f32.mrf.mxu0
    %v992 = vadd.f32 %v783, %v991
    %993 = vmatmul.f32.gmra.mxu0 %v368
    %v994 = vpop.f32.mrf.mxu0
    %v995 = vadd.f32 %v786, %v994
    %996 = vmatmul.f32.gmra.mxu0 %v371
    %v997 = vpop.f32.mrf.mxu0
    %v998 = vadd.f32 %v789, %v997
    %999 = vmatmul.f32.gmra.mxu0 %v374
    %v1000 = vpop.f32.mrf.mxu0
    %v1001 = vadd.f32 %v792, %v1000
    %1002 = vmatmul.f32.gmra.mxu0 %v377
    %v1003 = vpop.f32.mrf.mxu0
    %v1004 = vadd.f32 %v795, %v1003
    %1005 = vmatmul.f32.gmra.mxu0 %v380
    %v1006 = vpop.f32.mrf.mxu0
    %v1007 = vadd.f32 %v798, %v1006
    %1008 = vmatmul.f32.gmra.mxu0 %v383
    %v1009 = vpop.f32.mrf.mxu0
    %v1010 = vadd.f32 %v801, %v1009
    %1011 = vmatmul.f32.gmra.mxu0 %v386
    %v1012 = vpop.f32.mrf.mxu0
    %v1013 = vadd.f32 %v804, %v1012
    %1014 = vmatmul.f32.gmra.mxu0 %v389
    %v1015 = vpop.f32.mrf.mxu0
    %v1016 = vadd.f32 %v807, %v1015
    %1017 = vmatmul.f32.gmra.mxu0 %v392
    %v1018 = vpop.f32.mrf.mxu0
    %v1019 = vadd.f32 %v810, %v1018
    %1020 = vmatmul.f32.gmra.mxu0 %v395
    %v1021 = vpop.f32.mrf.mxu0
    %v1022 = vadd.f32 %v813, %v1021
    %1023 = vmatmul.f32.gmra.mxu0 %v398
    %v1024 = vpop.f32.mrf.mxu0
    %v1025 = vadd.f32 %v816, %v1024
    %1026 = vmatmul.f32.gmra.mxu0 %v401
    %v1027 = vpop.f32.mrf.mxu0
    %v1028 = vadd.f32 %v819, %v1027
    %1029 = vmatmul.f32.gmra.mxu0 %v404
    %v1030 = vpop.f32.mrf.mxu0
    %v1031 = vadd.f32 %v822, %v1030
    %1032 = vmatmul.f32.gmra.mxu0 %v407
    %v1033 = vpop.f32.mrf.mxu0
    %v1034 = vadd.f32 %v825, %v1033
    %1035 = vmatmul.f32.gmra.mxu0 %v410
    %v1036 = vpop.f32.mrf.mxu0
    %v1037 = vadd.f32 %v828, %v1036
    %1038 = vmatmul.f32.gmra.mxu0 %v413
    %v1039 = vpop.f32.mrf.mxu0
    %v1040 = vadd.f32 %v831, %v1039
    %1041 = vmatmul.f32.gmra.mxu0 %v416
    %v1042 = vpop.f32.mrf.mxu0
    %v1043 = vadd.f32 %v834, %v1042
    %1044 = vmatmul.f32.gmra.mxu0 %v419
    %v1045 = vpop.f32.mrf.mxu0
    %v1046 = vadd.f32 %v837, %v1045
    %1047 = vmatmul.f32.gmra.mxu0 %v422
    %v1048 = vpop.f32.mrf.mxu0
    %v1049 = vadd.f32 %v840, %v1048
    %1050 = vmatmul.f32.gmra.mxu0 %v425
    %v1051 = vpop.f32.mrf.mxu0
    %v1052 = vadd.f32 %v843, %v1051
    %1053 = vmatmul.f32.gmra.mxu0 %v428
    %v1054 = vpop.f32.mrf.mxu0
    %v1055 = vadd.f32 %v846, %v1054
    %1056 = vmatmul.f32.gmra.mxu0 %v431
    %v1057 = vpop.f32.mrf.mxu0
    %v1058 = vadd.f32 %v849, %v1057
    %1059 = vmatmul.f32.gmra.mxu0 %v434
    %v1060 = vpop.f32.mrf.mxu0
    %v1061 = vadd.f32 %v852, %v1060
    %1062 = vmatmul.f32.gmra.mxu0 %v437
    %v1063 = vpop.f32.mrf.mxu0
    %v1064 = vadd.f32 %v855, %v1063
    %1065 = vmatmul.f32.gmra.mxu0 %v440
    %v1066 = vpop.f32.mrf.mxu0
    %v1067 = vadd.f32 %v858, %v1066
    %1068 = vmatmul.f32.gmra.mxu0 %v443
    %v1069 = vpop.f32.mrf.mxu0
    %v1070 = vadd.f32 %v861, %v1069
    %1071 = vmatmul.f32.gmra.mxu0 %v446
    %v1072 = vpop.f32.mrf.mxu0
    %v1073 = vadd.f32 %v864, %v1072
    %1074 = vdwg.mxu0
    %v1075 = vxor.u32 %v884, 2147483648
    %v1076 = vxor.u32 %v887, 2147483648
    %v1077 = vxor.u32 %v890, 2147483648
    %v1078 = vxor.u32 %v893, 2147483648
    %v1079 = vxor.u32 %v896, 2147483648
    %v1080 = vxor.u32 %v899, 2147483648
    %v1081 = vxor.u32 %v902, 2147483648
    %v1082 = vxor.u32 %v905, 2147483648
    %v1083 = vxor.u32 %v908, 2147483648
    %v1084 = vxor.u32 %v911, 2147483648
    %v1085 = vxor.u32 %v914, 2147483648
    %v1086 = vxor.u32 %v917, 2147483648
    %v1087 = vxor.u32 %v920, 2147483648
    %v1088 = vxor.u32 %v923, 2147483648
    %v1089 = vxor.u32 %v926, 2147483648
    %v1090 = vxor.u32 %v929, 2147483648
    %v1091 = vxor.u32 %v932, 2147483648
    %v1092 = vxor.u32 %v935, 2147483648
    %v1093 = vxor.u32 %v938, 2147483648
    %v1094 = vxor.u32 %v941, 2147483648
    %v1095 = vxor.u32 %v944, 2147483648
    %v1096 = vxor.u32 %v947, 2147483648
    %v1097 = vxor.u32 %v950, 2147483648
    %v1098 = vxor.u32 %v953, 2147483648
    %v1099 = vxor.u32 %v956, 2147483648
    %v1100 = vxor.u32 %v959, 2147483648
    %v1101 = vxor.u32 %v962, 2147483648
    %v1102 = vxor.u32 %v965, 2147483648
    %v1103 = vxor.u32 %v968, 2147483648
    %v1104 = vxor.u32 %v971, 2147483648
    %v1105 = vxor.u32 %v974, 2147483648
    %v1106 = vxor.u32 %v977, 2147483648
    %v1107 = vxor.u32 %v980, 2147483648
    %v1108 = vxor.u32 %v983, 2147483648
    %v1109 = vxor.u32 %v986, 2147483648
    %v1110 = vxor.u32 %v989, 2147483648
    %v1111 = vxor.u32 %v992, 2147483648
    %v1112 = vxor.u32 %v995, 2147483648
    %v1113 = vxor.u32 %v998, 2147483648
    %v1114 = vxor.u32 %v1001, 2147483648
    %v1115 = vxor.u32 %v1004, 2147483648
    %v1116 = vxor.u32 %v1007, 2147483648
    %v1117 = vxor.u32 %v1010, 2147483648
    %v1118 = vxor.u32 %v1013, 2147483648
    %v1119 = vxor.u32 %v1016, 2147483648
    %v1120 = vxor.u32 %v1019, 2147483648
    %v1121 = vxor.u32 %v1022, 2147483648
    %v1122 = vxor.u32 %v1025, 2147483648
    %v1123 = vxor.u32 %v1028, 2147483648
    %v1124 = vxor.u32 %v1031, 2147483648
    %v1125 = vxor.u32 %v1034, 2147483648
    %v1126 = vxor.u32 %v1037, 2147483648
    %v1127 = vxor.u32 %v1040, 2147483648
    %v1128 = vxor.u32 %v1043, 2147483648
    %v1129 = vxor.u32 %v1046, 2147483648
    %v1130 = vxor.u32 %v1049, 2147483648
    %v1131 = vxor.u32 %v1052, 2147483648
    %v1132 = vxor.u32 %v1055, 2147483648
    %v1133 = vxor.u32 %v1058, 2147483648
    %v1134 = vxor.u32 %v1061, 2147483648
    %v1135 = vxor.u32 %v1064, 2147483648
    %v1136 = vxor.u32 %v1067, 2147483648
    %v1137 = vxor.u32 %v1070, 2147483648
    %v1138 = vxor.u32 %v1073, 2147483648
    %v1139 = vmul.f32 %v1075, 1.442695
    %v1140 = vpow.pop %v1139
    %v1141 = vmul.f32 %v1076, 1.442695
    %v1142 = vpow.pop %v1141
    %v1143 = vmul.f32 %v1077, 1.442695
    %v1144 = vpow.pop %v1143
    %v1145 = vmul.f32 %v1078, 1.442695
    %v1146 = vpow.pop %v1145
    %v1147 = vmul.f32 %v1079, 1.442695
    %v1148 = vpow.pop %v1147
    %v1149 = vmul.f32 %v1080, 1.442695
    %v1150 = vpow.pop %v1149
    %v1151 = vmul.f32 %v1081, 1.442695
    %v1152 = vpow.pop %v1151
    %v1153 = vmul.f32 %v1082, 1.442695
    %v1154 = vpow.pop %v1153
    %v1155 = vmul.f32 %v1083, 1.442695
    %v1156 = vpow.pop %v1155
    %v1157 = vmul.f32 %v1084, 1.442695
    %v1158 = vpow.pop %v1157
    %v1159 = vmul.f32 %v1085, 1.442695
    %v1160 = vpow.pop %v1159
    %v1161 = vmul.f32 %v1086, 1.442695
    %v1162 = vpow.pop %v1161
    %v1163 = vmul.f32 %v1087, 1.442695
    %v1164 = vpow.pop %v1163
    %v1165 = vmul.f32 %v1088, 1.442695
    %v1166 = vpow.pop %v1165
    %v1167 = vmul.f32 %v1089, 1.442695
    %v1168 = vpow.pop %v1167
    %v1169 = vmul.f32 %v1090, 1.442695
    %v1170 = vpow.pop %v1169
    %v1171 = vmul.f32 %v1091, 1.442695
    %v1172 = vpow.pop %v1171
    %v1173 = vmul.f32 %v1092, 1.442695
    %v1174 = vpow.pop %v1173
    %v1175 = vmul.f32 %v1093, 1.442695
    %v1176 = vpow.pop %v1175
    %v1177 = vmul.f32 %v1094, 1.442695
    %v1178 = vpow.pop %v1177
    %v1179 = vmul.f32 %v1095, 1.442695
    %v1180 = vpow.pop %v1179
    %v1181 = vmul.f32 %v1096, 1.442695
    %v1182 = vpow.pop %v1181
    %v1183 = vmul.f32 %v1097, 1.442695
    %v1184 = vpow.pop %v1183
    %v1185 = vmul.f32 %v1098, 1.442695
    %v1186 = vpow.pop %v1185
    %v1187 = vmul.f32 %v1099, 1.442695
    %v1188 = vpow.pop %v1187
    %v1189 = vmul.f32 %v1100, 1.442695
    %v1190 = vpow.pop %v1189
    %v1191 = vmul.f32 %v1101, 1.442695
    %v1192 = vpow.pop %v1191
    %v1193 = vmul.f32 %v1102, 1.442695
    %v1194 = vpow.pop %v1193
    %v1195 = vmul.f32 %v1103, 1.442695
    %v1196 = vpow.pop %v1195
    %v1197 = vmul.f32 %v1104, 1.442695
    %v1198 = vpow.pop %v1197
    %v1199 = vmul.f32 %v1105, 1.442695
    %v1200 = vpow.pop %v1199
    %v1201 = vmul.f32 %v1106, 1.442695
    %v1202 = vpow.pop %v1201
    %v1203 = vmul.f32 %v1107, 1.442695
    %v1204 = vpow.pop %v1203
    %v1205 = vmul.f32 %v1108, 1.442695
    %v1206 = vpow.pop %v1205
    %v1207 = vmul.f32 %v1109, 1.442695
    %v1208 = vpow.pop %v1207
    %v1209 = vmul.f32 %v1110, 1.442695
    %v1210 = vpow.pop %v1209
    %v1211 = vmul.f32 %v1111, 1.442695
    %v1212 = vpow.pop %v1211
    %v1213 = vmul.f32 %v1112, 1.442695
    %v1214 = vpow.pop %v1213
    %v1215 = vmul.f32 %v1113, 1.442695
    %v1216 = vpow.pop %v1215
    %v1217 = vmul.f32 %v1114, 1.442695
    %v1218 = vpow.pop %v1217
    %v1219 = vmul.f32 %v1115, 1.442695
    %v1220 = vpow.pop %v1219
    %v1221 = vmul.f32 %v1116, 1.442695
    %v1222 = vpow.pop %v1221
    %v1223 = vmul.f32 %v1117, 1.442695
    %v1224 = vpow.pop %v1223
    %v1225 = vmul.f32 %v1118, 1.442695
    %v1226 = vpow.pop %v1225
    %v1227 = vmul.f32 %v1119, 1.442695
    %v1228 = vpow.pop %v1227
    %v1229 = vmul.f32 %v1120, 1.442695
    %v1230 = vpow.pop %v1229
    %v1231 = vmul.f32 %v1121, 1.442695
    %v1232 = vpow.pop %v1231
    %v1233 = vmul.f32 %v1122, 1.442695
    %v1234 = vpow.pop %v1233
    %v1235 = vmul.f32 %v1123, 1.442695
    %v1236 = vpow.pop %v1235
    %v1237 = vmul.f32 %v1124, 1.442695
    %v1238 = vpow.pop %v1237
    %v1239 = vmul.f32 %v1125, 1.442695
    %v1240 = vpow.pop %v1239
    %v1241 = vmul.f32 %v1126, 1.442695
    %v1242 = vpow.pop %v1241
    %v1243 = vmul.f32 %v1127, 1.442695
    %v1244 = vpow.pop %v1243
    %v1245 = vmul.f32 %v1128, 1.442695
    %v1246 = vpow.pop %v1245
    %v1247 = vmul.f32 %v1129, 1.442695
    %v1248 = vpow.pop %v1247
    %v1249 = vmul.f32 %v1130, 1.442695
    %v1250 = vpow.pop %v1249
    %v1251 = vmul.f32 %v1131, 1.442695
    %v1252 = vpow.pop %v1251
    %v1253 = vmul.f32 %v1132, 1.442695
    %v1254 = vpow.pop %v1253
    %v1255 = vmul.f32 %v1133, 1.442695
    %v1256 = vpow.pop %v1255
    %v1257 = vmul.f32 %v1134, 1.442695
    %v1258 = vpow.pop %v1257
    %v1259 = vmul.f32 %v1135, 1.442695
    %v1260 = vpow.pop %v1259
    %v1261 = vmul.f32 %v1136, 1.442695
    %v1262 = vpow.pop %v1261
    %v1263 = vmul.f32 %v1137, 1.442695
    %v1264 = vpow.pop %v1263
    %v1265 = vmul.f32 %v1138, 1.442695
    %v1266 = vpow.pop %v1265
    %v1267 = vadd.f32 %v1140, 1.0
    %v1268 = vadd.f32 %v1142, 1.0
    %v1269 = vadd.f32 %v1144, 1.0
    %v1270 = vadd.f32 %v1146, 1.0
    %v1271 = vadd.f32 %v1148, 1.0
    %v1272 = vadd.f32 %v1150, 1.0
    %v1273 = vadd.f32 %v1152, 1.0
    %v1274 = vadd.f32 %v1154, 1.0
    %v1275 = vadd.f32 %v1156, 1.0
    %v1276 = vadd.f32 %v1158, 1.0
    %v1277 = vadd.f32 %v1160, 1.0
    %v1278 = vadd.f32 %v1162, 1.0
    %v1279 = vadd.f32 %v1164, 1.0
    %v1280 = vadd.f32 %v1166, 1.0
    %v1281 = vadd.f32 %v1168, 1.0
    %v1282 = vadd.f32 %v1170, 1.0
    %v1283 = vadd.f32 %v1172, 1.0
    %v1284 = vadd.f32 %v1174, 1.0
    %v1285 = vadd.f32 %v1176, 1.0
    %v1286 = vadd.f32 %v1178, 1.0
    %v1287 = vadd.f32 %v1180, 1.0
    %v1288 = vadd.f32 %v1182, 1.0
    %v1289 = vadd.f32 %v1184, 1.0
    %v1290 = vadd.f32 %v1186, 1.0
    %v1291 = vadd.f32 %v1188, 1.0
    %v1292 = vadd.f32 %v1190, 1.0
    %v1293 = vadd.f32 %v1192, 1.0
    %v1294 = vadd.f32 %v1194, 1.0
    %v1295 = vadd.f32 %v1196, 1.0
    %v1296 = vadd.f32 %v1198, 1.0
    %v1297 = vadd.f32 %v1200, 1.0
    %v1298 = vadd.f32 %v1202, 1.0
    %v1299 = vadd.f32 %v1204, 1.0
    %v1300 = vadd.f32 %v1206, 1.0
    %v1301 = vadd.f32 %v1208, 1.0
    %v1302 = vadd.f32 %v1210, 1.0
    %v1303 = vadd.f32 %v1212, 1.0
    %v1304 = vadd.f32 %v1214, 1.0
    %v1305 = vadd.f32 %v1216, 1.0
    %v1306 = vadd.f32 %v1218, 1.0
    %v1307 = vadd.f32 %v1220, 1.0
    %v1308 = vadd.f32 %v1222, 1.0
    %v1309 = vadd.f32 %v1224, 1.0
    %v1310 = vadd.f32 %v1226, 1.0
    %v1311 = vadd.f32 %v1228, 1.0
    %v1312 = vadd.f32 %v1230, 1.0
    %v1313 = vadd.f32 %v1232, 1.0
    %v1314 = vadd.f32 %v1234, 1.0
    %v1315 = vadd.f32 %v1236, 1.0
    %v1316 = vadd.f32 %v1238, 1.0
    %v1317 = vadd.f32 %v1240, 1.0
    %v1318 = vadd.f32 %v1242, 1.0
    %v1319 = vadd.f32 %v1244, 1.0
    %v1320 = vadd.f32 %v1246, 1.0
    %v1321 = vadd.f32 %v1248, 1.0
    %v1322 = vadd.f32 %v1250, 1.0
    %v1323 = vadd.f32 %v1252, 1.0
    %v1324 = vadd.f32 %v1254, 1.0
    %v1325 = vadd.f32 %v1256, 1.0
    %v1326 = vadd.f32 %v1258, 1.0
    %v1327 = vadd.f32 %v1260, 1.0
    %v1328 = vadd.f32 %v1262, 1.0
    %v1329 = vadd.f32 %v1264, 1.0
    %v1330 = vadd.f32 %v1266, 1.0
    %v1331 = vrcp.pop %v1267
    %v1332 = vmul.f32 %v1267, %v1331
    %v1333 = vsub.f32 1.0, %v1332
    %v1334 = vmul.f32 %v1331, %v1333
    %v1335 = vadd.f32 %v1331, %v1334
    %vm1336 = vweird.f32 %v1267
    %vm1337 = vweird.f32 %v1331
    %vm1338 = vmor %vm1336, %vm1337
    %v1339 = vsel %vm1338, %v1331, %v1335
    %v1340 = vand.u32 2147483647, %v1267
    %vm1341 = vcmp.eq.f32.partialorder %v1340, 8.507059e+37
    %v1342 = vand.u32 %v1267, 2147483648
    %v1343 = vor.u32 1.1754944e-38, %v1342
    %v1344 = vsel %vm1341, %v1343, %v1339
    %v1345 = vmul.f32 1.0, %v1344
    %v1346 = vrcp.pop %v1268
    %v1347 = vmul.f32 %v1268, %v1346
    %v1348 = vsub.f32 1.0, %v1347
    %v1349 = vmul.f32 %v1346, %v1348
    %v1350 = vadd.f32 %v1346, %v1349
    %vm1351 = vweird.f32 %v1268
    %vm1352 = vweird.f32 %v1346
    %vm1353 = vmor %vm1351, %vm1352
    %v1354 = vsel %vm1353, %v1346, %v1350
    %v1355 = vand.u32 2147483647, %v1268
    %vm1356 = vcmp.eq.f32.partialorder %v1355, 8.507059e+37
    %v1357 = vand.u32 %v1268, 2147483648
    %v1358 = vor.u32 1.1754944e-38, %v1357
    %v1359 = vsel %vm1356, %v1358, %v1354
    %v1360 = vmul.f32 1.0, %v1359
    %v1361 = vrcp.pop %v1269
    %v1362 = vmul.f32 %v1269, %v1361
    %v1363 = vsub.f32 1.0, %v1362
    %v1364 = vmul.f32 %v1361, %v1363
    %v1365 = vadd.f32 %v1361, %v1364
    %vm1366 = vweird.f32 %v1269
    %vm1367 = vweird.f32 %v1361
    %vm1368 = vmor %vm1366, %vm1367
    %v1369 = vsel %vm1368, %v1361, %v1365
    %v1370 = vand.u32 2147483647, %v1269
    %vm1371 = vcmp.eq.f32.partialorder %v1370, 8.507059e+37
    %v1372 = vand.u32 %v1269, 2147483648
    %v1373 = vor.u32 1.1754944e-38, %v1372
    %v1374 = vsel %vm1371, %v1373, %v1369
    %v1375 = vmul.f32 1.0, %v1374
    %v1376 = vrcp.pop %v1270
    %v1377 = vmul.f32 %v1270, %v1376
    %v1378 = vsub.f32 1.0, %v1377
    %v1379 = vmul.f32 %v1376, %v1378
    %v1380 = vadd.f32 %v1376, %v1379
    %vm1381 = vweird.f32 %v1270
    %vm1382 = vweird.f32 %v1376
    %vm1383 = vmor %vm1381, %vm1382
    %v1384 = vsel %vm1383, %v1376, %v1380
    %v1385 = vand.u32 2147483647, %v1270
    %vm1386 = vcmp.eq.f32.partialorder %v1385, 8.507059e+37
    %v1387 = vand.u32 %v1270, 2147483648
    %v1388 = vor.u32 1.1754944e-38, %v1387
    %v1389 = vsel %vm1386, %v1388, %v1384
    %v1390 = vmul.f32 1.0, %v1389
    %v1391 = vrcp.pop %v1271
    %v1392 = vmul.f32 %v1271, %v1391
    %v1393 = vsub.f32 1.0, %v1392
    %v1394 = vmul.f32 %v1391, %v1393
    %v1395 = vadd.f32 %v1391, %v1394
    %vm1396 = vweird.f32 %v1271
    %vm1397 = vweird.f32 %v1391
    %vm1398 = vmor %vm1396, %vm1397
    %v1399 = vsel %vm1398, %v1391, %v1395
    %v1400 = vand.u32 2147483647, %v1271
    %vm1401 = vcmp.eq.f32.partialorder %v1400, 8.507059e+37
    %v1402 = vand.u32 %v1271, 2147483648
    %v1403 = vor.u32 1.1754944e-38, %v1402
    %v1404 = vsel %vm1401, %v1403, %v1399
    %v1405 = vmul.f32 1.0, %v1404
    %v1406 = vrcp.pop %v1272
    %v1407 = vmul.f32 %v1272, %v1406
    %v1408 = vsub.f32 1.0, %v1407
    %v1409 = vmul.f32 %v1406, %v1408
    %v1410 = vadd.f32 %v1406, %v1409
    %vm1411 = vweird.f32 %v1272
    %vm1412 = vweird.f32 %v1406
    %vm1413 = vmor %vm1411, %vm1412
    %v1414 = vsel %vm1413, %v1406, %v1410
    %v1415 = vand.u32 2147483647, %v1272
    %vm1416 = vcmp.eq.f32.partialorder %v1415, 8.507059e+37
    %v1417 = vand.u32 %v1272, 2147483648
    %v1418 = vor.u32 1.1754944e-38, %v1417
    %v1419 = vsel %vm1416, %v1418, %v1414
    %v1420 = vmul.f32 1.0, %v1419
    %v1421 = vrcp.pop %v1273
    %v1422 = vmul.f32 %v1273, %v1421
    %v1423 = vsub.f32 1.0, %v1422
    %v1424 = vmul.f32 %v1421, %v1423
    %v1425 = vadd.f32 %v1421, %v1424
    %vm1426 = vweird.f32 %v1273
    %vm1427 = vweird.f32 %v1421
    %vm1428 = vmor %vm1426, %vm1427
    %v1429 = vsel %vm1428, %v1421, %v1425
    %v1430 = vand.u32 2147483647, %v1273
    %vm1431 = vcmp.eq.f32.partialorder %v1430, 8.507059e+37
    %v1432 = vand.u32 %v1273, 2147483648
    %v1433 = vor.u32 1.1754944e-38, %v1432
    %v1434 = vsel %vm1431, %v1433, %v1429
    %v1435 = vmul.f32 1.0, %v1434
    %v1436 = vrcp.pop %v1274
    %v1437 = vmul.f32 %v1274, %v1436
    %v1438 = vsub.f32 1.0, %v1437
    %v1439 = vmul.f32 %v1436, %v1438
    %v1440 = vadd.f32 %v1436, %v1439
    %vm1441 = vweird.f32 %v1274
    %vm1442 = vweird.f32 %v1436
    %vm1443 = vmor %vm1441, %vm1442
    %v1444 = vsel %vm1443, %v1436, %v1440
    %v1445 = vand.u32 2147483647, %v1274
    %vm1446 = vcmp.eq.f32.partialorder %v1445, 8.507059e+37
    %v1447 = vand.u32 %v1274, 2147483648
    %v1448 = vor.u32 1.1754944e-38, %v1447
    %v1449 = vsel %vm1446, %v1448, %v1444
    %v1450 = vmul.f32 1.0, %v1449
    %v1451 = vrcp.pop %v1275
    %v1452 = vmul.f32 %v1275, %v1451
    %v1453 = vsub.f32 1.0, %v1452
    %v1454 = vmul.f32 %v1451, %v1453
    %v1455 = vadd.f32 %v1451, %v1454
    %vm1456 = vweird.f32 %v1275
    %vm1457 = vweird.f32 %v1451
    %vm1458 = vmor %vm1456, %vm1457
    %v1459 = vsel %vm1458, %v1451, %v1455
    %v1460 = vand.u32 2147483647, %v1275
    %vm1461 = vcmp.eq.f32.partialorder %v1460, 8.507059e+37
    %v1462 = vand.u32 %v1275, 2147483648
    %v1463 = vor.u32 1.1754944e-38, %v1462
    %v1464 = vsel %vm1461, %v1463, %v1459
    %v1465 = vmul.f32 1.0, %v1464
    %v1466 = vrcp.pop %v1276
    %v1467 = vmul.f32 %v1276, %v1466
    %v1468 = vsub.f32 1.0, %v1467
    %v1469 = vmul.f32 %v1466, %v1468
    %v1470 = vadd.f32 %v1466, %v1469
    %vm1471 = vweird.f32 %v1276
    %vm1472 = vweird.f32 %v1466
    %vm1473 = vmor %vm1471, %vm1472
    %v1474 = vsel %vm1473, %v1466, %v1470
    %v1475 = vand.u32 2147483647, %v1276
    %vm1476 = vcmp.eq.f32.partialorder %v1475, 8.507059e+37
    %v1477 = vand.u32 %v1276, 2147483648
    %v1478 = vor.u32 1.1754944e-38, %v1477
    %v1479 = vsel %vm1476, %v1478, %v1474
    %v1480 = vmul.f32 1.0, %v1479
    %v1481 = vrcp.pop %v1277
    %v1482 = vmul.f32 %v1277, %v1481
    %v1483 = vsub.f32 1.0, %v1482
    %v1484 = vmul.f32 %v1481, %v1483
    %v1485 = vadd.f32 %v1481, %v1484
    %vm1486 = vweird.f32 %v1277
    %vm1487 = vweird.f32 %v1481
    %vm1488 = vmor %vm1486, %vm1487
    %v1489 = vsel %vm1488, %v1481, %v1485
    %v1490 = vand.u32 2147483647, %v1277
    %vm1491 = vcmp.eq.f32.partialorder %v1490, 8.507059e+37
    %v1492 = vand.u32 %v1277, 2147483648
    %v1493 = vor.u32 1.1754944e-38, %v1492
    %v1494 = vsel %vm1491, %v1493, %v1489
    %v1495 = vmul.f32 1.0, %v1494
    %v1496 = vrcp.pop %v1278
    %v1497 = vmul.f32 %v1278, %v1496
    %v1498 = vsub.f32 1.0, %v1497
    %v1499 = vmul.f32 %v1496, %v1498
    %v1500 = vadd.f32 %v1496, %v1499
    %vm1501 = vweird.f32 %v1278
    %vm1502 = vweird.f32 %v1496
    %vm1503 = vmor %vm1501, %vm1502
    %v1504 = vsel %vm1503, %v1496, %v1500
    %v1505 = vand.u32 2147483647, %v1278
    %vm1506 = vcmp.eq.f32.partialorder %v1505, 8.507059e+37
    %v1507 = vand.u32 %v1278, 2147483648
    %v1508 = vor.u32 1.1754944e-38, %v1507
    %v1509 = vsel %vm1506, %v1508, %v1504
    %v1510 = vmul.f32 1.0, %v1509
    %v1511 = vrcp.pop %v1279
    %v1512 = vmul.f32 %v1279, %v1511
    %v1513 = vsub.f32 1.0, %v1512
    %v1514 = vmul.f32 %v1511, %v1513
    %v1515 = vadd.f32 %v1511, %v1514
    %vm1516 = vweird.f32 %v1279
    %vm1517 = vweird.f32 %v1511
    %vm1518 = vmor %vm1516, %vm1517
    %v1519 = vsel %vm1518, %v1511, %v1515
    %v1520 = vand.u32 2147483647, %v1279
    %vm1521 = vcmp.eq.f32.partialorder %v1520, 8.507059e+37
    %v1522 = vand.u32 %v1279, 2147483648
    %v1523 = vor.u32 1.1754944e-38, %v1522
    %v1524 = vsel %vm1521, %v1523, %v1519
    %v1525 = vmul.f32 1.0, %v1524
    %v1526 = vrcp.pop %v1280
    %v1527 = vmul.f32 %v1280, %v1526
    %v1528 = vsub.f32 1.0, %v1527
    %v1529 = vmul.f32 %v1526, %v1528
    %v1530 = vadd.f32 %v1526, %v1529
    %vm1531 = vweird.f32 %v1280
    %vm1532 = vweird.f32 %v1526
    %vm1533 = vmor %vm1531, %vm1532
    %v1534 = vsel %vm1533, %v1526, %v1530
    %v1535 = vand.u32 2147483647, %v1280
    %vm1536 = vcmp.eq.f32.partialorder %v1535, 8.507059e+37
    %v1537 = vand.u32 %v1280, 2147483648
    %v1538 = vor.u32 1.1754944e-38, %v1537
    %v1539 = vsel %vm1536, %v1538, %v1534
    %v1540 = vmul.f32 1.0, %v1539
    %v1541 = vrcp.pop %v1281
    %v1542 = vmul.f32 %v1281, %v1541
    %v1543 = vsub.f32 1.0, %v1542
    %v1544 = vmul.f32 %v1541, %v1543
    %v1545 = vadd.f32 %v1541, %v1544
    %vm1546 = vweird.f32 %v1281
    %vm1547 = vweird.f32 %v1541
    %vm1548 = vmor %vm1546, %vm1547
    %v1549 = vsel %vm1548, %v1541, %v1545
    %v1550 = vand.u32 2147483647, %v1281
    %vm1551 = vcmp.eq.f32.partialorder %v1550, 8.507059e+37
    %v1552 = vand.u32 %v1281, 2147483648
    %v1553 = vor.u32 1.1754944e-38, %v1552
    %v1554 = vsel %vm1551, %v1553, %v1549
    %v1555 = vmul.f32 1.0, %v1554
    %v1556 = vrcp.pop %v1282
    %v1557 = vmul.f32 %v1282, %v1556
    %v1558 = vsub.f32 1.0, %v1557
    %v1559 = vmul.f32 %v1556, %v1558
    %v1560 = vadd.f32 %v1556, %v1559
    %vm1561 = vweird.f32 %v1282
    %vm1562 = vweird.f32 %v1556
    %vm1563 = vmor %vm1561, %vm1562
    %v1564 = vsel %vm1563, %v1556, %v1560
    %v1565 = vand.u32 2147483647, %v1282
    %vm1566 = vcmp.eq.f32.partialorder %v1565, 8.507059e+37
    %v1567 = vand.u32 %v1282, 2147483648
    %v1568 = vor.u32 1.1754944e-38, %v1567
    %v1569 = vsel %vm1566, %v1568, %v1564
    %v1570 = vmul.f32 1.0, %v1569
    %v1571 = vrcp.pop %v1283
    %v1572 = vmul.f32 %v1283, %v1571
    %v1573 = vsub.f32 1.0, %v1572
    %v1574 = vmul.f32 %v1571, %v1573
    %v1575 = vadd.f32 %v1571, %v1574
    %vm1576 = vweird.f32 %v1283
    %vm1577 = vweird.f32 %v1571
    %vm1578 = vmor %vm1576, %vm1577
    %v1579 = vsel %vm1578, %v1571, %v1575
    %v1580 = vand.u32 2147483647, %v1283
    %vm1581 = vcmp.eq.f32.partialorder %v1580, 8.507059e+37
    %v1582 = vand.u32 %v1283, 2147483648
    %v1583 = vor.u32 1.1754944e-38, %v1582
    %v1584 = vsel %vm1581, %v1583, %v1579
    %v1585 = vmul.f32 1.0, %v1584
    %v1586 = vrcp.pop %v1284
    %v1587 = vmul.f32 %v1284, %v1586
    %v1588 = vsub.f32 1.0, %v1587
    %v1589 = vmul.f32 %v1586, %v1588
    %v1590 = vadd.f32 %v1586, %v1589
    %vm1591 = vweird.f32 %v1284
    %vm1592 = vweird.f32 %v1586
    %vm1593 = vmor %vm1591, %vm1592
    %v1594 = vsel %vm1593, %v1586, %v1590
    %v1595 = vand.u32 2147483647, %v1284
    %vm1596 = vcmp.eq.f32.partialorder %v1595, 8.507059e+37
    %v1597 = vand.u32 %v1284, 2147483648
    %v1598 = vor.u32 1.1754944e-38, %v1597
    %v1599 = vsel %vm1596, %v1598, %v1594
    %v1600 = vmul.f32 1.0, %v1599
    %v1601 = vrcp.pop %v1285
    %v1602 = vmul.f32 %v1285, %v1601
    %v1603 = vsub.f32 1.0, %v1602
    %v1604 = vmul.f32 %v1601, %v1603
    %v1605 = vadd.f32 %v1601, %v1604
    %vm1606 = vweird.f32 %v1285
    %vm1607 = vweird.f32 %v1601
    %vm1608 = vmor %vm1606, %vm1607
    %v1609 = vsel %vm1608, %v1601, %v1605
    %v1610 = vand.u32 2147483647, %v1285
    %vm1611 = vcmp.eq.f32.partialorder %v1610, 8.507059e+37
    %v1612 = vand.u32 %v1285, 2147483648
    %v1613 = vor.u32 1.1754944e-38, %v1612
    %v1614 = vsel %vm1611, %v1613, %v1609
    %v1615 = vmul.f32 1.0, %v1614
    %v1616 = vrcp.pop %v1286
    %v1617 = vmul.f32 %v1286, %v1616
    %v1618 = vsub.f32 1.0, %v1617
    %v1619 = vmul.f32 %v1616, %v1618
    %v1620 = vadd.f32 %v1616, %v1619
    %vm1621 = vweird.f32 %v1286
    %vm1622 = vweird.f32 %v1616
    %vm1623 = vmor %vm1621, %vm1622
    %v1624 = vsel %vm1623, %v1616, %v1620
    %v1625 = vand.u32 2147483647, %v1286
    %vm1626 = vcmp.eq.f32.partialorder %v1625, 8.507059e+37
    %v1627 = vand.u32 %v1286, 2147483648
    %v1628 = vor.u32 1.1754944e-38, %v1627
    %v1629 = vsel %vm1626, %v1628, %v1624
    %v1630 = vmul.f32 1.0, %v1629
    %v1631 = vrcp.pop %v1287
    %v1632 = vmul.f32 %v1287, %v1631
    %v1633 = vsub.f32 1.0, %v1632
    %v1634 = vmul.f32 %v1631, %v1633
    %v1635 = vadd.f32 %v1631, %v1634
    %vm1636 = vweird.f32 %v1287
    %vm1637 = vweird.f32 %v1631
    %vm1638 = vmor %vm1636, %vm1637
    %v1639 = vsel %vm1638, %v1631, %v1635
    %v1640 = vand.u32 2147483647, %v1287
    %vm1641 = vcmp.eq.f32.partialorder %v1640, 8.507059e+37
    %v1642 = vand.u32 %v1287, 2147483648
    %v1643 = vor.u32 1.1754944e-38, %v1642
    %v1644 = vsel %vm1641, %v1643, %v1639
    %v1645 = vmul.f32 1.0, %v1644
    %v1646 = vrcp.pop %v1288
    %v1647 = vmul.f32 %v1288, %v1646
    %v1648 = vsub.f32 1.0, %v1647
    %v1649 = vmul.f32 %v1646, %v1648
    %v1650 = vadd.f32 %v1646, %v1649
    %vm1651 = vweird.f32 %v1288
    %vm1652 = vweird.f32 %v1646
    %vm1653 = vmor %vm1651, %vm1652
    %v1654 = vsel %vm1653, %v1646, %v1650
    %v1655 = vand.u32 2147483647, %v1288
    %vm1656 = vcmp.eq.f32.partialorder %v1655, 8.507059e+37
    %v1657 = vand.u32 %v1288, 2147483648
    %v1658 = vor.u32 1.1754944e-38, %v1657
    %v1659 = vsel %vm1656, %v1658, %v1654
    %v1660 = vmul.f32 1.0, %v1659
    %v1661 = vrcp.pop %v1289
    %v1662 = vmul.f32 %v1289, %v1661
    %v1663 = vsub.f32 1.0, %v1662
    %v1664 = vmul.f32 %v1661, %v1663
    %v1665 = vadd.f32 %v1661, %v1664
    %vm1666 = vweird.f32 %v1289
    %vm1667 = vweird.f32 %v1661
    %vm1668 = vmor %vm1666, %vm1667
    %v1669 = vsel %vm1668, %v1661, %v1665
    %v1670 = vand.u32 2147483647, %v1289
    %vm1671 = vcmp.eq.f32.partialorder %v1670, 8.507059e+37
    %v1672 = vand.u32 %v1289, 2147483648
    %v1673 = vor.u32 1.1754944e-38, %v1672
    %v1674 = vsel %vm1671, %v1673, %v1669
    %v1675 = vmul.f32 1.0, %v1674
    %v1676 = vrcp.pop %v1290
    %v1677 = vmul.f32 %v1290, %v1676
    %v1678 = vsub.f32 1.0, %v1677
    %v1679 = vmul.f32 %v1676, %v1678
    %v1680 = vadd.f32 %v1676, %v1679
    %vm1681 = vweird.f32 %v1290
    %vm1682 = vweird.f32 %v1676
    %vm1683 = vmor %vm1681, %vm1682
    %v1684 = vsel %vm1683, %v1676, %v1680
    %v1685 = vand.u32 2147483647, %v1290
    %vm1686 = vcmp.eq.f32.partialorder %v1685, 8.507059e+37
    %v1687 = vand.u32 %v1290, 2147483648
    %v1688 = vor.u32 1.1754944e-38, %v1687
    %v1689 = vsel %vm1686, %v1688, %v1684
    %v1690 = vmul.f32 1.0, %v1689
    %v1691 = vrcp.pop %v1291
    %v1692 = vmul.f32 %v1291, %v1691
    %v1693 = vsub.f32 1.0, %v1692
    %v1694 = vmul.f32 %v1691, %v1693
    %v1695 = vadd.f32 %v1691, %v1694
    %vm1696 = vweird.f32 %v1291
    %vm1697 = vweird.f32 %v1691
    %vm1698 = vmor %vm1696, %vm1697
    %v1699 = vsel %vm1698, %v1691, %v1695
    %v1700 = vand.u32 2147483647, %v1291
    %vm1701 = vcmp.eq.f32.partialorder %v1700, 8.507059e+37
    %v1702 = vand.u32 %v1291, 2147483648
    %v1703 = vor.u32 1.1754944e-38, %v1702
    %v1704 = vsel %vm1701, %v1703, %v1699
    %v1705 = vmul.f32 1.0, %v1704
    %v1706 = vrcp.pop %v1292
    %v1707 = vmul.f32 %v1292, %v1706
    %v1708 = vsub.f32 1.0, %v1707
    %v1709 = vmul.f32 %v1706, %v1708
    %v1710 = vadd.f32 %v1706, %v1709
    %vm1711 = vweird.f32 %v1292
    %vm1712 = vweird.f32 %v1706
    %vm1713 = vmor %vm1711, %vm1712
    %v1714 = vsel %vm1713, %v1706, %v1710
    %v1715 = vand.u32 2147483647, %v1292
    %vm1716 = vcmp.eq.f32.partialorder %v1715, 8.507059e+37
    %v1717 = vand.u32 %v1292, 2147483648
    %v1718 = vor.u32 1.1754944e-38, %v1717
    %v1719 = vsel %vm1716, %v1718, %v1714
    %v1720 = vmul.f32 1.0, %v1719
    %v1721 = vrcp.pop %v1293
    %v1722 = vmul.f32 %v1293, %v1721
    %v1723 = vsub.f32 1.0, %v1722
    %v1724 = vmul.f32 %v1721, %v1723
    %v1725 = vadd.f32 %v1721, %v1724
    %vm1726 = vweird.f32 %v1293
    %vm1727 = vweird.f32 %v1721
    %vm1728 = vmor %vm1726, %vm1727
    %v1729 = vsel %vm1728, %v1721, %v1725
    %v1730 = vand.u32 2147483647, %v1293
    %vm1731 = vcmp.eq.f32.partialorder %v1730, 8.507059e+37
    %v1732 = vand.u32 %v1293, 2147483648
    %v1733 = vor.u32 1.1754944e-38, %v1732
    %v1734 = vsel %vm1731, %v1733, %v1729
    %v1735 = vmul.f32 1.0, %v1734
    %v1736 = vrcp.pop %v1294
    %v1737 = vmul.f32 %v1294, %v1736
    %v1738 = vsub.f32 1.0, %v1737
    %v1739 = vmul.f32 %v1736, %v1738
    %v1740 = vadd.f32 %v1736, %v1739
    %vm1741 = vweird.f32 %v1294
    %vm1742 = vweird.f32 %v1736
    %vm1743 = vmor %vm1741, %vm1742
    %v1744 = vsel %vm1743, %v1736, %v1740
    %v1745 = vand.u32 2147483647, %v1294
    %vm1746 = vcmp.eq.f32.partialorder %v1745, 8.507059e+37
    %v1747 = vand.u32 %v1294, 2147483648
    %v1748 = vor.u32 1.1754944e-38, %v1747
    %v1749 = vsel %vm1746, %v1748, %v1744
    %v1750 = vmul.f32 1.0, %v1749
    %v1751 = vrcp.pop %v1295
    %v1752 = vmul.f32 %v1295, %v1751
    %v1753 = vsub.f32 1.0, %v1752
    %v1754 = vmul.f32 %v1751, %v1753
    %v1755 = vadd.f32 %v1751, %v1754
    %vm1756 = vweird.f32 %v1295
    %vm1757 = vweird.f32 %v1751
    %vm1758 = vmor %vm1756, %vm1757
    %v1759 = vsel %vm1758, %v1751, %v1755
    %v1760 = vand.u32 2147483647, %v1295
    %vm1761 = vcmp.eq.f32.partialorder %v1760, 8.507059e+37
    %v1762 = vand.u32 %v1295, 2147483648
    %v1763 = vor.u32 1.1754944e-38, %v1762
    %v1764 = vsel %vm1761, %v1763, %v1759
    %v1765 = vmul.f32 1.0, %v1764
    %v1766 = vrcp.pop %v1296
    %v1767 = vmul.f32 %v1296, %v1766
    %v1768 = vsub.f32 1.0, %v1767
    %v1769 = vmul.f32 %v1766, %v1768
    %v1770 = vadd.f32 %v1766, %v1769
    %vm1771 = vweird.f32 %v1296
    %vm1772 = vweird.f32 %v1766
    %vm1773 = vmor %vm1771, %vm1772
    %v1774 = vsel %vm1773, %v1766, %v1770
    %v1775 = vand.u32 2147483647, %v1296
    %vm1776 = vcmp.eq.f32.partialorder %v1775, 8.507059e+37
    %v1777 = vand.u32 %v1296, 2147483648
    %v1778 = vor.u32 1.1754944e-38, %v1777
    %v1779 = vsel %vm1776, %v1778, %v1774
    %v1780 = vmul.f32 1.0, %v1779
    %v1781 = vrcp.pop %v1297
    %v1782 = vmul.f32 %v1297, %v1781
    %v1783 = vsub.f32 1.0, %v1782
    %v1784 = vmul.f32 %v1781, %v1783
    %v1785 = vadd.f32 %v1781, %v1784
    %vm1786 = vweird.f32 %v1297
    %vm1787 = vweird.f32 %v1781
    %vm1788 = vmor %vm1786, %vm1787
    %v1789 = vsel %vm1788, %v1781, %v1785
    %v1790 = vand.u32 2147483647, %v1297
    %vm1791 = vcmp.eq.f32.partialorder %v1790, 8.507059e+37
    %v1792 = vand.u32 %v1297, 2147483648
    %v1793 = vor.u32 1.1754944e-38, %v1792
    %v1794 = vsel %vm1791, %v1793, %v1789
    %v1795 = vmul.f32 1.0, %v1794
    %v1796 = vrcp.pop %v1298
    %v1797 = vmul.f32 %v1298, %v1796
    %v1798 = vsub.f32 1.0, %v1797
    %v1799 = vmul.f32 %v1796, %v1798
    %v1800 = vadd.f32 %v1796, %v1799
    %vm1801 = vweird.f32 %v1298
    %vm1802 = vweird.f32 %v1796
    %vm1803 = vmor %vm1801, %vm1802
    %v1804 = vsel %vm1803, %v1796, %v1800
    %v1805 = vand.u32 2147483647, %v1298
    %vm1806 = vcmp.eq.f32.partialorder %v1805, 8.507059e+37
    %v1807 = vand.u32 %v1298, 2147483648
    %v1808 = vor.u32 1.1754944e-38, %v1807
    %v1809 = vsel %vm1806, %v1808, %v1804
    %v1810 = vmul.f32 1.0, %v1809
    %v1811 = vrcp.pop %v1299
    %v1812 = vmul.f32 %v1299, %v1811
    %v1813 = vsub.f32 1.0, %v1812
    %v1814 = vmul.f32 %v1811, %v1813
    %v1815 = vadd.f32 %v1811, %v1814
    %vm1816 = vweird.f32 %v1299
    %vm1817 = vweird.f32 %v1811
    %vm1818 = vmor %vm1816, %vm1817
    %v1819 = vsel %vm1818, %v1811, %v1815
    %v1820 = vand.u32 2147483647, %v1299
    %vm1821 = vcmp.eq.f32.partialorder %v1820, 8.507059e+37
    %v1822 = vand.u32 %v1299, 2147483648
    %v1823 = vor.u32 1.1754944e-38, %v1822
    %v1824 = vsel %vm1821, %v1823, %v1819
    %v1825 = vmul.f32 1.0, %v1824
    %v1826 = vrcp.pop %v1300
    %v1827 = vmul.f32 %v1300, %v1826
    %v1828 = vsub.f32 1.0, %v1827
    %v1829 = vmul.f32 %v1826, %v1828
    %v1830 = vadd.f32 %v1826, %v1829
    %vm1831 = vweird.f32 %v1300
    %vm1832 = vweird.f32 %v1826
    %vm1833 = vmor %vm1831, %vm1832
    %v1834 = vsel %vm1833, %v1826, %v1830
    %v1835 = vand.u32 2147483647, %v1300
    %vm1836 = vcmp.eq.f32.partialorder %v1835, 8.507059e+37
    %v1837 = vand.u32 %v1300, 2147483648
    %v1838 = vor.u32 1.1754944e-38, %v1837
    %v1839 = vsel %vm1836, %v1838, %v1834
    %v1840 = vmul.f32 1.0, %v1839
    %v1841 = vrcp.pop %v1301
    %v1842 = vmul.f32 %v1301, %v1841
    %v1843 = vsub.f32 1.0, %v1842
    %v1844 = vmul.f32 %v1841, %v1843
    %v1845 = vadd.f32 %v1841, %v1844
    %vm1846 = vweird.f32 %v1301
    %vm1847 = vweird.f32 %v1841
    %vm1848 = vmor %vm1846, %vm1847
    %v1849 = vsel %vm1848, %v1841, %v1845
    %v1850 = vand.u32 2147483647, %v1301
    %vm1851 = vcmp.eq.f32.partialorder %v1850, 8.507059e+37
    %v1852 = vand.u32 %v1301, 2147483648
    %v1853 = vor.u32 1.1754944e-38, %v1852
    %v1854 = vsel %vm1851, %v1853, %v1849
    %v1855 = vmul.f32 1.0, %v1854
    %v1856 = vrcp.pop %v1302
    %v1857 = vmul.f32 %v1302, %v1856
    %v1858 = vsub.f32 1.0, %v1857
    %v1859 = vmul.f32 %v1856, %v1858
    %v1860 = vadd.f32 %v1856, %v1859
    %vm1861 = vweird.f32 %v1302
    %vm1862 = vweird.f32 %v1856
    %vm1863 = vmor %vm1861, %vm1862
    %v1864 = vsel %vm1863, %v1856, %v1860
    %v1865 = vand.u32 2147483647, %v1302
    %vm1866 = vcmp.eq.f32.partialorder %v1865, 8.507059e+37
    %v1867 = vand.u32 %v1302, 2147483648
    %v1868 = vor.u32 1.1754944e-38, %v1867
    %v1869 = vsel %vm1866, %v1868, %v1864
    %v1870 = vmul.f32 1.0, %v1869
    %v1871 = vrcp.pop %v1303
    %v1872 = vmul.f32 %v1303, %v1871
    %v1873 = vsub.f32 1.0, %v1872
    %v1874 = vmul.f32 %v1871, %v1873
    %v1875 = vadd.f32 %v1871, %v1874
    %vm1876 = vweird.f32 %v1303
    %vm1877 = vweird.f32 %v1871
    %vm1878 = vmor %vm1876, %vm1877
    %v1879 = vsel %vm1878, %v1871, %v1875
    %v1880 = vand.u32 2147483647, %v1303
    %vm1881 = vcmp.eq.f32.partialorder %v1880, 8.507059e+37
    %v1882 = vand.u32 %v1303, 2147483648
    %v1883 = vor.u32 1.1754944e-38, %v1882
    %v1884 = vsel %vm1881, %v1883, %v1879
    %v1885 = vmul.f32 1.0, %v1884
    %v1886 = vrcp.pop %v1304
    %v1887 = vmul.f32 %v1304, %v1886
    %v1888 = vsub.f32 1.0, %v1887
    %v1889 = vmul.f32 %v1886, %v1888
    %v1890 = vadd.f32 %v1886, %v1889
    %vm1891 = vweird.f32 %v1304
    %vm1892 = vweird.f32 %v1886
    %vm1893 = vmor %vm1891, %vm1892
    %v1894 = vsel %vm1893, %v1886, %v1890
    %v1895 = vand.u32 2147483647, %v1304
    %vm1896 = vcmp.eq.f32.partialorder %v1895, 8.507059e+37
    %v1897 = vand.u32 %v1304, 2147483648
    %v1898 = vor.u32 1.1754944e-38, %v1897
    %v1899 = vsel %vm1896, %v1898, %v1894
    %v1900 = vmul.f32 1.0, %v1899
    %v1901 = vrcp.pop %v1305
    %v1902 = vmul.f32 %v1305, %v1901
    %v1903 = vsub.f32 1.0, %v1902
    %v1904 = vmul.f32 %v1901, %v1903
    %v1905 = vadd.f32 %v1901, %v1904
    %vm1906 = vweird.f32 %v1305
    %vm1907 = vweird.f32 %v1901
    %vm1908 = vmor %vm1906, %vm1907
    %v1909 = vsel %vm1908, %v1901, %v1905
    %v1910 = vand.u32 2147483647, %v1305
    %vm1911 = vcmp.eq.f32.partialorder %v1910, 8.507059e+37
    %v1912 = vand.u32 %v1305, 2147483648
    %v1913 = vor.u32 1.1754944e-38, %v1912
    %v1914 = vsel %vm1911, %v1913, %v1909
    %v1915 = vmul.f32 1.0, %v1914
    %v1916 = vrcp.pop %v1306
    %v1917 = vmul.f32 %v1306, %v1916
    %v1918 = vsub.f32 1.0, %v1917
    %v1919 = vmul.f32 %v1916, %v1918
    %v1920 = vadd.f32 %v1916, %v1919
    %vm1921 = vweird.f32 %v1306
    %vm1922 = vweird.f32 %v1916
    %vm1923 = vmor %vm1921, %vm1922
    %v1924 = vsel %vm1923, %v1916, %v1920
    %v1925 = vand.u32 2147483647, %v1306
    %vm1926 = vcmp.eq.f32.partialorder %v1925, 8.507059e+37
    %v1927 = vand.u32 %v1306, 2147483648
    %v1928 = vor.u32 1.1754944e-38, %v1927
    %v1929 = vsel %vm1926, %v1928, %v1924
    %v1930 = vmul.f32 1.0, %v1929
    %v1931 = vrcp.pop %v1307
    %v1932 = vmul.f32 %v1307, %v1931
    %v1933 = vsub.f32 1.0, %v1932
    %v1934 = vmul.f32 %v1931, %v1933
    %v1935 = vadd.f32 %v1931, %v1934
    %vm1936 = vweird.f32 %v1307
    %vm1937 = vweird.f32 %v1931
    %vm1938 = vmor %vm1936, %vm1937
    %v1939 = vsel %vm1938, %v1931, %v1935
    %v1940 = vand.u32 2147483647, %v1307
    %vm1941 = vcmp.eq.f32.partialorder %v1940, 8.507059e+37
    %v1942 = vand.u32 %v1307, 2147483648
    %v1943 = vor.u32 1.1754944e-38, %v1942
    %v1944 = vsel %vm1941, %v1943, %v1939
    %v1945 = vmul.f32 1.0, %v1944
    %v1946 = vrcp.pop %v1308
    %v1947 = vmul.f32 %v1308, %v1946
    %v1948 = vsub.f32 1.0, %v1947
    %v1949 = vmul.f32 %v1946, %v1948
    %v1950 = vadd.f32 %v1946, %v1949
    %vm1951 = vweird.f32 %v1308
    %vm1952 = vweird.f32 %v1946
    %vm1953 = vmor %vm1951, %vm1952
    %v1954 = vsel %vm1953, %v1946, %v1950
    %v1955 = vand.u32 2147483647, %v1308
    %vm1956 = vcmp.eq.f32.partialorder %v1955, 8.507059e+37
    %v1957 = vand.u32 %v1308, 2147483648
    %v1958 = vor.u32 1.1754944e-38, %v1957
    %v1959 = vsel %vm1956, %v1958, %v1954
    %v1960 = vmul.f32 1.0, %v1959
    %v1961 = vrcp.pop %v1309
    %v1962 = vmul.f32 %v1309, %v1961
    %v1963 = vsub.f32 1.0, %v1962
    %v1964 = vmul.f32 %v1961, %v1963
    %v1965 = vadd.f32 %v1961, %v1964
    %vm1966 = vweird.f32 %v1309
    %vm1967 = vweird.f32 %v1961
    %vm1968 = vmor %vm1966, %vm1967
    %v1969 = vsel %vm1968, %v1961, %v1965
    %v1970 = vand.u32 2147483647, %v1309
    %vm1971 = vcmp.eq.f32.partialorder %v1970, 8.507059e+37
    %v1972 = vand.u32 %v1309, 2147483648
    %v1973 = vor.u32 1.1754944e-38, %v1972
    %v1974 = vsel %vm1971, %v1973, %v1969
    %v1975 = vmul.f32 1.0, %v1974
    %v1976 = vrcp.pop %v1310
    %v1977 = vmul.f32 %v1310, %v1976
    %v1978 = vsub.f32 1.0, %v1977
    %v1979 = vmul.f32 %v1976, %v1978
    %v1980 = vadd.f32 %v1976, %v1979
    %vm1981 = vweird.f32 %v1310
    %vm1982 = vweird.f32 %v1976
    %vm1983 = vmor %vm1981, %vm1982
    %v1984 = vsel %vm1983, %v1976, %v1980
    %v1985 = vand.u32 2147483647, %v1310
    %vm1986 = vcmp.eq.f32.partialorder %v1985, 8.507059e+37
    %v1987 = vand.u32 %v1310, 2147483648
    %v1988 = vor.u32 1.1754944e-38, %v1987
    %v1989 = vsel %vm1986, %v1988, %v1984
    %v1990 = vmul.f32 1.0, %v1989
    %v1991 = vrcp.pop %v1311
    %v1992 = vmul.f32 %v1311, %v1991
    %v1993 = vsub.f32 1.0, %v1992
    %v1994 = vmul.f32 %v1991, %v1993
    %v1995 = vadd.f32 %v1991, %v1994
    %vm1996 = vweird.f32 %v1311
    %vm1997 = vweird.f32 %v1991
    %vm1998 = vmor %vm1996, %vm1997
    %v1999 = vsel %vm1998, %v1991, %v1995
    %v2000 = vand.u32 2147483647, %v1311
    %vm2001 = vcmp.eq.f32.partialorder %v2000, 8.507059e+37
    %v2002 = vand.u32 %v1311, 2147483648
    %v2003 = vor.u32 1.1754944e-38, %v2002
    %v2004 = vsel %vm2001, %v2003, %v1999
    %v2005 = vmul.f32 1.0, %v2004
    %v2006 = vrcp.pop %v1312
    %v2007 = vmul.f32 %v1312, %v2006
    %v2008 = vsub.f32 1.0, %v2007
    %v2009 = vmul.f32 %v2006, %v2008
    %v2010 = vadd.f32 %v2006, %v2009
    %vm2011 = vweird.f32 %v1312
    %vm2012 = vweird.f32 %v2006
    %vm2013 = vmor %vm2011, %vm2012
    %v2014 = vsel %vm2013, %v2006, %v2010
    %v2015 = vand.u32 2147483647, %v1312
    %vm2016 = vcmp.eq.f32.partialorder %v2015, 8.507059e+37
    %v2017 = vand.u32 %v1312, 2147483648
    %v2018 = vor.u32 1.1754944e-38, %v2017
    %v2019 = vsel %vm2016, %v2018, %v2014
    %v2020 = vmul.f32 1.0, %v2019
    %v2021 = vrcp.pop %v1313
    %v2022 = vmul.f32 %v1313, %v2021
    %v2023 = vsub.f32 1.0, %v2022
    %v2024 = vmul.f32 %v2021, %v2023
    %v2025 = vadd.f32 %v2021, %v2024
    %vm2026 = vweird.f32 %v1313
    %vm2027 = vweird.f32 %v2021
    %vm2028 = vmor %vm2026, %vm2027
    %v2029 = vsel %vm2028, %v2021, %v2025
    %v2030 = vand.u32 2147483647, %v1313
    %vm2031 = vcmp.eq.f32.partialorder %v2030, 8.507059e+37
    %v2032 = vand.u32 %v1313, 2147483648
    %v2033 = vor.u32 1.1754944e-38, %v2032
    %v2034 = vsel %vm2031, %v2033, %v2029
    %v2035 = vmul.f32 1.0, %v2034
    %v2036 = vrcp.pop %v1314
    %v2037 = vmul.f32 %v1314, %v2036
    %v2038 = vsub.f32 1.0, %v2037
    %v2039 = vmul.f32 %v2036, %v2038
    %v2040 = vadd.f32 %v2036, %v2039
    %vm2041 = vweird.f32 %v1314
    %vm2042 = vweird.f32 %v2036
    %vm2043 = vmor %vm2041, %vm2042
    %v2044 = vsel %vm2043, %v2036, %v2040
    %v2045 = vand.u32 2147483647, %v1314
    %vm2046 = vcmp.eq.f32.partialorder %v2045, 8.507059e+37
    %v2047 = vand.u32 %v1314, 2147483648
    %v2048 = vor.u32 1.1754944e-38, %v2047
    %v2049 = vsel %vm2046, %v2048, %v2044
    %v2050 = vmul.f32 1.0, %v2049
    %v2051 = vrcp.pop %v1315
    %v2052 = vmul.f32 %v1315, %v2051
    %v2053 = vsub.f32 1.0, %v2052
    %v2054 = vmul.f32 %v2051, %v2053
    %v2055 = vadd.f32 %v2051, %v2054
    %vm2056 = vweird.f32 %v1315
    %vm2057 = vweird.f32 %v2051
    %vm2058 = vmor %vm2056, %vm2057
    %v2059 = vsel %vm2058, %v2051, %v2055
    %v2060 = vand.u32 2147483647, %v1315
    %vm2061 = vcmp.eq.f32.partialorder %v2060, 8.507059e+37
    %v2062 = vand.u32 %v1315, 2147483648
    %v2063 = vor.u32 1.1754944e-38, %v2062
    %v2064 = vsel %vm2061, %v2063, %v2059
    %v2065 = vmul.f32 1.0, %v2064
    %v2066 = vrcp.pop %v1316
    %v2067 = vmul.f32 %v1316, %v2066
    %v2068 = vsub.f32 1.0, %v2067
    %v2069 = vmul.f32 %v2066, %v2068
    %v2070 = vadd.f32 %v2066, %v2069
    %vm2071 = vweird.f32 %v1316
    %vm2072 = vweird.f32 %v2066
    %vm2073 = vmor %vm2071, %vm2072
    %v2074 = vsel %vm2073, %v2066, %v2070
    %v2075 = vand.u32 2147483647, %v1316
    %vm2076 = vcmp.eq.f32.partialorder %v2075, 8.507059e+37
    %v2077 = vand.u32 %v1316, 2147483648
    %v2078 = vor.u32 1.1754944e-38, %v2077
    %v2079 = vsel %vm2076, %v2078, %v2074
    %v2080 = vmul.f32 1.0, %v2079
    %v2081 = vrcp.pop %v1317
    %v2082 = vmul.f32 %v1317, %v2081
    %v2083 = vsub.f32 1.0, %v2082
    %v2084 = vmul.f32 %v2081, %v2083
    %v2085 = vadd.f32 %v2081, %v2084
    %vm2086 = vweird.f32 %v1317
    %vm2087 = vweird.f32 %v2081
    %vm2088 = vmor %vm2086, %vm2087
    %v2089 = vsel %vm2088, %v2081, %v2085
    %v2090 = vand.u32 2147483647, %v1317
    %vm2091 = vcmp.eq.f32.partialorder %v2090, 8.507059e+37
    %v2092 = vand.u32 %v1317, 2147483648
    %v2093 = vor.u32 1.1754944e-38, %v2092
    %v2094 = vsel %vm2091, %v2093, %v2089
    %v2095 = vmul.f32 1.0, %v2094
    %v2096 = vrcp.pop %v1318
    %v2097 = vmul.f32 %v1318, %v2096
    %v2098 = vsub.f32 1.0, %v2097
    %v2099 = vmul.f32 %v2096, %v2098
    %v2100 = vadd.f32 %v2096, %v2099
    %vm2101 = vweird.f32 %v1318
    %vm2102 = vweird.f32 %v2096
    %vm2103 = vmor %vm2101, %vm2102
    %v2104 = vsel %vm2103, %v2096, %v2100
    %v2105 = vand.u32 2147483647, %v1318
    %vm2106 = vcmp.eq.f32.partialorder %v2105, 8.507059e+37
    %v2107 = vand.u32 %v1318, 2147483648
    %v2108 = vor.u32 1.1754944e-38, %v2107
    %v2109 = vsel %vm2106, %v2108, %v2104
    %v2110 = vmul.f32 1.0, %v2109
    %v2111 = vrcp.pop %v1319
    %v2112 = vmul.f32 %v1319, %v2111
    %v2113 = vsub.f32 1.0, %v2112
    %v2114 = vmul.f32 %v2111, %v2113
    %v2115 = vadd.f32 %v2111, %v2114
    %vm2116 = vweird.f32 %v1319
    %vm2117 = vweird.f32 %v2111
    %vm2118 = vmor %vm2116, %vm2117
    %v2119 = vsel %vm2118, %v2111, %v2115
    %v2120 = vand.u32 2147483647, %v1319
    %vm2121 = vcmp.eq.f32.partialorder %v2120, 8.507059e+37
    %v2122 = vand.u32 %v1319, 2147483648
    %v2123 = vor.u32 1.1754944e-38, %v2122
    %v2124 = vsel %vm2121, %v2123, %v2119
    %v2125 = vmul.f32 1.0, %v2124
    %v2126 = vrcp.pop %v1320
    %v2127 = vmul.f32 %v1320, %v2126
    %v2128 = vsub.f32 1.0, %v2127
    %v2129 = vmul.f32 %v2126, %v2128
    %v2130 = vadd.f32 %v2126, %v2129
    %vm2131 = vweird.f32 %v1320
    %vm2132 = vweird.f32 %v2126
    %vm2133 = vmor %vm2131, %vm2132
    %v2134 = vsel %vm2133, %v2126, %v2130
    %v2135 = vand.u32 2147483647, %v1320
    %vm2136 = vcmp.eq.f32.partialorder %v2135, 8.507059e+37
    %v2137 = vand.u32 %v1320, 2147483648
    %v2138 = vor.u32 1.1754944e-38, %v2137
    %v2139 = vsel %vm2136, %v2138, %v2134
    %v2140 = vmul.f32 1.0, %v2139
    %v2141 = vrcp.pop %v1321
    %v2142 = vmul.f32 %v1321, %v2141
    %v2143 = vsub.f32 1.0, %v2142
    %v2144 = vmul.f32 %v2141, %v2143
    %v2145 = vadd.f32 %v2141, %v2144
    %vm2146 = vweird.f32 %v1321
    %vm2147 = vweird.f32 %v2141
    %vm2148 = vmor %vm2146, %vm2147
    %v2149 = vsel %vm2148, %v2141, %v2145
    %v2150 = vand.u32 2147483647, %v1321
    %vm2151 = vcmp.eq.f32.partialorder %v2150, 8.507059e+37
    %v2152 = vand.u32 %v1321, 2147483648
    %v2153 = vor.u32 1.1754944e-38, %v2152
    %v2154 = vsel %vm2151, %v2153, %v2149
    %v2155 = vmul.f32 1.0, %v2154
    %v2156 = vrcp.pop %v1322
    %v2157 = vmul.f32 %v1322, %v2156
    %v2158 = vsub.f32 1.0, %v2157
    %v2159 = vmul.f32 %v2156, %v2158
    %v2160 = vadd.f32 %v2156, %v2159
    %vm2161 = vweird.f32 %v1322
    %vm2162 = vweird.f32 %v2156
    %vm2163 = vmor %vm2161, %vm2162
    %v2164 = vsel %vm2163, %v2156, %v2160
    %v2165 = vand.u32 2147483647, %v1322
    %vm2166 = vcmp.eq.f32.partialorder %v2165, 8.507059e+37
    %v2167 = vand.u32 %v1322, 2147483648
    %v2168 = vor.u32 1.1754944e-38, %v2167
    %v2169 = vsel %vm2166, %v2168, %v2164
    %v2170 = vmul.f32 1.0, %v2169
    %v2171 = vrcp.pop %v1323
    %v2172 = vmul.f32 %v1323, %v2171
    %v2173 = vsub.f32 1.0, %v2172
    %v2174 = vmul.f32 %v2171, %v2173
    %v2175 = vadd.f32 %v2171, %v2174
    %vm2176 = vweird.f32 %v1323
    %vm2177 = vweird.f32 %v2171
    %vm2178 = vmor %vm2176, %vm2177
    %v2179 = vsel %vm2178, %v2171, %v2175
    %v2180 = vand.u32 2147483647, %v1323
    %vm2181 = vcmp.eq.f32.partialorder %v2180, 8.507059e+37
    %v2182 = vand.u32 %v1323, 2147483648
    %v2183 = vor.u32 1.1754944e-38, %v2182
    %v2184 = vsel %vm2181, %v2183, %v2179
    %v2185 = vmul.f32 1.0, %v2184
    %v2186 = vrcp.pop %v1324
    %v2187 = vmul.f32 %v1324, %v2186
    %v2188 = vsub.f32 1.0, %v2187
    %v2189 = vmul.f32 %v2186, %v2188
    %v2190 = vadd.f32 %v2186, %v2189
    %vm2191 = vweird.f32 %v1324
    %vm2192 = vweird.f32 %v2186
    %vm2193 = vmor %vm2191, %vm2192
    %v2194 = vsel %vm2193, %v2186, %v2190
    %v2195 = vand.u32 2147483647, %v1324
    %vm2196 = vcmp.eq.f32.partialorder %v2195, 8.507059e+37
    %v2197 = vand.u32 %v1324, 2147483648
    %v2198 = vor.u32 1.1754944e-38, %v2197
    %v2199 = vsel %vm2196, %v2198, %v2194
    %v2200 = vmul.f32 1.0, %v2199
    %v2201 = vrcp.pop %v1325
    %v2202 = vmul.f32 %v1325, %v2201
    %v2203 = vsub.f32 1.0, %v2202
    %v2204 = vmul.f32 %v2201, %v2203
    %v2205 = vadd.f32 %v2201, %v2204
    %vm2206 = vweird.f32 %v1325
    %vm2207 = vweird.f32 %v2201
    %vm2208 = vmor %vm2206, %vm2207
    %v2209 = vsel %vm2208, %v2201, %v2205
    %v2210 = vand.u32 2147483647, %v1325
    %vm2211 = vcmp.eq.f32.partialorder %v2210, 8.507059e+37
    %v2212 = vand.u32 %v1325, 2147483648
    %v2213 = vor.u32 1.1754944e-38, %v2212
    %v2214 = vsel %vm2211, %v2213, %v2209
    %v2215 = vmul.f32 1.0, %v2214
    %v2216 = vrcp.pop %v1326
    %v2217 = vmul.f32 %v1326, %v2216
    %v2218 = vsub.f32 1.0, %v2217
    %v2219 = vmul.f32 %v2216, %v2218
    %v2220 = vadd.f32 %v2216, %v2219
    %vm2221 = vweird.f32 %v1326
    %vm2222 = vweird.f32 %v2216
    %vm2223 = vmor %vm2221, %vm2222
    %v2224 = vsel %vm2223, %v2216, %v2220
    %v2225 = vand.u32 2147483647, %v1326
    %vm2226 = vcmp.eq.f32.partialorder %v2225, 8.507059e+37
    %v2227 = vand.u32 %v1326, 2147483648
    %v2228 = vor.u32 1.1754944e-38, %v2227
    %v2229 = vsel %vm2226, %v2228, %v2224
    %v2230 = vmul.f32 1.0, %v2229
    %v2231 = vrcp.pop %v1327
    %v2232 = vmul.f32 %v1327, %v2231
    %v2233 = vsub.f32 1.0, %v2232
    %v2234 = vmul.f32 %v2231, %v2233
    %v2235 = vadd.f32 %v2231, %v2234
    %vm2236 = vweird.f32 %v1327
    %vm2237 = vweird.f32 %v2231
    %vm2238 = vmor %vm2236, %vm2237
    %v2239 = vsel %vm2238, %v2231, %v2235
    %v2240 = vand.u32 2147483647, %v1327
    %vm2241 = vcmp.eq.f32.partialorder %v2240, 8.507059e+37
    %v2242 = vand.u32 %v1327, 2147483648
    %v2243 = vor.u32 1.1754944e-38, %v2242
    %v2244 = vsel %vm2241, %v2243, %v2239
    %v2245 = vmul.f32 1.0, %v2244
    %v2246 = vrcp.pop %v1328
    %v2247 = vmul.f32 %v1328, %v2246
    %v2248 = vsub.f32 1.0, %v2247
    %v2249 = vmul.f32 %v2246, %v2248
    %v2250 = vadd.f32 %v2246, %v2249
    %vm2251 = vweird.f32 %v1328
    %vm2252 = vweird.f32 %v2246
    %vm2253 = vmor %vm2251, %vm2252
    %v2254 = vsel %vm2253, %v2246, %v2250
    %v2255 = vand.u32 2147483647, %v1328
    %vm2256 = vcmp.eq.f32.partialorder %v2255, 8.507059e+37
    %v2257 = vand.u32 %v1328, 2147483648
    %v2258 = vor.u32 1.1754944e-38, %v2257
    %v2259 = vsel %vm2256, %v2258, %v2254
    %v2260 = vmul.f32 1.0, %v2259
    %v2261 = vrcp.pop %v1329
    %v2262 = vmul.f32 %v1329, %v2261
    %v2263 = vsub.f32 1.0, %v2262
    %v2264 = vmul.f32 %v2261, %v2263
    %v2265 = vadd.f32 %v2261, %v2264
    %vm2266 = vweird.f32 %v1329
    %vm2267 = vweird.f32 %v2261
    %vm2268 = vmor %vm2266, %vm2267
    %v2269 = vsel %vm2268, %v2261, %v2265
    %v2270 = vand.u32 2147483647, %v1329
    %vm2271 = vcmp.eq.f32.partialorder %v2270, 8.507059e+37
    %v2272 = vand.u32 %v1329, 2147483648
    %v2273 = vor.u32 1.1754944e-38, %v2272
    %v2274 = vsel %vm2271, %v2273, %v2269
    %v2275 = vmul.f32 1.0, %v2274
    %v2276 = vrcp.pop %v1330
    %v2277 = vmul.f32 %v1330, %v2276
    %v2278 = vsub.f32 1.0, %v2277
    %v2279 = vmul.f32 %v2276, %v2278
    %v2280 = vadd.f32 %v2276, %v2279
    %vm2281 = vweird.f32 %v1330
    %vm2282 = vweird.f32 %v2276
    %vm2283 = vmor %vm2281, %vm2282
    %v2284 = vsel %vm2283, %v2276, %v2280
    %v2285 = vand.u32 2147483647, %v1330
    %vm2286 = vcmp.eq.f32.partialorder %v2285, 8.507059e+37
    %v2287 = vand.u32 %v1330, 2147483648
    %v2288 = vor.u32 1.1754944e-38, %v2287
    %v2289 = vsel %vm2286, %v2288, %v2284
    %v2290 = vmul.f32 1.0, %v2289
    %s2291 = smul.u32 0, 512
    %v2292 = vlaneseq
    %v2293 = vshrl.u32 %v2292, 7
    %v2294 = vadd.s32 %v2293, 8
    %v2295 = vadd.s32 %v2293, 16
    %v2296 = vadd.s32 %v2293, 24
    %v2297 = vadd.s32 %v2293, 32
    %v2298 = vadd.s32 %v2293, 40
    %v2299 = vadd.s32 %v2293, 48
    %v2300 = vadd.s32 %v2293, 56
    %v2301 = vadd.s32 %v2293, 64
    %v2302 = vadd.s32 %v2293, 72
    %v2303 = vadd.s32 %v2293, 80
    %v2304 = vadd.s32 %v2293, 88
    %v2305 = vadd.s32 %v2293, 96
    %v2306 = vadd.s32 %v2293, 104
    %v2307 = vadd.s32 %v2293, 112
    %v2308 = vadd.s32 %v2293, 120
    %v2309 = vadd.s32 %v2293, 128
    %v2310 = vadd.s32 %v2293, 136
    %v2311 = vadd.s32 %v2293, 144
    %v2312 = vadd.s32 %v2293, 152
    %v2313 = vadd.s32 %v2293, 160
    %v2314 = vadd.s32 %v2293, 168
    %v2315 = vadd.s32 %v2293, 176
    %v2316 = vadd.s32 %v2293, 184
    %v2317 = vadd.s32 %v2293, 192
    %v2318 = vadd.s32 %v2293, 200
    %v2319 = vadd.s32 %v2293, 208
    %v2320 = vadd.s32 %v2293, 216
    %v2321 = vadd.s32 %v2293, 224
    %v2322 = vadd.s32 %v2293, 232
    %v2323 = vadd.s32 %v2293, 240
    %v2324 = vadd.s32 %v2293, 248
    %v2325 = vadd.s32 %v2293, 256
    %v2326 = vadd.s32 %v2293, 264
    %v2327 = vadd.s32 %v2293, 272
    %v2328 = vadd.s32 %v2293, 280
    %v2329 = vadd.s32 %v2293, 288
    %v2330 = vadd.s32 %v2293, 296
    %v2331 = vadd.s32 %v2293, 304
    %v2332 = vadd.s32 %v2293, 312
    %v2333 = vadd.s32 %v2293, 320
    %v2334 = vadd.s32 %v2293, 328
    %v2335 = vadd.s32 %v2293, 336
    %v2336 = vadd.s32 %v2293, 344
    %v2337 = vadd.s32 %v2293, 352
    %v2338 = vadd.s32 %v2293, 360
    %v2339 = vadd.s32 %v2293, 368
    %v2340 = vadd.s32 %v2293, 376
    %v2341 = vadd.s32 %v2293, 384
    %v2342 = vadd.s32 %v2293, 392
    %v2343 = vadd.s32 %v2293, 400
    %v2344 = vadd.s32 %v2293, 408
    %v2345 = vadd.s32 %v2293, 416
    %v2346 = vadd.s32 %v2293, 424
    %v2347 = vadd.s32 %v2293, 432
    %v2348 = vadd.s32 %v2293, 440
    %v2349 = vadd.s32 %v2293, 448
    %v2350 = vadd.s32 %v2293, 456
    %v2351 = vadd.s32 %v2293, 464
    %v2352 = vadd.s32 %v2293, 472
    %v2353 = vadd.s32 %v2293, 480
    %v2354 = vadd.s32 %v2293, 488
    %v2355 = vadd.s32 %v2293, 496
    %v2356 = vadd.s32 %v2293, 504
    %v2357 = vstv %s2291
    %v2358 = vadd.s32 %v2357, %v2293
    %v2359 = vadd.s32 %v2357, %v2294
    %v2360 = vadd.s32 %v2357, %v2295
    %v2361 = vadd.s32 %v2357, %v2296
    %v2362 = vadd.s32 %v2357, %v2297
    %v2363 = vadd.s32 %v2357, %v2298
    %v2364 = vadd.s32 %v2357, %v2299
    %v2365 = vadd.s32 %v2357, %v2300
    %v2366 = vadd.s32 %v2357, %v2301
    %v2367 = vadd.s32 %v2357, %v2302
    %v2368 = vadd.s32 %v2357, %v2303
    %v2369 = vadd.s32 %v2357, %v2304
    %v2370 = vadd.s32 %v2357, %v2305
    %v2371 = vadd.s32 %v2357, %v2306
    %v2372 = vadd.s32 %v2357, %v2307
    %v2373 = vadd.s32 %v2357, %v2308
    %v2374 = vadd.s32 %v2357, %v2309
    %v2375 = vadd.s32 %v2357, %v2310
    %v2376 = vadd.s32 %v2357, %v2311
    %v2377 = vadd.s32 %v2357, %v2312
    %v2378 = vadd.s32 %v2357, %v2313
    %v2379 = vadd.s32 %v2357, %v2314
    %v2380 = vadd.s32 %v2357, %v2315
    %v2381 = vadd.s32 %v2357, %v2316
    %v2382 = vadd.s32 %v2357, %v2317
    %v2383 = vadd.s32 %v2357, %v2318
    %v2384 = vadd.s32 %v2357, %v2319
    %v2385 = vadd.s32 %v2357, %v2320
    %v2386 = vadd.s32 %v2357, %v2321
    %v2387 = vadd.s32 %v2357, %v2322
    %v2388 = vadd.s32 %v2357, %v2323
    %v2389 = vadd.s32 %v2357, %v2324
    %v2390 = vadd.s32 %v2357, %v2325
    %v2391 = vadd.s32 %v2357, %v2326
    %v2392 = vadd.s32 %v2357, %v2327
    %v2393 = vadd.s32 %v2357, %v2328
    %v2394 = vadd.s32 %v2357, %v2329
    %v2395 = vadd.s32 %v2357, %v2330
    %v2396 = vadd.s32 %v2357, %v2331
    %v2397 = vadd.s32 %v2357, %v2332
    %v2398 = vadd.s32 %v2357, %v2333
    %v2399 = vadd.s32 %v2357, %v2334
    %v2400 = vadd.s32 %v2357, %v2335
    %v2401 = vadd.s32 %v2357, %v2336
    %v2402 = vadd.s32 %v2357, %v2337
    %v2403 = vadd.s32 %v2357, %v2338
    %v2404 = vadd.s32 %v2357, %v2339
    %v2405 = vadd.s32 %v2357, %v2340
    %v2406 = vadd.s32 %v2357, %v2341
    %v2407 = vadd.s32 %v2357, %v2342
    %v2408 = vadd.s32 %v2357, %v2343
    %v2409 = vadd.s32 %v2357, %v2344
    %v2410 = vadd.s32 %v2357, %v2345
    %v2411 = vadd.s32 %v2357, %v2346
    %v2412 = vadd.s32 %v2357, %v2347
    %v2413 = vadd.s32 %v2357, %v2348
    %v2414 = vadd.s32 %v2357, %v2349
    %v2415 = vadd.s32 %v2357, %v2350
    %v2416 = vadd.s32 %v2357, %v2351
    %v2417 = vadd.s32 %v2357, %v2352
    %v2418 = vadd.s32 %v2357, %v2353
    %v2419 = vadd.s32 %v2357, %v2354
    %v2420 = vadd.s32 %v2357, %v2355
    %v2421 = vadd.s32 %v2357, %v2356
    %vm2422 = vcmp.lt.s32.totalorder %v2358, 512
    %vm2423 = vcmp.lt.s32.totalorder %v2359, 512
    %vm2424 = vcmp.lt.s32.totalorder %v2360, 512
    %vm2425 = vcmp.lt.s32.totalorder %v2361, 512
    %vm2426 = vcmp.lt.s32.totalorder %v2362, 512
    %vm2427 = vcmp.lt.s32.totalorder %v2363, 512
    %vm2428 = vcmp.lt.s32.totalorder %v2364, 512
    %vm2429 = vcmp.lt.s32.totalorder %v2365, 512
    %vm2430 = vcmp.lt.s32.totalorder %v2366, 512
    %vm2431 = vcmp.lt.s32.totalorder %v2367, 512
    %vm2432 = vcmp.lt.s32.totalorder %v2368, 512
    %vm2433 = vcmp.lt.s32.totalorder %v2369, 512
    %vm2434 = vcmp.lt.s32.totalorder %v2370, 512
    %vm2435 = vcmp.lt.s32.totalorder %v2371, 512
    %vm2436 = vcmp.lt.s32.totalorder %v2372, 512
    %vm2437 = vcmp.lt.s32.totalorder %v2373, 512
    %vm2438 = vcmp.lt.s32.totalorder %v2374, 512
    %vm2439 = vcmp.lt.s32.totalorder %v2375, 512
    %vm2440 = vcmp.lt.s32.totalorder %v2376, 512
    %vm2441 = vcmp.lt.s32.totalorder %v2377, 512
    %vm2442 = vcmp.lt.s32.totalorder %v2378, 512
    %vm2443 = vcmp.lt.s32.totalorder %v2379, 512
    %vm2444 = vcmp.lt.s32.totalorder %v2380, 512
    %vm2445 = vcmp.lt.s32.totalorder %v2381, 512
    %vm2446 = vcmp.lt.s32.totalorder %v2382, 512
    %vm2447 = vcmp.lt.s32.totalorder %v2383, 512
    %vm2448 = vcmp.lt.s32.totalorder %v2384, 512
    %vm2449 = vcmp.lt.s32.totalorder %v2385, 512
    %vm2450 = vcmp.lt.s32.totalorder %v2386, 512
    %vm2451 = vcmp.lt.s32.totalorder %v2387, 512
    %vm2452 = vcmp.lt.s32.totalorder %v2388, 512
    %vm2453 = vcmp.lt.s32.totalorder %v2389, 512
    %vm2454 = vcmp.lt.s32.totalorder %v2390, 512
    %vm2455 = vcmp.lt.s32.totalorder %v2391, 512
    %vm2456 = vcmp.lt.s32.totalorder %v2392, 512
    %vm2457 = vcmp.lt.s32.totalorder %v2393, 512
    %vm2458 = vcmp.lt.s32.totalorder %v2394, 512
    %vm2459 = vcmp.lt.s32.totalorder %v2395, 512
    %vm2460 = vcmp.lt.s32.totalorder %v2396, 512
    %vm2461 = vcmp.lt.s32.totalorder %v2397, 512
    %vm2462 = vcmp.lt.s32.totalorder %v2398, 512
    %vm2463 = vcmp.lt.s32.totalorder %v2399, 512
    %vm2464 = vcmp.lt.s32.totalorder %v2400, 512
    %vm2465 = vcmp.lt.s32.totalorder %v2401, 512
    %vm2466 = vcmp.lt.s32.totalorder %v2402, 512
    %vm2467 = vcmp.lt.s32.totalorder %v2403, 512
    %vm2468 = vcmp.lt.s32.totalorder %v2404, 512
    %vm2469 = vcmp.lt.s32.totalorder %v2405, 512
    %vm2470 = vcmp.lt.s32.totalorder %v2406, 512
    %vm2471 = vcmp.lt.s32.totalorder %v2407, 512
    %vm2472 = vcmp.lt.s32.totalorder %v2408, 512
    %vm2473 = vcmp.lt.s32.totalorder %v2409, 512
    %vm2474 = vcmp.lt.s32.totalorder %v2410, 512
    %vm2475 = vcmp.lt.s32.totalorder %v2411, 512
    %vm2476 = vcmp.lt.s32.totalorder %v2412, 512
    %vm2477 = vcmp.lt.s32.totalorder %v2413, 512
    %vm2478 = vcmp.lt.s32.totalorder %v2414, 512
    %vm2479 = vcmp.lt.s32.totalorder %v2415, 512
    %vm2480 = vcmp.lt.s32.totalorder %v2416, 512
    %vm2481 = vcmp.lt.s32.totalorder %v2417, 512
    %vm2482 = vcmp.lt.s32.totalorder %v2418, 512
    %vm2483 = vcmp.lt.s32.totalorder %v2419, 512
    %vm2484 = vcmp.lt.s32.totalorder %v2420, 512
    %vm2485 = vcmp.lt.s32.totalorder %v2421, 512
    %v2486 = vsel %vm2422, %v1345, 0.0
    %v2487 = vsel %vm2423, %v1360, 0.0
    %v2488 = vsel %vm2424, %v1375, 0.0
    %v2489 = vsel %vm2425, %v1390, 0.0
    %v2490 = vsel %vm2426, %v1405, 0.0
    %v2491 = vsel %vm2427, %v1420, 0.0
    %v2492 = vsel %vm2428, %v1435, 0.0
    %v2493 = vsel %vm2429, %v1450, 0.0
    %v2494 = vsel %vm2430, %v1465, 0.0
    %v2495 = vsel %vm2431, %v1480, 0.0
    %v2496 = vsel %vm2432, %v1495, 0.0
    %v2497 = vsel %vm2433, %v1510, 0.0
    %v2498 = vsel %vm2434, %v1525, 0.0
    %v2499 = vsel %vm2435, %v1540, 0.0
    %v2500 = vsel %vm2436, %v1555, 0.0
    %v2501 = vsel %vm2437, %v1570, 0.0
    %v2502 = vsel %vm2438, %v1585, 0.0
    %v2503 = vsel %vm2439, %v1600, 0.0
    %v2504 = vsel %vm2440, %v1615, 0.0
    %v2505 = vsel %vm2441, %v1630, 0.0
    %v2506 = vsel %vm2442, %v1645, 0.0
    %v2507 = vsel %vm2443, %v1660, 0.0
    %v2508 = vsel %vm2444, %v1675, 0.0
    %v2509 = vsel %vm2445, %v1690, 0.0
    %v2510 = vsel %vm2446, %v1705, 0.0
    %v2511 = vsel %vm2447, %v1720, 0.0
    %v2512 = vsel %vm2448, %v1735, 0.0
    %v2513 = vsel %vm2449, %v1750, 0.0
    %v2514 = vsel %vm2450, %v1765, 0.0
    %v2515 = vsel %vm2451, %v1780, 0.0
    %v2516 = vsel %vm2452, %v1795, 0.0
    %v2517 = vsel %vm2453, %v1810, 0.0
    %v2518 = vsel %vm2454, %v1825, 0.0
    %v2519 = vsel %vm2455, %v1840, 0.0
    %v2520 = vsel %vm2456, %v1855, 0.0
    %v2521 = vsel %vm2457, %v1870, 0.0
    %v2522 = vsel %vm2458, %v1885, 0.0
    %v2523 = vsel %vm2459, %v1900, 0.0
    %v2524 = vsel %vm2460, %v1915, 0.0
    %v2525 = vsel %vm2461, %v1930, 0.0
    %v2526 = vsel %vm2462, %v1945, 0.0
    %v2527 = vsel %vm2463, %v1960, 0.0
    %v2528 = vsel %vm2464, %v1975, 0.0
    %v2529 = vsel %vm2465, %v1990, 0.0
    %v2530 = vsel %vm2466, %v2005, 0.0
    %v2531 = vsel %vm2467, %v2020, 0.0
    %v2532 = vsel %vm2468, %v2035, 0.0
    %v2533 = vsel %vm2469, %v2050, 0.0
    %v2534 = vsel %vm2470, %v2065, 0.0
    %v2535 = vsel %vm2471, %v2080, 0.0
    %v2536 = vsel %vm2472, %v2095, 0.0
    %v2537 = vsel %vm2473, %v2110, 0.0
    %v2538 = vsel %vm2474, %v2125, 0.0
    %v2539 = vsel %vm2475, %v2140, 0.0
    %v2540 = vsel %vm2476, %v2155, 0.0
    %v2541 = vsel %vm2477, %v2170, 0.0
    %v2542 = vsel %vm2478, %v2185, 0.0
    %v2543 = vsel %vm2479, %v2200, 0.0
    %v2544 = vsel %vm2480, %v2215, 0.0
    %v2545 = vsel %vm2481, %v2230, 0.0
    %v2546 = vsel %vm2482, %v2245, 0.0
    %v2547 = vsel %vm2483, %v2260, 0.0
    %v2548 = vsel %vm2484, %v2275, 0.0
    %v2549 = vsel %vm2485, %v2290, 0.0
    %v2550 = vld [vmem:[#allocation3] sm:$0x1]
    %vm2551 = vcmask 7168
    %v2552 = vsel %vm2551, %v2486, 0.0
    %v2553 = vsel %vm2551, %v2487, 0.0
    %v2554 = vadd.f32 %v2552, %v2553
    %v2555 = vsel %vm2551, %v2488, 0.0
    %v2556 = vadd.f32 %v2554, %v2555
    %v2557 = vsel %vm2551, %v2489, 0.0
    %v2558 = vadd.f32 %v2556, %v2557
    %v2559 = vsel %vm2551, %v2490, 0.0
    %v2560 = vadd.f32 %v2558, %v2559
    %v2561 = vsel %vm2551, %v2491, 0.0
    %v2562 = vadd.f32 %v2560, %v2561
    %v2563 = vsel %vm2551, %v2492, 0.0
    %v2564 = vadd.f32 %v2562, %v2563
    %v2565 = vsel %vm2551, %v2493, 0.0
    %v2566 = vadd.f32 %v2564, %v2565
    %v2567 = vsel %vm2551, %v2494, 0.0
    %v2568 = vadd.f32 %v2566, %v2567
    %v2569 = vsel %vm2551, %v2495, 0.0
    %v2570 = vadd.f32 %v2568, %v2569
    %v2571 = vsel %vm2551, %v2496, 0.0
    %v2572 = vadd.f32 %v2570, %v2571
    %v2573 = vsel %vm2551, %v2497, 0.0
    %v2574 = vadd.f32 %v2572, %v2573
    %v2575 = vsel %vm2551, %v2498, 0.0
    %v2576 = vadd.f32 %v2574, %v2575
    %v2577 = vsel %vm2551, %v2499, 0.0
    %v2578 = vadd.f32 %v2576, %v2577
    %v2579 = vsel %vm2551, %v2500, 0.0
    %v2580 = vadd.f32 %v2578, %v2579
    %v2581 = vsel %vm2551, %v2501, 0.0
    %v2582 = vadd.f32 %v2580, %v2581
    %v2583 = vsel %vm2551, %v2502, 0.0
    %v2584 = vadd.f32 %v2582, %v2583
    %v2585 = vsel %vm2551, %v2503, 0.0
    %v2586 = vadd.f32 %v2584, %v2585
    %v2587 = vsel %vm2551, %v2504, 0.0
    %v2588 = vadd.f32 %v2586, %v2587
    %v2589 = vsel %vm2551, %v2505, 0.0
    %v2590 = vadd.f32 %v2588, %v2589
    %v2591 = vsel %vm2551, %v2506, 0.0
    %v2592 = vadd.f32 %v2590, %v2591
    %v2593 = vsel %vm2551, %v2507, 0.0
    %v2594 = vadd.f32 %v2592, %v2593
    %v2595 = vsel %vm2551, %v2508, 0.0
    %v2596 = vadd.f32 %v2594, %v2595
    %v2597 = vsel %vm2551, %v2509, 0.0
    %v2598 = vadd.f32 %v2596, %v2597
    %v2599 = vsel %vm2551, %v2510, 0.0
    %v2600 = vadd.f32 %v2598, %v2599
    %v2601 = vsel %vm2551, %v2511, 0.0
    %v2602 = vadd.f32 %v2600, %v2601
    %v2603 = vsel %vm2551, %v2512, 0.0
    %v2604 = vadd.f32 %v2602, %v2603
    %v2605 = vsel %vm2551, %v2513, 0.0
    %v2606 = vadd.f32 %v2604, %v2605
    %v2607 = vsel %vm2551, %v2514, 0.0
    %v2608 = vadd.f32 %v2606, %v2607
    %v2609 = vsel %vm2551, %v2515, 0.0
    %v2610 = vadd.f32 %v2608, %v2609
    %v2611 = vsel %vm2551, %v2516, 0.0
    %v2612 = vadd.f32 %v2610, %v2611
    %v2613 = vsel %vm2551, %v2517, 0.0
    %v2614 = vadd.f32 %v2612, %v2613
    %v2615 = vsel %vm2551, %v2518, 0.0
    %v2616 = vadd.f32 %v2614, %v2615
    %v2617 = vsel %vm2551, %v2519, 0.0
    %v2618 = vadd.f32 %v2616, %v2617
    %v2619 = vsel %vm2551, %v2520, 0.0
    %v2620 = vadd.f32 %v2618, %v2619
    %v2621 = vsel %vm2551, %v2521, 0.0
    %v2622 = vadd.f32 %v2620, %v2621
    %v2623 = vsel %vm2551, %v2522, 0.0
    %v2624 = vadd.f32 %v2622, %v2623
    %v2625 = vsel %vm2551, %v2523, 0.0
    %v2626 = vadd.f32 %v2624, %v2625
    %v2627 = vsel %vm2551, %v2524, 0.0
    %v2628 = vadd.f32 %v2626, %v2627
    %v2629 = vsel %vm2551, %v2525, 0.0
    %v2630 = vadd.f32 %v2628, %v2629
    %v2631 = vsel %vm2551, %v2526, 0.0
    %v2632 = vadd.f32 %v2630, %v2631
    %v2633 = vsel %vm2551, %v2527, 0.0
    %v2634 = vadd.f32 %v2632, %v2633
    %v2635 = vsel %vm2551, %v2528, 0.0
    %v2636 = vadd.f32 %v2634, %v2635
    %v2637 = vsel %vm2551, %v2529, 0.0
    %v2638 = vadd.f32 %v2636, %v2637
    %v2639 = vsel %vm2551, %v2530, 0.0
    %v2640 = vadd.f32 %v2638, %v2639
    %v2641 = vsel %vm2551, %v2531, 0.0
    %v2642 = vadd.f32 %v2640, %v2641
    %v2643 = vsel %vm2551, %v2532, 0.0
    %v2644 = vadd.f32 %v2642, %v2643
    %v2645 = vsel %vm2551, %v2533, 0.0
    %v2646 = vadd.f32 %v2644, %v2645
    %v2647 = vsel %vm2551, %v2534, 0.0
    %v2648 = vadd.f32 %v2646, %v2647
    %v2649 = vsel %vm2551, %v2535, 0.0
    %v2650 = vadd.f32 %v2648, %v2649
    %v2651 = vsel %vm2551, %v2536, 0.0
    %v2652 = vadd.f32 %v2650, %v2651
    %v2653 = vsel %vm2551, %v2537, 0.0
    %v2654 = vadd.f32 %v2652, %v2653
    %v2655 = vsel %vm2551, %v2538, 0.0
    %v2656 = vadd.f32 %v2654, %v2655
    %v2657 = vsel %vm2551, %v2539, 0.0
    %v2658 = vadd.f32 %v2656, %v2657
    %v2659 = vsel %vm2551, %v2540, 0.0
    %v2660 = vadd.f32 %v2658, %v2659
    %v2661 = vsel %vm2551, %v2541, 0.0
    %v2662 = vadd.f32 %v2660, %v2661
    %v2663 = vsel %vm2551, %v2542, 0.0
    %v2664 = vadd.f32 %v2662, %v2663
    %v2665 = vsel %vm2551, %v2543, 0.0
    %v2666 = vadd.f32 %v2664, %v2665
    %v2667 = vsel %vm2551, %v2544, 0.0
    %v2668 = vadd.f32 %v2666, %v2667
    %v2669 = vsel %vm2551, %v2545, 0.0
    %v2670 = vadd.f32 %v2668, %v2669
    %v2671 = vsel %vm2551, %v2546, 0.0
    %v2672 = vadd.f32 %v2670, %v2671
    %v2673 = vsel %vm2551, %v2547, 0.0
    %v2674 = vadd.f32 %v2672, %v2673
    %v2675 = vsel %vm2551, %v2548, 0.0
    %v2676 = vadd.f32 %v2674, %v2675
    %v2677 = vsel %vm2551, %v2549, 0.0
    %v2678 = vadd.f32 %v2676, %v2677
    %v2679 = vrot.slane %v2678, 4
    %v2680 = vadd.f32 %v2678, %v2679
    %v2681 = vrot.slane %v2680, 2
    %v2682 = vadd.f32 %v2680, %v2681
    %v2683 = vrot.slane %v2682, 1
    %v2684 = vadd.f32 %v2682, %v2683
    %v2685 = vadd.f32 %v2550, %v2684
    %vm2686 = vcmask 0
    %2687 = vst.msk [vmem:[#allocation3] sm:$0x1] %vm2686, %v2685
    // Predicated region
    $region18: #{ggc_forward.6} parent=1 // pred_check
      %p2688 = pneg %p17
    $region19: #{ggc_forward.6} parent=1 // pred_check_branch
      %2690 = sbr.rel (%p2688) target = $region21
    $region20: #{ggc_forward.6} parent=1 // pred_region
      %v2691 = vld [vmem:[#allocation3] sm:$0x1]
      %v2692 = vmul.f32 %v2691, 0.001953125
      %2693 = vst.msk [vmem:[#allocation3] sm:$0x1] %vm2686, %v2692
    $region21: #{ggc_forward.6} parent=1 // pred_fallthru
      _
    // Predicated region
    $region22: #{ggc_forward.6} parent=1 // pred_check
      _
    $region23: #{ggc_forward.6} parent=1 // pred_check_branch
      %2695 = sbr.rel (0) target = $region25
    $region24: #{ggc_forward.6} parent=1 // pred_region
      %2697 = vsyncadd [#allocation4], 0
      %s2699 = sshll.u32 [#allocation3], 4
      %s2700 = int_to_ptr.vmem [resolvable:$true] %s2699
      %s2701 = sshll.u32 %s3, 4
      %s2702 = int_to_ptr.hbm [resolvable:$true] %s2701
      %2704 = dma.vmem_to_hbm [thread:$0]  %s2700, 16, %s2702, [#allocation4]
    $region25: #{ggc_forward.6} parent=1 // pred_fallthru
      _
    // Predicated region
    $region26: #{ggc_forward.6} parent=1 // pred_check
      _
    $region27: #{ggc_forward.6} parent=1 // pred_check_branch
      %2706 = sbr.rel (0) target = $region29
    $region28: #{ggc_forward.6} parent=1 // pred_region
      %2708 = dma.done [#allocation4], 16
    $region29: #{ggc_forward.6} parent=1 // pred_fallthru
      _
    %2709 = vsyncpa [#allocation4], 1

// kernel: ggc_forward.7
$region0: #{ggc_forward.7}
  #allocation0 [shape = 'u32[]', space=smem, size = 0x4, offset = 0x4, fixed_abs, tag = 'smem constant byte address 0x4 - core index']
  #allocation1 [shape = 'u32[72,128]{1,0:T(1,128)}', space=vmem, size = 0x9000, scoped, tag = 'internal scratch']
  #allocation2 [shape = 'f32[1,1]{1,0:T(1,128)S(6)}', space=smem, size = 0x200, scoped, tag = 'scoped memory for ggc_forward.7']
  %s0 = inlined_call_operand.<no memory space> [shape: f32[1,1], index: 0, kind: input, shape index: {}]
  %s1 = inlined_call_operand.vmem [shape: f32[128,36], index: 1, kind: input, shape index: {}]
  %s2 = inlined_call_operand.vmem [shape: f32[128,4], index: 2, kind: input, shape index: {}]
  %s3 = inlined_call_operand.vmem [shape: f32[36,16], index: 3, kind: input, shape index: {}]
  %s4 = inlined_call_operand.vmem [shape: f32[4,16], index: 4, kind: input, shape index: {}]
  %s5 = inlined_call_operand.vmem [shape: f32[1,16], index: 5, kind: input, shape index: {}]
  %s6 = inlined_call_operand.vmem [shape: f32[1,16], index: 6, kind: input, shape index: {}]
  %s7 = inlined_call_operand.vmem [shape: f32[128,8], index: 7, kind: output, shape index: {}]
  %s8 = sld [smem:[#allocation0]]
  $region38: #{ggc_forward.7} parent=0
    _
  %s10 = ssub.s32 1, %s8
  %s11 = scalar_select 0, %s10, %s8
  %12 = sst [smem:[#allocation2]] %s0
  // Predicated region
  $region2: #{ggc_forward.7} parent=0 // pred_check
    _
  $region3: #{ggc_forward.7} parent=0 // pred_check_branch
    %14 = sbr.rel (0) target = $region5
  $region4: #{ggc_forward.7} parent=0 // pred_region
    _
  $region5: #{ggc_forward.7} parent=0 // pred_fallthru
    _
  // Predicated region
  $region6: #{ggc_forward.7} parent=0 // pred_check
    _
  $region7: #{ggc_forward.7} parent=0 // pred_check_branch
    %16 = sbr.rel (0) target = $region9
  $region8: #{ggc_forward.7} parent=0 // pred_region
    _
  $region9: #{ggc_forward.7} parent=0 // pred_fallthru
    _
  // Predicated region
  $region10: #{ggc_forward.7} parent=0 // pred_check
    _
  $region11: #{ggc_forward.7} parent=0 // pred_check_branch
    %18 = sbr.rel (0) target = $region13
  $region12: #{ggc_forward.7} parent=0 // pred_region
    _
  $region13: #{ggc_forward.7} parent=0 // pred_fallthru
    _
  // Predicated region
  $region14: #{ggc_forward.7} parent=0 // pred_check
    _
  $region15: #{ggc_forward.7} parent=0 // pred_check_branch
    %20 = sbr.rel (0) target = $region17
  $region16: #{ggc_forward.7} parent=0 // pred_region
    _
  $region17: #{ggc_forward.7} parent=0 // pred_fallthru
    _
  // Predicated region
  $region18: #{ggc_forward.7} parent=0 // pred_check
    _
  $region19: #{ggc_forward.7} parent=0 // pred_check_branch
    %22 = sbr.rel (0) target = $region21
  $region20: #{ggc_forward.7} parent=0 // pred_region
    _
  $region21: #{ggc_forward.7} parent=0 // pred_fallthru
    _
  // Predicated region
  $region22: #{ggc_forward.7} parent=0 // pred_check
    _
  $region23: #{ggc_forward.7} parent=0 // pred_check_branch
    %24 = sbr.rel (0) target = $region25
  $region24: #{ggc_forward.7} parent=0 // pred_region
    _
  $region25: #{ggc_forward.7} parent=0 // pred_fallthru
    _
  // Predicated region
  $region26: #{ggc_forward.7} parent=0 // pred_check
    _
  $region27: #{ggc_forward.7} parent=0 // pred_check_branch
    %26 = sbr.rel (0) target = $region29
  $region28: #{ggc_forward.7} parent=0 // pred_region
    _
  $region29: #{ggc_forward.7} parent=0 // pred_fallthru
    _
  %s27 = sld [smem:[#allocation2]]
  %s28 = sand.u32 2147483647, %s27
  %p29 = scmp.ge.f32.partialorder %s28, 1e-08
  %s30 = scalar_select %p29, %s27, 0.0
  %v31 = vld [vmem:[%s1] sm:$0xff]
  %v32 = vld [vmem:[%s1 + $0x8] sm:$0xff]
  %v33 = vld [vmem:[%s1 + $0x10] sm:$0xff]
  %v34 = vld [vmem:[%s1 + $0x18] sm:$0xff]
  %v35 = vld [vmem:[%s1 + $0x20] sm:$0xff]
  %v36 = vld [vmem:[%s1 + $0x28] sm:$0xff]
  %v37 = vld [vmem:[%s1 + $0x30] sm:$0xff]
  %v38 = vld [vmem:[%s1 + $0x38] sm:$0xff]
  %v39 = vld [vmem:[%s1 + $0x40] sm:$0xff]
  %v40 = vld [vmem:[%s1 + $0x48] sm:$0xff]
  %v41 = vld [vmem:[%s1 + $0x50] sm:$0xff]
  %v42 = vld [vmem:[%s1 + $0x58] sm:$0xff]
  %v43 = vld [vmem:[%s1 + $0x60] sm:$0xff]
  %v44 = vld [vmem:[%s1 + $0x68] sm:$0xff]
  %v45 = vld [vmem:[%s1 + $0x70] sm:$0xff]
  %v46 = vld [vmem:[%s1 + $0x78] sm:$0xff]
  %v47 = vld [vmem:[%s3] sm:$0xff]
  %v48 = vld [vmem:[%s3 + $0x8] sm:$0xff]
  %v49 = vld [vmem:[%s3 + $0x10] sm:$0xff]
  %v50 = vld [vmem:[%s3 + $0x18] sm:$0xff]
  %v51 = vld [vmem:[%s3 + $0x20] sm:$0xf]
  %v52 = vld [vmem:[%s5] sm:$0x1]
  %v54 = vperm.slane %v52, 0
  %vm56 = vcmask 293888
  %v58 = vsel %vm56, %v31, 0
  %v61 = vsel %vm56, %v32, 0
  %v64 = vsel %vm56, %v33, 0
  %v67 = vsel %vm56, %v34, 0
  %v70 = vsel %vm56, %v35, 0
  %v73 = vsel %vm56, %v36, 0
  %v76 = vsel %vm56, %v37, 0
  %v79 = vsel %vm56, %v38, 0
  %v82 = vsel %vm56, %v39, 0
  %v85 = vsel %vm56, %v40, 0
  %v88 = vsel %vm56, %v41, 0
  %v91 = vsel %vm56, %v42, 0
  %v94 = vsel %vm56, %v43, 0
  %v97 = vsel %vm56, %v44, 0
  %v100 = vsel %vm56, %v45, 0
  %v103 = vsel %vm56, %v46, 0
  %vm105 = vcmask 1043456
  %v107 = vsel %vm105, %v51, 0
  %109 = vmatpush.msra.mxu0 0.0
  %110 = vmatpush.msra.mxu0 0.0
  %111 = vmatpush.msra.mxu0 0.0
  %112 = vmatpush.msra.mxu0 0.0
  %113 = vmatpush.msra.mxu0 0.0
  %114 = vmatpush.msra.mxu0 0.0
  %115 = vmatpush.msra.mxu0 0.0
  %116 = vmatpush.msra.mxu0 0.0
  %117 = vmatpush.msra.mxu0 0.0
  %118 = vmatpush.msra.mxu0 0.0
  %119 = vmatpush.msra.mxu0 0.0
  %120 = vmatpush.msra.mxu0 %v107
  %121 = vmatpush.msra.mxu0 %v50
  %122 = vmatpush.msra.mxu0 %v49
  %123 = vmatpush.msra.mxu0 %v48
  %124 = vmatpush.msra.mxu0 %v47
  %125 = vmatmul.f32.gmra.mxu0 %v58
  %v126 = vpop.f32.mrf.mxu0
  %v127 = vadd.f32 %v54, %v126
  %128 = vmatmul.f32.gmra.mxu0 %v61
  %v129 = vpop.f32.mrf.mxu0
  %v130 = vadd.f32 %v54, %v129
  %131 = vmatmul.f32.gmra.mxu0 %v64
  %v132 = vpop.f32.mrf.mxu0
  %v133 = vadd.f32 %v54, %v132
  %134 = vmatmul.f32.gmra.mxu0 %v67
  %v135 = vpop.f32.mrf.mxu0
  %v136 = vadd.f32 %v54, %v135
  %137 = vmatmul.f32.gmra.mxu0 %v70
  %v138 = vpop.f32.mrf.mxu0
  %v139 = vadd.f32 %v54, %v138
  %140 = vmatmul.f32.gmra.mxu0 %v73
  %v141 = vpop.f32.mrf.mxu0
  %v142 = vadd.f32 %v54, %v141
  %143 = vmatmul.f32.gmra.mxu0 %v76
  %v144 = vpop.f32.mrf.mxu0
  %v145 = vadd.f32 %v54, %v144
  %146 = vmatmul.f32.gmra.mxu0 %v79
  %v147 = vpop.f32.mrf.mxu0
  %v148 = vadd.f32 %v54, %v147
  %149 = vmatmul.f32.gmra.mxu0 %v82
  %v150 = vpop.f32.mrf.mxu0
  %v151 = vadd.f32 %v54, %v150
  %152 = vmatmul.f32.gmra.mxu0 %v85
  %v153 = vpop.f32.mrf.mxu0
  %v154 = vadd.f32 %v54, %v153
  %155 = vmatmul.f32.gmra.mxu0 %v88
  %v156 = vpop.f32.mrf.mxu0
  %v157 = vadd.f32 %v54, %v156
  %158 = vmatmul.f32.gmra.mxu0 %v91
  %v159 = vpop.f32.mrf.mxu0
  %v160 = vadd.f32 %v54, %v159
  %161 = vmatmul.f32.gmra.mxu0 %v94
  %v162 = vpop.f32.mrf.mxu0
  %v163 = vadd.f32 %v54, %v162
  %164 = vmatmul.f32.gmra.mxu0 %v97
  %v165 = vpop.f32.mrf.mxu0
  %v166 = vadd.f32 %v54, %v165
  %167 = vmatmul.f32.gmra.mxu0 %v100
  %v168 = vpop.f32.mrf.mxu0
  %v169 = vadd.f32 %v54, %v168
  %170 = vmatmul.f32.gmra.mxu0 %v103
  %v171 = vpop.f32.mrf.mxu0
  %v172 = vadd.f32 %v54, %v171
  %173 = vdwg.mxu0
  %v174 = vld [vmem:[%s2] sm:$0xff]
  %v175 = vld [vmem:[%s2 + $0x8] sm:$0xff]
  %v176 = vld [vmem:[%s2 + $0x10] sm:$0xff]
  %v177 = vld [vmem:[%s2 + $0x18] sm:$0xff]
  %v178 = vld [vmem:[%s2 + $0x20] sm:$0xff]
  %v179 = vld [vmem:[%s2 + $0x28] sm:$0xff]
  %v180 = vld [vmem:[%s2 + $0x30] sm:$0xff]
  %v181 = vld [vmem:[%s2 + $0x38] sm:$0xff]
  %v182 = vld [vmem:[%s2 + $0x40] sm:$0xff]
  %v183 = vld [vmem:[%s2 + $0x48] sm:$0xff]
  %v184 = vld [vmem:[%s2 + $0x50] sm:$0xff]
  %v185 = vld [vmem:[%s2 + $0x58] sm:$0xff]
  %v186 = vld [vmem:[%s2 + $0x60] sm:$0xff]
  %v187 = vld [vmem:[%s2 + $0x68] sm:$0xff]
  %v188 = vld [vmem:[%s2 + $0x70] sm:$0xff]
  %v189 = vld [vmem:[%s2 + $0x78] sm:$0xff]
  %v190 = vld [vmem:[%s4] sm:$0xf]
  %v191 = vld [vmem:[%s6] sm:$0x1]
  %v193 = vperm.slane %v191, 0
  %vm195 = vcmask 31744
  %v197 = vsel %vm195, %v174, 0
  %v200 = vsel %vm195, %v175, 0
  %v203 = vsel %vm195, %v176, 0
  %v206 = vsel %vm195, %v177, 0
  %v209 = vsel %vm195, %v178, 0
  %v212 = vsel %vm195, %v179, 0
  %v215 = vsel %vm195, %v180, 0
  %v218 = vsel %vm195, %v181, 0
  %v221 = vsel %vm195, %v182, 0
  %v224 = vsel %vm195, %v183, 0
  %v227 = vsel %vm195, %v184, 0
  %v230 = vsel %vm195, %v185, 0
  %v233 = vsel %vm195, %v186, 0
  %v236 = vsel %vm195, %v187, 0
  %v239 = vsel %vm195, %v188, 0
  %v242 = vsel %vm195, %v189, 0
  %v245 = vsel %vm105, %v190, 0
  %247 = vmatpush.msra.mxu0 0.0
  %248 = vmatpush.msra.mxu0 0.0
  %249 = vmatpush.msra.mxu0 0.0
  %250 = vmatpush.msra.mxu0 0.0
  %251 = vmatpush.msra.mxu0 0.0
  %252 = vmatpush.msra.mxu0 0.0
  %253 = vmatpush.msra.mxu0 0.0
  %254 = vmatpush.msra.mxu0 0.0
  %255 = vmatpush.msra.mxu0 0.0
  %256 = vmatpush.msra.mxu0 0.0
  %257 = vmatpush.msra.mxu0 0.0
  %258 = vmatpush.msra.mxu0 0.0
  %259 = vmatpush.msra.mxu0 0.0
  %260 = vmatpush.msra.mxu0 0.0
  %261 = vmatpush.msra.mxu0 0.0
  %262 = vmatpush.msra.mxu0 %v245
  %263 = vmatmul.f32.gmra.mxu0 %v197
  %v264 = vpop.f32.mrf.mxu0
  %v265 = vadd.f32 %v193, %v264
  %266 = vmatmul.f32.gmra.mxu0 %v200
  %v267 = vpop.f32.mrf.mxu0
  %v268 = vadd.f32 %v193, %v267
  %269 = vmatmul.f32.gmra.mxu0 %v203
  %v270 = vpop.f32.mrf.mxu0
  %v271 = vadd.f32 %v193, %v270
  %272 = vmatmul.f32.gmra.mxu0 %v206
  %v273 = vpop.f32.mrf.mxu0
  %v274 = vadd.f32 %v193, %v273
  %275 = vmatmul.f32.gmra.mxu0 %v209
  %v276 = vpop.f32.mrf.mxu0
  %v277 = vadd.f32 %v193, %v276
  %278 = vmatmul.f32.gmra.mxu0 %v212
  %v279 = vpop.f32.mrf.mxu0
  %v280 = vadd.f32 %v193, %v279
  %281 = vmatmul.f32.gmra.mxu0 %v215
  %v282 = vpop.f32.mrf.mxu0
  %v283 = vadd.f32 %v193, %v282
  %284 = vmatmul.f32.gmra.mxu0 %v218
  %v285 = vpop.f32.mrf.mxu0
  %v286 = vadd.f32 %v193, %v285
  %287 = vmatmul.f32.gmra.mxu0 %v221
  %v288 = vpop.f32.mrf.mxu0
  %v289 = vadd.f32 %v193, %v288
  %290 = vmatmul.f32.gmra.mxu0 %v224
  %v291 = vpop.f32.mrf.mxu0
  %v292 = vadd.f32 %v193, %v291
  %293 = vmatmul.f32.gmra.mxu0 %v227
  %v294 = vpop.f32.mrf.mxu0
  %v295 = vadd.f32 %v193, %v294
  %296 = vmatmul.f32.gmra.mxu0 %v230
  %v297 = vpop.f32.mrf.mxu0
  %v298 = vadd.f32 %v193, %v297
  %299 = vmatmul.f32.gmra.mxu0 %v233
  %v300 = vpop.f32.mrf.mxu0
  %v301 = vadd.f32 %v193, %v300
  %302 = vmatmul.f32.gmra.mxu0 %v236
  %v303 = vpop.f32.mrf.mxu0
  %v304 = vadd.f32 %v193, %v303
  %305 = vmatmul.f32.gmra.mxu0 %v239
  %v306 = vpop.f32.mrf.mxu0
  %v307 = vadd.f32 %v193, %v306
  %308 = vmatmul.f32.gmra.mxu0 %v242
  %v309 = vpop.f32.mrf.mxu0
  %v310 = vadd.f32 %v193, %v309
  %311 = vdwg.mxu0
  %v312 = vstv %s30
  %v313 = vmul.f32 %v312, %v265
  %v314 = vmul.f32 %v312, %v268
  %v315 = vmul.f32 %v312, %v271
  %v316 = vmul.f32 %v312, %v274
  %v317 = vmul.f32 %v312, %v277
  %v318 = vmul.f32 %v312, %v280
  %v319 = vmul.f32 %v312, %v283
  %v320 = vmul.f32 %v312, %v286
  %v321 = vmul.f32 %v312, %v289
  %v322 = vmul.f32 %v312, %v292
  %v323 = vmul.f32 %v312, %v295
  %v324 = vmul.f32 %v312, %v298
  %v325 = vmul.f32 %v312, %v301
  %v326 = vmul.f32 %v312, %v304
  %v327 = vmul.f32 %v312, %v307
  %v328 = vmul.f32 %v312, %v310
  %v329 = vsub.f32 %v127, %v313
  %v330 = vsub.f32 %v130, %v314
  %v331 = vsub.f32 %v133, %v315
  %v332 = vsub.f32 %v136, %v316
  %v333 = vsub.f32 %v139, %v317
  %v334 = vsub.f32 %v142, %v318
  %v335 = vsub.f32 %v145, %v319
  %v336 = vsub.f32 %v148, %v320
  %v337 = vsub.f32 %v151, %v321
  %v338 = vsub.f32 %v154, %v322
  %v339 = vsub.f32 %v157, %v323
  %v340 = vsub.f32 %v160, %v324
  %v341 = vsub.f32 %v163, %v325
  %v342 = vsub.f32 %v166, %v326
  %v343 = vsub.f32 %v169, %v327
  %v344 = vsub.f32 %v172, %v328
  %v345 = vxor.u32 %v329, 2147483648
  %v346 = vxor.u32 %v330, 2147483648
  %v347 = vxor.u32 %v331, 2147483648
  %v348 = vxor.u32 %v332, 2147483648
  %v349 = vxor.u32 %v333, 2147483648
  %v350 = vxor.u32 %v334, 2147483648
  %v351 = vxor.u32 %v335, 2147483648
  %v352 = vxor.u32 %v336, 2147483648
  %v353 = vxor.u32 %v337, 2147483648
  %v354 = vxor.u32 %v338, 2147483648
  %v355 = vxor.u32 %v339, 2147483648
  %v356 = vxor.u32 %v340, 2147483648
  %v357 = vxor.u32 %v341, 2147483648
  %v358 = vxor.u32 %v342, 2147483648
  %v359 = vxor.u32 %v343, 2147483648
  %v360 = vxor.u32 %v344, 2147483648
  %v361 = vmul.f32 %v345, 1.442695
  %v362 = vpow.pop %v361
  %v363 = vmul.f32 %v346, 1.442695
  %v364 = vpow.pop %v363
  %v365 = vmul.f32 %v347, 1.442695
  %v366 = vpow.pop %v365
  %v367 = vmul.f32 %v348, 1.442695
  %v368 = vpow.pop %v367
  %v369 = vmul.f32 %v349, 1.442695
  %v370 = vpow.pop %v369
  %v371 = vmul.f32 %v350, 1.442695
  %v372 = vpow.pop %v371
  %v373 = vmul.f32 %v351, 1.442695
  %v374 = vpow.pop %v373
  %v375 = vmul.f32 %v352, 1.442695
  %v376 = vpow.pop %v375
  %v377 = vmul.f32 %v353, 1.442695
  %v378 = vpow.pop %v377
  %v379 = vmul.f32 %v354, 1.442695
  %v380 = vpow.pop %v379
  %v381 = vmul.f32 %v355, 1.442695
  %v382 = vpow.pop %v381
  %v383 = vmul.f32 %v356, 1.442695
  %v384 = vpow.pop %v383
  %v385 = vmul.f32 %v357, 1.442695
  %v386 = vpow.pop %v385
  %v387 = vmul.f32 %v358, 1.442695
  %v388 = vpow.pop %v387
  %v389 = vmul.f32 %v359, 1.442695
  %v390 = vpow.pop %v389
  %v391 = vmul.f32 %v360, 1.442695
  %v392 = vpow.pop %v391
  %v393 = vadd.f32 %v362, 1.0
  %v394 = vadd.f32 %v364, 1.0
  %v395 = vadd.f32 %v366, 1.0
  %v396 = vadd.f32 %v368, 1.0
  %v397 = vadd.f32 %v370, 1.0
  %v398 = vadd.f32 %v372, 1.0
  %v399 = vadd.f32 %v374, 1.0
  %v400 = vadd.f32 %v376, 1.0
  %v401 = vadd.f32 %v378, 1.0
  %v402 = vadd.f32 %v380, 1.0
  %v403 = vadd.f32 %v382, 1.0
  %v404 = vadd.f32 %v384, 1.0
  %v405 = vadd.f32 %v386, 1.0
  %v406 = vadd.f32 %v388, 1.0
  %v407 = vadd.f32 %v390, 1.0
  %v408 = vadd.f32 %v392, 1.0
  %v409 = vrcp.pop %v393
  %v410 = vmul.f32 %v393, %v409
  %v411 = vsub.f32 1.0, %v410
  %v412 = vmul.f32 %v409, %v411
  %v413 = vadd.f32 %v409, %v412
  %vm414 = vweird.f32 %v393
  %vm415 = vweird.f32 %v409
  %vm416 = vmor %vm414, %vm415
  %v417 = vsel %vm416, %v409, %v413
  %v418 = vand.u32 2147483647, %v393
  %vm419 = vcmp.eq.f32.partialorder %v418, 8.507059e+37
  %v420 = vand.u32 %v393, 2147483648
  %v421 = vor.u32 1.1754944e-38, %v420
  %v422 = vsel %vm419, %v421, %v417
  %v423 = vmul.f32 1.0, %v422
  %v424 = vrcp.pop %v394
  %v425 = vmul.f32 %v394, %v424
  %v426 = vsub.f32 1.0, %v425
  %v427 = vmul.f32 %v424, %v426
  %v428 = vadd.f32 %v424, %v427
  %vm429 = vweird.f32 %v394
  %vm430 = vweird.f32 %v424
  %vm431 = vmor %vm429, %vm430
  %v432 = vsel %vm431, %v424, %v428
  %v433 = vand.u32 2147483647, %v394
  %vm434 = vcmp.eq.f32.partialorder %v433, 8.507059e+37
  %v435 = vand.u32 %v394, 2147483648
  %v436 = vor.u32 1.1754944e-38, %v435
  %v437 = vsel %vm434, %v436, %v432
  %v438 = vmul.f32 1.0, %v437
  %v439 = vrcp.pop %v395
  %v440 = vmul.f32 %v395, %v439
  %v441 = vsub.f32 1.0, %v440
  %v442 = vmul.f32 %v439, %v441
  %v443 = vadd.f32 %v439, %v442
  %vm444 = vweird.f32 %v395
  %vm445 = vweird.f32 %v439
  %vm446 = vmor %vm444, %vm445
  %v447 = vsel %vm446, %v439, %v443
  %v448 = vand.u32 2147483647, %v395
  %vm449 = vcmp.eq.f32.partialorder %v448, 8.507059e+37
  %v450 = vand.u32 %v395, 2147483648
  %v451 = vor.u32 1.1754944e-38, %v450
  %v452 = vsel %vm449, %v451, %v447
  %v453 = vmul.f32 1.0, %v452
  %v454 = vrcp.pop %v396
  %v455 = vmul.f32 %v396, %v454
  %v456 = vsub.f32 1.0, %v455
  %v457 = vmul.f32 %v454, %v456
  %v458 = vadd.f32 %v454, %v457
  %vm459 = vweird.f32 %v396
  %vm460 = vweird.f32 %v454
  %vm461 = vmor %vm459, %vm460
  %v462 = vsel %vm461, %v454, %v458
  %v463 = vand.u32 2147483647, %v396
  %vm464 = vcmp.eq.f32.partialorder %v463, 8.507059e+37
  %v465 = vand.u32 %v396, 2147483648
  %v466 = vor.u32 1.1754944e-38, %v465
  %v467 = vsel %vm464, %v466, %v462
  %v468 = vmul.f32 1.0, %v467
  %v469 = vrcp.pop %v397
  %v470 = vmul.f32 %v397, %v469
  %v471 = vsub.f32 1.0, %v470
  %v472 = vmul.f32 %v469, %v471
  %v473 = vadd.f32 %v469, %v472
  %vm474 = vweird.f32 %v397
  %vm475 = vweird.f32 %v469
  %vm476 = vmor %vm474, %vm475
  %v477 = vsel %vm476, %v469, %v473
  %v478 = vand.u32 2147483647, %v397
  %vm479 = vcmp.eq.f32.partialorder %v478, 8.507059e+37
  %v480 = vand.u32 %v397, 2147483648
  %v481 = vor.u32 1.1754944e-38, %v480
  %v482 = vsel %vm479, %v481, %v477
  %v483 = vmul.f32 1.0, %v482
  %v484 = vrcp.pop %v398
  %v485 = vmul.f32 %v398, %v484
  %v486 = vsub.f32 1.0, %v485
  %v487 = vmul.f32 %v484, %v486
  %v488 = vadd.f32 %v484, %v487
  %vm489 = vweird.f32 %v398
  %vm490 = vweird.f32 %v484
  %vm491 = vmor %vm489, %vm490
  %v492 = vsel %vm491, %v484, %v488
  %v493 = vand.u32 2147483647, %v398
  %vm494 = vcmp.eq.f32.partialorder %v493, 8.507059e+37
  %v495 = vand.u32 %v398, 2147483648
  %v496 = vor.u32 1.1754944e-38, %v495
  %v497 = vsel %vm494, %v496, %v492
  %v498 = vmul.f32 1.0, %v497
  %v499 = vrcp.pop %v399
  %v500 = vmul.f32 %v399, %v499
  %v501 = vsub.f32 1.0, %v500
  %v502 = vmul.f32 %v499, %v501
  %v503 = vadd.f32 %v499, %v502
  %vm504 = vweird.f32 %v399
  %vm505 = vweird.f32 %v499
  %vm506 = vmor %vm504, %vm505
  %v507 = vsel %vm506, %v499, %v503
  %v508 = vand.u32 2147483647, %v399
  %vm509 = vcmp.eq.f32.partialorder %v508, 8.507059e+37
  %v510 = vand.u32 %v399, 2147483648
  %v511 = vor.u32 1.1754944e-38, %v510
  %v512 = vsel %vm509, %v511, %v507
  %v513 = vmul.f32 1.0, %v512
  %v514 = vrcp.pop %v400
  %v515 = vmul.f32 %v400, %v514
  %v516 = vsub.f32 1.0, %v515
  %v517 = vmul.f32 %v514, %v516
  %v518 = vadd.f32 %v514, %v517
  %vm519 = vweird.f32 %v400
  %vm520 = vweird.f32 %v514
  %vm521 = vmor %vm519, %vm520
  %v522 = vsel %vm521, %v514, %v518
  %v523 = vand.u32 2147483647, %v400
  %vm524 = vcmp.eq.f32.partialorder %v523, 8.507059e+37
  %v525 = vand.u32 %v400, 2147483648
  %v526 = vor.u32 1.1754944e-38, %v525
  %v527 = vsel %vm524, %v526, %v522
  %v528 = vmul.f32 1.0, %v527
  %v529 = vrcp.pop %v401
  %v530 = vmul.f32 %v401, %v529
  %v531 = vsub.f32 1.0, %v530
  %v532 = vmul.f32 %v529, %v531
  %v533 = vadd.f32 %v529, %v532
  %vm534 = vweird.f32 %v401
  %vm535 = vweird.f32 %v529
  %vm536 = vmor %vm534, %vm535
  %v537 = vsel %vm536, %v529, %v533
  %v538 = vand.u32 2147483647, %v401
  %vm539 = vcmp.eq.f32.partialorder %v538, 8.507059e+37
  %v540 = vand.u32 %v401, 2147483648
  %v541 = vor.u32 1.1754944e-38, %v540
  %v542 = vsel %vm539, %v541, %v537
  %v543 = vmul.f32 1.0, %v542
  %v544 = vrcp.pop %v402
  %v545 = vmul.f32 %v402, %v544
  %v546 = vsub.f32 1.0, %v545
  %v547 = vmul.f32 %v544, %v546
  %v548 = vadd.f32 %v544, %v547
  %vm549 = vweird.f32 %v402
  %vm550 = vweird.f32 %v544
  %vm551 = vmor %vm549, %vm550
  %v552 = vsel %vm551, %v544, %v548
  %v553 = vand.u32 2147483647, %v402
  %vm554 = vcmp.eq.f32.partialorder %v553, 8.507059e+37
  %v555 = vand.u32 %v402, 2147483648
  %v556 = vor.u32 1.1754944e-38, %v555
  %v557 = vsel %vm554, %v556, %v552
  %v558 = vmul.f32 1.0, %v557
  %v559 = vrcp.pop %v403
  %v560 = vmul.f32 %v403, %v559
  %v561 = vsub.f32 1.0, %v560
  %v562 = vmul.f32 %v559, %v561
  %v563 = vadd.f32 %v559, %v562
  %vm564 = vweird.f32 %v403
  %vm565 = vweird.f32 %v559
  %vm566 = vmor %vm564, %vm565
  %v567 = vsel %vm566, %v559, %v563
  %v568 = vand.u32 2147483647, %v403
  %vm569 = vcmp.eq.f32.partialorder %v568, 8.507059e+37
  %v570 = vand.u32 %v403, 2147483648
  %v571 = vor.u32 1.1754944e-38, %v570
  %v572 = vsel %vm569, %v571, %v567
  %v573 = vmul.f32 1.0, %v572
  %v574 = vrcp.pop %v404
  %v575 = vmul.f32 %v404, %v574
  %v576 = vsub.f32 1.0, %v575
  %v577 = vmul.f32 %v574, %v576
  %v578 = vadd.f32 %v574, %v577
  %vm579 = vweird.f32 %v404
  %vm580 = vweird.f32 %v574
  %vm581 = vmor %vm579, %vm580
  %v582 = vsel %vm581, %v574, %v578
  %v583 = vand.u32 2147483647, %v404
  %vm584 = vcmp.eq.f32.partialorder %v583, 8.507059e+37
  %v585 = vand.u32 %v404, 2147483648
  %v586 = vor.u32 1.1754944e-38, %v585
  %v587 = vsel %vm584, %v586, %v582
  %v588 = vmul.f32 1.0, %v587
  %v589 = vrcp.pop %v405
  %v590 = vmul.f32 %v405, %v589
  %v591 = vsub.f32 1.0, %v590
  %v592 = vmul.f32 %v589, %v591
  %v593 = vadd.f32 %v589, %v592
  %vm594 = vweird.f32 %v405
  %vm595 = vweird.f32 %v589
  %vm596 = vmor %vm594, %vm595
  %v597 = vsel %vm596, %v589, %v593
  %v598 = vand.u32 2147483647, %v405
  %vm599 = vcmp.eq.f32.partialorder %v598, 8.507059e+37
  %v600 = vand.u32 %v405, 2147483648
  %v601 = vor.u32 1.1754944e-38, %v600
  %v602 = vsel %vm599, %v601, %v597
  %v603 = vmul.f32 1.0, %v602
  %v604 = vrcp.pop %v406
  %v605 = vmul.f32 %v406, %v604
  %v606 = vsub.f32 1.0, %v605
  %v607 = vmul.f32 %v604, %v606
  %v608 = vadd.f32 %v604, %v607
  %vm609 = vweird.f32 %v406
  %vm610 = vweird.f32 %v604
  %vm611 = vmor %vm609, %vm610
  %v612 = vsel %vm611, %v604, %v608
  %v613 = vand.u32 2147483647, %v406
  %vm614 = vcmp.eq.f32.partialorder %v613, 8.507059e+37
  %v615 = vand.u32 %v406, 2147483648
  %v616 = vor.u32 1.1754944e-38, %v615
  %v617 = vsel %vm614, %v616, %v612
  %v618 = vmul.f32 1.0, %v617
  %v619 = vrcp.pop %v407
  %v620 = vmul.f32 %v407, %v619
  %v621 = vsub.f32 1.0, %v620
  %v622 = vmul.f32 %v619, %v621
  %v623 = vadd.f32 %v619, %v622
  %vm624 = vweird.f32 %v407
  %vm625 = vweird.f32 %v619
  %vm626 = vmor %vm624, %vm625
  %v627 = vsel %vm626, %v619, %v623
  %v628 = vand.u32 2147483647, %v407
  %vm629 = vcmp.eq.f32.partialorder %v628, 8.507059e+37
  %v630 = vand.u32 %v407, 2147483648
  %v631 = vor.u32 1.1754944e-38, %v630
  %v632 = vsel %vm629, %v631, %v627
  %v633 = vmul.f32 1.0, %v632
  %v634 = vrcp.pop %v408
  %v635 = vmul.f32 %v408, %v634
  %v636 = vsub.f32 1.0, %v635
  %v637 = vmul.f32 %v634, %v636
  %v638 = vadd.f32 %v634, %v637
  %vm639 = vweird.f32 %v408
  %vm640 = vweird.f32 %v634
  %vm641 = vmor %vm639, %vm640
  %v642 = vsel %vm641, %v634, %v638
  %v643 = vand.u32 2147483647, %v408
  %vm644 = vcmp.eq.f32.partialorder %v643, 8.507059e+37
  %v645 = vand.u32 %v408, 2147483648
  %v646 = vor.u32 1.1754944e-38, %v645
  %v647 = vsel %vm644, %v646, %v642
  %v648 = vmul.f32 1.0, %v647
  %vm649 = vcmp.ge.f32.partialorder %v329, 0.0
  %vm650 = vcmp.ge.f32.partialorder %v330, 0.0
  %vm651 = vcmp.ge.f32.partialorder %v331, 0.0
  %vm652 = vcmp.ge.f32.partialorder %v332, 0.0
  %vm653 = vcmp.ge.f32.partialorder %v333, 0.0
  %vm654 = vcmp.ge.f32.partialorder %v334, 0.0
  %vm655 = vcmp.ge.f32.partialorder %v335, 0.0
  %vm656 = vcmp.ge.f32.partialorder %v336, 0.0
  %vm657 = vcmp.ge.f32.partialorder %v337, 0.0
  %vm658 = vcmp.ge.f32.partialorder %v338, 0.0
  %vm659 = vcmp.ge.f32.partialorder %v339, 0.0
  %vm660 = vcmp.ge.f32.partialorder %v340, 0.0
  %vm661 = vcmp.ge.f32.partialorder %v341, 0.0
  %vm662 = vcmp.ge.f32.partialorder %v342, 0.0
  %vm663 = vcmp.ge.f32.partialorder %v343, 0.0
  %vm664 = vcmp.ge.f32.partialorder %v344, 0.0
  %v665 = vmul.f32 %v329, 0.2
  %v666 = vmul.f32 %v330, 0.2
  %v667 = vmul.f32 %v331, 0.2
  %v668 = vmul.f32 %v332, 0.2
  %v669 = vmul.f32 %v333, 0.2
  %v670 = vmul.f32 %v334, 0.2
  %v671 = vmul.f32 %v335, 0.2
  %v672 = vmul.f32 %v336, 0.2
  %v673 = vmul.f32 %v337, 0.2
  %v674 = vmul.f32 %v338, 0.2
  %v675 = vmul.f32 %v339, 0.2
  %v676 = vmul.f32 %v340, 0.2
  %v677 = vmul.f32 %v341, 0.2
  %v678 = vmul.f32 %v342, 0.2
  %v679 = vmul.f32 %v343, 0.2
  %v680 = vmul.f32 %v344, 0.2
  %v681 = vsel %vm649, %v329, %v665
  %v682 = vsel %vm650, %v330, %v666
  %v683 = vsel %vm651, %v331, %v667
  %v684 = vsel %vm652, %v332, %v668
  %v685 = vsel %vm653, %v333, %v669
  %v686 = vsel %vm654, %v334, %v670
  %v687 = vsel %vm655, %v335, %v671
  %v688 = vsel %vm656, %v336, %v672
  %v689 = vsel %vm657, %v337, %v673
  %v690 = vsel %vm658, %v338, %v674
  %v691 = vsel %vm659, %v339, %v675
  %v692 = vsel %vm660, %v340, %v676
  %v693 = vsel %vm661, %v341, %v677
  %v694 = vsel %vm662, %v342, %v678
  %v695 = vsel %vm663, %v343, %v679
  %v696 = vsel %vm664, %v344, %v680
  %713 = vrot.lane.b32.xlu0 %v423, 120
  %v714 = vpop.permute.xlu0 %713
  %715 = vrot.lane.b32.xlu0 %v438, 120
  %v716 = vpop.permute.xlu0 %715
  %717 = vrot.lane.b32.xlu0 %v453, 120
  %v718 = vpop.permute.xlu0 %717
  %719 = vrot.lane.b32.xlu0 %v468, 120
  %v720 = vpop.permute.xlu0 %719
  %721 = vrot.lane.b32.xlu0 %v483, 120
  %v722 = vpop.permute.xlu0 %721
  %723 = vrot.lane.b32.xlu0 %v498, 120
  %v724 = vpop.permute.xlu0 %723
  %725 = vrot.lane.b32.xlu0 %v513, 120
  %v726 = vpop.permute.xlu0 %725
  %727 = vrot.lane.b32.xlu0 %v528, 120
  %v728 = vpop.permute.xlu0 %727
  %729 = vrot.lane.b32.xlu0 %v543, 120
  %v730 = vpop.permute.xlu0 %729
  %731 = vrot.lane.b32.xlu0 %v558, 120
  %v732 = vpop.permute.xlu0 %731
  %733 = vrot.lane.b32.xlu0 %v573, 120
  %v734 = vpop.permute.xlu0 %733
  %735 = vrot.lane.b32.xlu0 %v588, 120
  %v736 = vpop.permute.xlu0 %735
  %737 = vrot.lane.b32.xlu0 %v603, 120
  %v738 = vpop.permute.xlu0 %737
  %739 = vrot.lane.b32.xlu0 %v618, 120
  %v740 = vpop.permute.xlu0 %739
  %741 = vrot.lane.b32.xlu0 %v633, 120
  %v742 = vpop.permute.xlu0 %741
  %743 = vrot.lane.b32.xlu0 %v648, 120
  %v744 = vpop.permute.xlu0 %743
  %v761 = vmul.f32 %v681, %v714
  %v762 = vmul.f32 %v682, %v716
  %v763 = vmul.f32 %v683, %v718
  %v764 = vmul.f32 %v684, %v720
  %v765 = vmul.f32 %v685, %v722
  %v766 = vmul.f32 %v686, %v724
  %v767 = vmul.f32 %v687, %v726
  %v768 = vmul.f32 %v688, %v728
  %v769 = vmul.f32 %v689, %v730
  %v770 = vmul.f32 %v690, %v732
  %v771 = vmul.f32 %v691, %v734
  %v772 = vmul.f32 %v692, %v736
  %v773 = vmul.f32 %v693, %v738
  %v774 = vmul.f32 %v694, %v740
  %v775 = vmul.f32 %v695, %v742
  %v776 = vmul.f32 %v696, %v744
  %vm777 = vcmask 64512
  %778 = vst.msk [vmem:[%s7] sm:$0xff] %vm777, %v761
  %779 = vst.msk [vmem:[%s7 + $0x8] sm:$0xff] %vm777, %v762
  %780 = vst.msk [vmem:[%s7 + $0x10] sm:$0xff] %vm777, %v763
  %781 = vst.msk [vmem:[%s7 + $0x18] sm:$0xff] %vm777, %v764
  %782 = vst.msk [vmem:[%s7 + $0x20] sm:$0xff] %vm777, %v765
  %783 = vst.msk [vmem:[%s7 + $0x28] sm:$0xff] %vm777, %v766
  %784 = vst.msk [vmem:[%s7 + $0x30] sm:$0xff] %vm777, %v767
  %785 = vst.msk [vmem:[%s7 + $0x38] sm:$0xff] %vm777, %v768
  %786 = vst.msk [vmem:[%s7 + $0x40] sm:$0xff] %vm777, %v769
  %787 = vst.msk [vmem:[%s7 + $0x48] sm:$0xff] %vm777, %v770
  %788 = vst.msk [vmem:[%s7 + $0x50] sm:$0xff] %vm777, %v771
  %789 = vst.msk [vmem:[%s7 + $0x58] sm:$0xff] %vm777, %v772
  %790 = vst.msk [vmem:[%s7 + $0x60] sm:$0xff] %vm777, %v773
  %791 = vst.msk [vmem:[%s7 + $0x68] sm:$0xff] %vm777, %v774
  %792 = vst.msk [vmem:[%s7 + $0x70] sm:$0xff] %vm777, %v775
  %793 = vst.msk [vmem:[%s7 + $0x78] sm:$0xff] %vm777, %v776
  // Predicated region
  $region30: #{ggc_forward.7} parent=0 // pred_check
    _
  $region31: #{ggc_forward.7} parent=0 // pred_check_branch
    %795 = sbr.rel (0) target = $region33
  $region32: #{ggc_forward.7} parent=0 // pred_region
    _
  $region33: #{ggc_forward.7} parent=0 // pred_fallthru
    _
  // Predicated region
  $region34: #{ggc_forward.7} parent=0 // pred_check
    _
  $region35: #{ggc_forward.7} parent=0 // pred_check_branch
    %797 = sbr.rel (0) target = $region37
  $region36: #{ggc_forward.7} parent=0 // pred_region
    _
  $region37: #{ggc_forward.7} parent=0 // pred_fallthru
    _

</llo_original>
